<compile_context>
chip_gen: v7x
topology: tpu7x:2x2x1
jax: 0.10.0
libtpu: 0.0.40
codegen_flags: <defaults>
</compile_context>

<pallas_src>
import numpy as np
import jax
import jax.numpy as jnp
from jax.experimental import pallas as pl
from jax.experimental.pallas import tpu as pltpu

# ----- model configuration (small, consistent with the module) -----
BATCH     = 2
SEQ_LEN   = 16     # configs.seq_len
PRED_LEN  = 8      # configs.pred_len
CHANNELS  = 4      # configs.enc_in
S_DIM     = 32     # configs.S
D_FF      = 32     # configs.d_ff
E_LAYERS  = 2      # configs.e_layers
D_LAYERS  = 2      # configs.d_layers
MA_KERNEL = 25     # series_decomp(25) -> moving_avg(kernel_size=25, stride=1)
MA_STRIDE = 1
LN_EPS    = 1e-5
REV_EPS   = 1e-5
_INV_SQRT2 = float(1.0 / np.sqrt(2.0))


# ---------------------------------------------------------------------------
# The single fused Pallas kernel
# ---------------------------------------------------------------------------
def _fused_forward_kernel(*refs):
    """Inputs (all VMEM): x (B,L,C), avg (L,L), scatter (B,C,BC), gather (B,BC,C),
    gmask (B,1,BC), then per encoder layer (mk,mv,f2w,f2b,g1,b1,g2,b2) and per
    decoder layer (w1,b1,w2,b2).  Output: (B, PRED_LEN, C)."""
    x_ref, avg_ref, scat_ref, gath_ref, gmask_ref = refs[:5]
    k = 5
    enc1 = [refs[k + i * 8: k + (i + 1) * 8] for i in range(E_LAYERS)]
    k += 8 * E_LAYERS
    enc2 = [refs[k + i * 8: k + (i + 1) * 8] for i in range(E_LAYERS)]
    k += 8 * E_LAYERS
    dec = [refs[k + i * 4: k + (i + 1) * 4] for i in range(D_LAYERS)]
    k += 4 * D_LAYERS
    out_ref = refs[k]

    B, L, C = x_ref.shape
    BC = B * C
    f32 = jnp.float32

    # Per-batch lane masks (1.0 on the C lanes belonging to batch b), loaded once.
    sels = [gmask_ref[b] for b in range(B)]            # each (1, BC)

    # ---- entry: lane-stack batches (B, L, C) -> (L, B*C) via constant placement dots ----
    # (no transpose / concat ops needed; each batch's channels land in lanes b*C..b*C+C-1)
    x_all = jnp.dot(x_ref[0], scat_ref[0], preferred_element_type=f32)
    for b in range(1, B):
        x_all = x_all + jnp.dot(x_ref[b], scat_ref[b], preferred_element_type=f32)

    # ---- RevIN 'norm' (fresh affine weights -> identity): per-(batch,channel) series ----
    mu = jnp.mean(x_all, axis=0, keepdims=True)                       # (1, BC)
    var = jnp.mean((x_all - mu) ** 2, axis=0, keepdims=True)
    std = jnp.sqrt(var + REV_EPS)
    xn = (x_all - mu) / std

    # ---- series_decomp(25): moving_avg = replicate pad (k-1)//2 + AvgPool1d(k, stride=1),
    #      folded into a dense (L_out, L) averaging matrix applied over the time axis ----
    # TODO(synk): for large SEQ_LEN replace the dense (L,L) averaging matrix with a banded /
    # pltpu.roll shifted-add formulation (dense is O(L^2) VMEM and MXU work vs O(L*k)).
    trend = jnp.dot(avg_ref[...], xn, preferred_element_type=f32)     # (L, BC)
    seas = xn - trend

    def layer_norm_time(h, g, b):
        # LayerNorm(seq_len): normalize over the time axis (rows), affine per time step.
        m = jnp.mean(h, axis=0, keepdims=True)
        v = jnp.mean((h - m) ** 2, axis=0, keepdims=True)
        return (h - m) * jax.lax.rsqrt(v + LN_EPS) * g + b

    def channel_softmax(a):
        # a: (S, B*C). Softmax over each batch's C channel lanes.  Done with masked
        # arithmetic so both batches share one set of vector ops (no slicing / concat),
        # while each batch keeps its own max / normalizer (reviewer correctness note).
        m_cols = None
        for b in range(B):
            sel = sels[b]
            m_b = jnp.max(a * sel - 1e30 * (1.0 - sel), axis=-1, keepdims=True)   # (S,1)
            m_cols = m_b * sel if m_cols is None else m_cols + m_b * sel
        e = jnp.exp(a - m_cols)
        s_cols = None
        for b in range(B):
            sel = sels[b]
            s_b = jnp.sum(e * sel, axis=-1, keepdims=True)                        # (S,1)
            s_cols = s_b * sel if s_cols is None else s_cols + s_b * sel
        return e * pl.reciprocal(s_cols, approx=True)       # EUP reciprocal (free slot)

    def encoder_layer(h, p):
        # LEncoderLayer. (drop1 is declared in the PyTorch module but never applied.)
        mk_w, mv_w, f2_w, f2_b, g1, b1, g2, b2 = (r[...] for r in p)
        a = jnp.dot(mk_w, h, preferred_element_type=f32)              # (S, BC) external attn
        a = channel_softmax(a)                                        # softmax over channels
        h = h + jnp.dot(mv_w, a, preferred_element_type=f32)          # residual
        h = layer_norm_time(h, g1, b1)
        h = h + jnp.dot(f2_w, h, preferred_element_type=f32) + f2_b   # feed2 residual
        return layer_norm_time(h, g2, b2)

    def mlp_layer(h, p):
        w1, b1, w2, b2 = (r[...] for r in p)
        z = jnp.dot(w1, h, preferred_element_type=f32) + b1
        z = 0.5 * z * (1.0 + jax.lax.erf(z * _INV_SQRT2))             # exact nn.GELU()
        return jnp.dot(w2, z, preferred_element_type=f32) + b2

    for p in enc1:                                                    # encoder1 on seasonal
        seas = encoder_layer(seas, p)
    for p in enc2:                                                    # encoder2 on trend
        trend = encoder_layer(trend, p)

    cur = seas + trend                                                # (L, BC)
    for p in dec:                                                     # MLP decoder over time
        cur = mlp_layer(cur, p)                                       # -> (PRED_LEN, BC)

    y = cur * std + mu                                                # RevIN denorm

    # ---- exit: (PRED_LEN, B*C) -> (B, PRED_LEN, C), written directly (no XLA transpose) ----
    for b in range(B):
        out_ref[b] = jnp.dot(y, gath_ref[b], preferred_element_type=f32)


# ---------------------------------------------------------------------------
# Parameters (deterministic, torch-like uniform init, natural (out,in) layout)
# ---------------------------------------------------------------------------
def _uniform(key, shape, fan_in):
    bound = 1.0 / np.sqrt(fan_in)
    return jax.random.uniform(key, shape, jnp.float32, -bound, bound)


def _init_encoder_layer(key, L, S):
    k1, k2, k3, k4 = jax.random.split(key, 4)
    mk_w = _uniform(k1, (S, L), L)          # mk: Linear(L -> S) weight, torch (out, in)
    mv_w = _uniform(k2, (L, S), S)          # mv: Linear(S -> L)
    f2_w = _uniform(k3, (L, L), L)          # feed2: Linear(L -> L)
    f2_b = _uniform(k4, (L, 1), L)          # feed2 bias as a column over time
    g1 = jnp.ones((L, 1), jnp.float32); b1 = jnp.zeros((L, 1), jnp.float32)
    g2 = jnp.ones((L, 1), jnp.float32); b2 = jnp.zeros((L, 1), jnp.float32)
    return (mk_w, mv_w, f2_w, f2_b, g1, b1, g2, b2)


def _init_mlp_layer(key, in_f, hid, out_f):
    k1, k2, k3, k4 = jax.random.split(key, 4)
    w1 = _uniform(k1, (hid, in_f), in_f)
    b1 = _uniform(k2, (hid, 1), in_f)
    w2 = _uniform(k3, (out_f, hid), hid)
    b2 = _uniform(k4, (out_f, 1), hid)
    return (w1, b1, w2, b2)


def _build_avg_matrix(L, ksize, stride):
    """A[t, j] = weight of x[j] in moving_avg output[t] (replicate pad + AvgPool1d)."""
    pad = (ksize - 1) // 2
    L_out = (L + 2 * pad - ksize) // stride + 1
    A = np.zeros((L_out, L), dtype=np.float32)
    for t in range(L_out):
        for kk in range(ksize):
            j = min(max(t * stride + kk - pad, 0), L - 1)
            A[t, j] += 1.0 / ksize
    return A


def _build_layout_constants(B, C):
    BC = B * C
    scatter = np.zeros((B, C, BC), np.float32)   # (L,C) @ scatter[b] -> lanes b*C..b*C+C-1
    gather = np.zeros((B, BC, C), np.float32)    # (P,BC) @ gather[b] -> (P,C) of batch b
    gmask = np.zeros((B, 1, BC), np.float32)     # 1.0 on lanes belonging to batch b
    for b in range(B):
        for c in range(C):
            scatter[b, c, b * C + c] = 1.0
            gather[b, b * C + c, c] = 1.0
        gmask[b, 0, b * C:(b + 1) * C] = 1.0
    return jnp.asarray(scatter), jnp.asarray(gather), jnp.asarray(gmask)


def init_params(key):
    keys = jax.random.split(key, 2 * E_LAYERS + D_LAYERS)
    enc1 = [_init_encoder_layer(keys[i], SEQ_LEN, S_DIM) for i in range(E_LAYERS)]
    enc2 = [_init_encoder_layer(keys[E_LAYERS + i], SEQ_LEN, S_DIM) for i in range(E_LAYERS)]
    dec = []
    for l in range(D_LAYERS):
        in_f = SEQ_LEN if l == 0 else PRED_LEN
        dec.append(_init_mlp_layer(keys[2 * E_LAYERS + l], in_f, D_FF, PRED_LEN))
    avg = jnp.asarray(_build_avg_matrix(SEQ_LEN, MA_KERNEL, MA_STRIDE))
    scatter, gather, gmask = _build_layout_constants(BATCH, CHANNELS)
    return {"enc1": enc1, "enc2": enc2, "dec": dec, "avg": avg,
            "scatter": scatter, "gather": gather, "gmask": gmask}


# ---------------------------------------------------------------------------
# Single fused pallas_call wrapper (no grid; everything fits in VMEM on v5e/v6e/v7x)
# ---------------------------------------------------------------------------
_VMEM = pl.BlockSpec(memory_space=pltpu.MemorySpace.VMEM)


def _flatten_params(params):
    flat = [params["avg"], params["scatter"], params["gather"], params["gmask"]]
    for lp in params["enc1"]:
        flat.extend(lp)
    for lp in params["enc2"]:
        flat.extend(lp)
    for lp in params["dec"]:
        flat.extend(lp)
    return flat


def _cost_estimate(n_input_bytes, n_output_bytes):
    BC = BATCH * CHANNELS
    mm = lambda m, kk, n: 2 * m * kk * n
    flops = BATCH * mm(SEQ_LEN, CHANNELS, BC)                    # entry lane-stack
    flops += mm(SEQ_LEN, SEQ_LEN, BC)                            # moving average
    per_enc = mm(S_DIM, SEQ_LEN, BC) + mm(SEQ_LEN, S_DIM, BC) + mm(SEQ_LEN, SEQ_LEN, BC)
    flops += 2 * E_LAYERS * per_enc
    flops += mm(D_FF, SEQ_LEN, BC) + mm(PRED_LEN, D_FF, BC)      # decoder layer 0
    flops += (D_LAYERS - 1) * (mm(D_FF, PRED_LEN, BC) + mm(PRED_LEN, D_FF, BC))
    flops += BATCH * mm(PRED_LEN, BC, CHANNELS)                  # exit gather
    trans = 2 * E_LAYERS * S_DIM * BC + D_LAYERS * D_FF * BC + 8 * BC  # exp + erf (+rsqrt)
    return pl.CostEstimate(flops=int(flops), transcendentals=int(trans),
                           bytes_accessed=int(n_input_bytes + n_output_bytes))


@jax.jit
def model_forward(x, params):
    """x: (B, SEQ_LEN, CHANNELS) -> (B, PRED_LEN, CHANNELS), one fused Pallas kernel."""
    B, L, C = x.shape
    inputs = [x.astype(jnp.float32)] + _flatten_params(params)
    in_bytes = 4 * sum(int(np.prod(a.shape)) for a in inputs)
    out_bytes = 4 * B * PRED_LEN * C
    return pl.pallas_call(
        _fused_forward_kernel,
        out_shape=jax.ShapeDtypeStruct((B, PRED_LEN, C), jnp.float32),
        in_specs=[_VMEM] * len(inputs),
        out_specs=_VMEM,
        cost_estimate=_cost_estimate(in_bytes, out_bytes),
    )(*inputs)


if __name__ == "__main__":
    key = jax.random.PRNGKey(0)
    pkey, xkey = jax.random.split(key)
    params = init_params(pkey)
    x = jax.random.normal(xkey, (BATCH, SEQ_LEN, CHANNELS), jnp.float32)
    y = jax.block_until_ready(model_forward(x, params))
    assert y.shape == (BATCH, PRED_LEN, CHANNELS), y.shape
    assert bool(jnp.all(jnp.isfinite(y)))
    print("KERNEL_OK")
</pallas_src>

<mosaic_0001>
module attributes {stable_mosaic.version = 11 : i64} {
  func.func @_fused_forward_kernel(%arg0: memref<2x16x4xf32, #tpu.memory_space<vmem>>, %arg1: memref<16x16xf32, #tpu.memory_space<vmem>>, %arg2: memref<2x4x8xf32, #tpu.memory_space<vmem>>, %arg3: memref<2x8x4xf32, #tpu.memory_space<vmem>>, %arg4: memref<2x1x8xf32, #tpu.memory_space<vmem>>, %arg5: memref<32x16xf32, #tpu.memory_space<vmem>>, %arg6: memref<16x32xf32, #tpu.memory_space<vmem>>, %arg7: memref<16x16xf32, #tpu.memory_space<vmem>>, %arg8: memref<16x1xf32, #tpu.memory_space<vmem>>, %arg9: memref<16x1xf32, #tpu.memory_space<vmem>>, %arg10: memref<16x1xf32, #tpu.memory_space<vmem>>, %arg11: memref<16x1xf32, #tpu.memory_space<vmem>>, %arg12: memref<16x1xf32, #tpu.memory_space<vmem>>, %arg13: memref<32x16xf32, #tpu.memory_space<vmem>>, %arg14: memref<16x32xf32, #tpu.memory_space<vmem>>, %arg15: memref<16x16xf32, #tpu.memory_space<vmem>>, %arg16: memref<16x1xf32, #tpu.memory_space<vmem>>, %arg17: memref<16x1xf32, #tpu.memory_space<vmem>>, %arg18: memref<16x1xf32, #tpu.memory_space<vmem>>, %arg19: memref<16x1xf32, #tpu.memory_space<vmem>>, %arg20: memref<16x1xf32, #tpu.memory_space<vmem>>, %arg21: memref<32x16xf32, #tpu.memory_space<vmem>>, %arg22: memref<16x32xf32, #tpu.memory_space<vmem>>, %arg23: memref<16x16xf32, #tpu.memory_space<vmem>>, %arg24: memref<16x1xf32, #tpu.memory_space<vmem>>, %arg25: memref<16x1xf32, #tpu.memory_space<vmem>>, %arg26: memref<16x1xf32, #tpu.memory_space<vmem>>, %arg27: memref<16x1xf32, #tpu.memory_space<vmem>>, %arg28: memref<16x1xf32, #tpu.memory_space<vmem>>, %arg29: memref<32x16xf32, #tpu.memory_space<vmem>>, %arg30: memref<16x32xf32, #tpu.memory_space<vmem>>, %arg31: memref<16x16xf32, #tpu.memory_space<vmem>>, %arg32: memref<16x1xf32, #tpu.memory_space<vmem>>, %arg33: memref<16x1xf32, #tpu.memory_space<vmem>>, %arg34: memref<16x1xf32, #tpu.memory_space<vmem>>, %arg35: memref<16x1xf32, #tpu.memory_space<vmem>>, %arg36: memref<16x1xf32, #tpu.memory_space<vmem>>, %arg37: memref<32x16xf32, #tpu.memory_space<vmem>>, %arg38: memref<32x1xf32, #tpu.memory_space<vmem>>, %arg39: memref<8x32xf32, #tpu.memory_space<vmem>>, %arg40: memref<8x1xf32, #tpu.memory_space<vmem>>, %arg41: memref<32x8xf32, #tpu.memory_space<vmem>>, %arg42: memref<32x1xf32, #tpu.memory_space<vmem>>, %arg43: memref<8x32xf32, #tpu.memory_space<vmem>>, %arg44: memref<8x1xf32, #tpu.memory_space<vmem>>, %arg45: memref<2x8x4xf32, #tpu.memory_space<vmem>>) attributes {dimension_semantics = [], scalar_prefetch = 0 : i64, scratch_operands = 0 : i64, tpu.core_type = #tpu.core_type<tc>} {
    %c0 = arith.constant 0 : index
    %c0_0 = arith.constant 0 : index
    %c0_1 = arith.constant 0 : index
    %0 = vector.load %arg4[%c0, %c0_0, %c0_1] : memref<2x1x8xf32, #tpu.memory_space<vmem>>, vector<1x1x8xf32>
    %1 = vector.shape_cast %0 : vector<1x1x8xf32> to vector<1x8xf32>
    %c1 = arith.constant 1 : index
    %c0_2 = arith.constant 0 : index
    %c0_3 = arith.constant 0 : index
    %2 = vector.load %arg4[%c1, %c0_2, %c0_3] : memref<2x1x8xf32, #tpu.memory_space<vmem>>, vector<1x1x8xf32>
    %3 = vector.shape_cast %2 : vector<1x1x8xf32> to vector<1x8xf32>
    %c0_4 = arith.constant 0 : index
    %c0_5 = arith.constant 0 : index
    %c0_6 = arith.constant 0 : index
    %4 = vector.load %arg0[%c0_4, %c0_5, %c0_6] : memref<2x16x4xf32, #tpu.memory_space<vmem>>, vector<1x16x4xf32>
    %5 = vector.shape_cast %4 : vector<1x16x4xf32> to vector<16x4xf32>
    %c0_7 = arith.constant 0 : index
    %c0_8 = arith.constant 0 : index
    %c0_9 = arith.constant 0 : index
    %6 = vector.load %arg2[%c0_7, %c0_8, %c0_9] : memref<2x4x8xf32, #tpu.memory_space<vmem>>, vector<1x4x8xf32>
    %7 = vector.shape_cast %6 : vector<1x4x8xf32> to vector<4x8xf32>
    %cst = arith.constant dense<0.000000e+00> : vector<16x8xf32>
    %8 = tpu.matmul %5, %7, %cst {dimension_numbers = #tpu.dot_dimension_numbers<[1], [0], [0], [1], [0, 0, 1, 1], [], []>} : vector<16x4xf32>, vector<4x8xf32>, vector<16x8xf32> -> vector<16x8xf32>
    %c1_10 = arith.constant 1 : index
    %c0_11 = arith.constant 0 : index
    %c0_12 = arith.constant 0 : index
    %9 = vector.load %arg0[%c1_10, %c0_11, %c0_12] : memref<2x16x4xf32, #tpu.memory_space<vmem>>, vector<1x16x4xf32>
    %10 = vector.shape_cast %9 : vector<1x16x4xf32> to vector<16x4xf32>
    %c1_13 = arith.constant 1 : index
    %c0_14 = arith.constant 0 : index
    %c0_15 = arith.constant 0 : index
    %11 = vector.load %arg2[%c1_13, %c0_14, %c0_15] : memref<2x4x8xf32, #tpu.memory_space<vmem>>, vector<1x4x8xf32>
    %12 = vector.shape_cast %11 : vector<1x4x8xf32> to vector<4x8xf32>
    %cst_16 = arith.constant dense<0.000000e+00> : vector<16x8xf32>
    %13 = tpu.matmul %10, %12, %cst_16 {dimension_numbers = #tpu.dot_dimension_numbers<[1], [0], [0], [1], [0, 0, 1, 1], [], []>} : vector<16x4xf32>, vector<4x8xf32>, vector<16x8xf32> -> vector<16x8xf32>
    %14 = arith.addf %8, %13 : vector<16x8xf32>
    %cst_17 = arith.constant dense<0.000000e+00> : vector<8xf32>
    %15 = vector.multi_reduction <add>, %14, %cst_17 [0] : vector<16x8xf32> to vector<8xf32>
    %16 = vector.shape_cast %15 : vector<8xf32> to vector<1x8xf32>
    %cst_18 = arith.constant 1.600000e+01 : f32
    %17 = vector.broadcast %cst_18 : f32 to vector<1x8xf32>
    %18 = arith.divf %16, %17 : vector<1x8xf32>
    %19 = vector.broadcast %18 : vector<1x8xf32> to vector<16x8xf32>
    %20 = arith.subf %14, %19 : vector<16x8xf32>
    %21 = arith.mulf %20, %20 : vector<16x8xf32>
    %cst_19 = arith.constant dense<0.000000e+00> : vector<8xf32>
    %22 = vector.multi_reduction <add>, %21, %cst_19 [0] : vector<16x8xf32> to vector<8xf32>
    %23 = vector.shape_cast %22 : vector<8xf32> to vector<1x8xf32>
    %cst_20 = arith.constant 1.600000e+01 : f32
    %24 = vector.broadcast %cst_20 : f32 to vector<1x8xf32>
    %25 = arith.divf %23, %24 : vector<1x8xf32>
    %cst_21 = arith.constant 9.99999974E-6 : f32
    %26 = vector.broadcast %cst_21 : f32 to vector<1x8xf32>
    %27 = arith.addf %25, %26 : vector<1x8xf32>
    %28 = math.sqrt %27 : vector<1x8xf32>
    %29 = vector.broadcast %18 : vector<1x8xf32> to vector<16x8xf32>
    %30 = arith.subf %14, %29 : vector<16x8xf32>
    %31 = vector.broadcast %28 : vector<1x8xf32> to vector<16x8xf32>
    %32 = arith.divf %30, %31 : vector<16x8xf32>
    %c0_22 = arith.constant 0 : index
    %c0_23 = arith.constant 0 : index
    %33 = vector.load %arg1[%c0_22, %c0_23] : memref<16x16xf32, #tpu.memory_space<vmem>>, vector<16x16xf32>
    %cst_24 = arith.constant dense<0.000000e+00> : vector<16x8xf32>
    %34 = tpu.matmul %33, %32, %cst_24 {dimension_numbers = #tpu.dot_dimension_numbers<[1], [0], [0], [1], [0, 0, 1, 1], [], []>} : vector<16x16xf32>, vector<16x8xf32>, vector<16x8xf32> -> vector<16x8xf32>
    %35 = arith.subf %32, %34 : vector<16x8xf32>
    %c0_25 = arith.constant 0 : index
    %c0_26 = arith.constant 0 : index
    %36 = vector.load %arg5[%c0_25, %c0_26] : memref<32x16xf32, #tpu.memory_space<vmem>>, vector<32x16xf32>
    %c0_27 = arith.constant 0 : index
    %c0_28 = arith.constant 0 : index
    %37 = vector.load %arg6[%c0_27, %c0_28] : memref<16x32xf32, #tpu.memory_space<vmem>>, vector<16x32xf32>
    %c0_29 = arith.constant 0 : index
    %c0_30 = arith.constant 0 : index
    %38 = vector.load %arg7[%c0_29, %c0_30] : memref<16x16xf32, #tpu.memory_space<vmem>>, vector<16x16xf32>
    %c0_31 = arith.constant 0 : index
    %c0_32 = arith.constant 0 : index
    %39 = vector.load %arg8[%c0_31, %c0_32] : memref<16x1xf32, #tpu.memory_space<vmem>>, vector<16x1xf32>
    %c0_33 = arith.constant 0 : index
    %c0_34 = arith.constant 0 : index
    %40 = vector.load %arg9[%c0_33, %c0_34] : memref<16x1xf32, #tpu.memory_space<vmem>>, vector<16x1xf32>
    %c0_35 = arith.constant 0 : index
    %c0_36 = arith.constant 0 : index
    %41 = vector.load %arg10[%c0_35, %c0_36] : memref<16x1xf32, #tpu.memory_space<vmem>>, vector<16x1xf32>
    %c0_37 = arith.constant 0 : index
    %c0_38 = arith.constant 0 : index
    %42 = vector.load %arg11[%c0_37, %c0_38] : memref<16x1xf32, #tpu.memory_space<vmem>>, vector<16x1xf32>
    %c0_39 = arith.constant 0 : index
    %c0_40 = arith.constant 0 : index
    %43 = vector.load %arg12[%c0_39, %c0_40] : memref<16x1xf32, #tpu.memory_space<vmem>>, vector<16x1xf32>
    %cst_41 = arith.constant dense<0.000000e+00> : vector<32x8xf32>
    %44 = tpu.matmul %36, %35, %cst_41 {dimension_numbers = #tpu.dot_dimension_numbers<[1], [0], [0], [1], [0, 0, 1, 1], [], []>} : vector<32x16xf32>, vector<16x8xf32>, vector<32x8xf32> -> vector<32x8xf32>
    %45 = vector.broadcast %1 : vector<1x8xf32> to vector<32x8xf32>
    %46 = arith.mulf %44, %45 : vector<32x8xf32>
    %cst_42 = arith.constant 1.000000e+00 : f32
    %47 = vector.broadcast %cst_42 : f32 to vector<1x8xf32>
    %48 = arith.subf %47, %1 : vector<1x8xf32>
    %cst_43 = arith.constant 1.000000e+30 : f32
    %49 = vector.broadcast %cst_43 : f32 to vector<1x8xf32>
    %50 = arith.mulf %49, %48 : vector<1x8xf32>
    %51 = vector.broadcast %50 : vector<1x8xf32> to vector<32x8xf32>
    %52 = arith.subf %46, %51 : vector<32x8xf32>
    %cst_44 = arith.constant dense<0xFF800000> : vector<32xf32>
    %53 = vector.multi_reduction <maximumf>, %52, %cst_44 [1] : vector<32x8xf32> to vector<32xf32>
    %54 = vector.shape_cast %53 : vector<32xf32> to vector<32x1xf32>
    %55 = vector.broadcast %54 : vector<32x1xf32> to vector<32x8xf32>
    %56 = vector.broadcast %1 : vector<1x8xf32> to vector<32x8xf32>
    %57 = arith.mulf %55, %56 : vector<32x8xf32>
    %58 = vector.broadcast %3 : vector<1x8xf32> to vector<32x8xf32>
    %59 = arith.mulf %44, %58 : vector<32x8xf32>
    %cst_45 = arith.constant 1.000000e+00 : f32
    %60 = vector.broadcast %cst_45 : f32 to vector<1x8xf32>
    %61 = arith.subf %60, %3 : vector<1x8xf32>
    %cst_46 = arith.constant 1.000000e+30 : f32
    %62 = vector.broadcast %cst_46 : f32 to vector<1x8xf32>
    %63 = arith.mulf %62, %61 : vector<1x8xf32>
    %64 = vector.broadcast %63 : vector<1x8xf32> to vector<32x8xf32>
    %65 = arith.subf %59, %64 : vector<32x8xf32>
    %cst_47 = arith.constant dense<0xFF800000> : vector<32xf32>
    %66 = vector.multi_reduction <maximumf>, %65, %cst_47 [1] : vector<32x8xf32> to vector<32xf32>
    %67 = vector.shape_cast %66 : vector<32xf32> to vector<32x1xf32>
    %68 = vector.broadcast %67 : vector<32x1xf32> to vector<32x8xf32>
    %69 = vector.broadcast %3 : vector<1x8xf32> to vector<32x8xf32>
    %70 = arith.mulf %68, %69 : vector<32x8xf32>
    %71 = arith.addf %57, %70 : vector<32x8xf32>
    %72 = arith.subf %44, %71 : vector<32x8xf32>
    %73 = math.exp %72 : vector<32x8xf32>
    %74 = vector.broadcast %1 : vector<1x8xf32> to vector<32x8xf32>
    %75 = arith.mulf %73, %74 : vector<32x8xf32>
    %cst_48 = arith.constant dense<0.000000e+00> : vector<32xf32>
    %76 = vector.multi_reduction <add>, %75, %cst_48 [1] : vector<32x8xf32> to vector<32xf32>
    %77 = vector.shape_cast %76 : vector<32xf32> to vector<32x1xf32>
    %78 = vector.broadcast %77 : vector<32x1xf32> to vector<32x8xf32>
    %79 = vector.broadcast %1 : vector<1x8xf32> to vector<32x8xf32>
    %80 = arith.mulf %78, %79 : vector<32x8xf32>
    %81 = vector.broadcast %3 : vector<1x8xf32> to vector<32x8xf32>
    %82 = arith.mulf %73, %81 : vector<32x8xf32>
    %cst_49 = arith.constant dense<0.000000e+00> : vector<32xf32>
    %83 = vector.multi_reduction <add>, %82, %cst_49 [1] : vector<32x8xf32> to vector<32xf32>
    %84 = vector.shape_cast %83 : vector<32xf32> to vector<32x1xf32>
    %85 = vector.broadcast %84 : vector<32x1xf32> to vector<32x8xf32>
    %86 = vector.broadcast %3 : vector<1x8xf32> to vector<32x8xf32>
    %87 = arith.mulf %85, %86 : vector<32x8xf32>
    %88 = arith.addf %80, %87 : vector<32x8xf32>
    %89 = tpu.reciprocal %88 {approx = true} : vector<32x8xf32> -> vector<32x8xf32>
    %90 = arith.mulf %73, %89 : vector<32x8xf32>
    %cst_50 = arith.constant dense<0.000000e+00> : vector<16x8xf32>
    %91 = tpu.matmul %37, %90, %cst_50 {dimension_numbers = #tpu.dot_dimension_numbers<[1], [0], [0], [1], [0, 0, 1, 1], [], []>} : vector<16x32xf32>, vector<32x8xf32>, vector<16x8xf32> -> vector<16x8xf32>
    %92 = arith.addf %35, %91 : vector<16x8xf32>
    %cst_51 = arith.constant dense<0.000000e+00> : vector<8xf32>
    %93 = vector.multi_reduction <add>, %92, %cst_51 [0] : vector<16x8xf32> to vector<8xf32>
    %94 = vector.shape_cast %93 : vector<8xf32> to vector<1x8xf32>
    %cst_52 = arith.constant 1.600000e+01 : f32
    %95 = vector.broadcast %cst_52 : f32 to vector<1x8xf32>
    %96 = arith.divf %94, %95 : vector<1x8xf32>
    %97 = vector.broadcast %96 : vector<1x8xf32> to vector<16x8xf32>
    %98 = arith.subf %92, %97 : vector<16x8xf32>
    %99 = arith.mulf %98, %98 : vector<16x8xf32>
    %cst_53 = arith.constant dense<0.000000e+00> : vector<8xf32>
    %100 = vector.multi_reduction <add>, %99, %cst_53 [0] : vector<16x8xf32> to vector<8xf32>
    %101 = vector.shape_cast %100 : vector<8xf32> to vector<1x8xf32>
    %cst_54 = arith.constant 1.600000e+01 : f32
    %102 = vector.broadcast %cst_54 : f32 to vector<1x8xf32>
    %103 = arith.divf %101, %102 : vector<1x8xf32>
    %104 = vector.broadcast %96 : vector<1x8xf32> to vector<16x8xf32>
    %105 = arith.subf %92, %104 : vector<16x8xf32>
    %cst_55 = arith.constant 9.99999974E-6 : f32
    %106 = vector.broadcast %cst_55 : f32 to vector<1x8xf32>
    %107 = arith.addf %103, %106 : vector<1x8xf32>
    %108 = math.rsqrt %107 : vector<1x8xf32>
    %109 = vector.broadcast %108 : vector<1x8xf32> to vector<16x8xf32>
    %110 = arith.mulf %105, %109 : vector<16x8xf32>
    %111 = vector.broadcast %40 : vector<16x1xf32> to vector<16x8xf32>
    %112 = arith.mulf %110, %111 : vector<16x8xf32>
    %113 = vector.broadcast %41 : vector<16x1xf32> to vector<16x8xf32>
    %114 = arith.addf %112, %113 : vector<16x8xf32>
    %cst_56 = arith.constant dense<0.000000e+00> : vector<16x8xf32>
    %115 = tpu.matmul %38, %114, %cst_56 {dimension_numbers = #tpu.dot_dimension_numbers<[1], [0], [0], [1], [0, 0, 1, 1], [], []>} : vector<16x16xf32>, vector<16x8xf32>, vector<16x8xf32> -> vector<16x8xf32>
    %116 = arith.addf %114, %115 : vector<16x8xf32>
    %117 = vector.broadcast %39 : vector<16x1xf32> to vector<16x8xf32>
    %118 = arith.addf %116, %117 : vector<16x8xf32>
    %cst_57 = arith.constant dense<0.000000e+00> : vector<8xf32>
    %119 = vector.multi_reduction <add>, %118, %cst_57 [0] : vector<16x8xf32> to vector<8xf32>
    %120 = vector.shape_cast %119 : vector<8xf32> to vector<1x8xf32>
    %cst_58 = arith.constant 1.600000e+01 : f32
    %121 = vector.broadcast %cst_58 : f32 to vector<1x8xf32>
    %122 = arith.divf %120, %121 : vector<1x8xf32>
    %123 = vector.broadcast %122 : vector<1x8xf32> to vector<16x8xf32>
    %124 = arith.subf %118, %123 : vector<16x8xf32>
    %125 = arith.mulf %124, %124 : vector<16x8xf32>
    %cst_59 = arith.constant dense<0.000000e+00> : vector<8xf32>
    %126 = vector.multi_reduction <add>, %125, %cst_59 [0] : vector<16x8xf32> to vector<8xf32>
    %127 = vector.shape_cast %126 : vector<8xf32> to vector<1x8xf32>
    %cst_60 = arith.constant 1.600000e+01 : f32
    %128 = vector.broadcast %cst_60 : f32 to vector<1x8xf32>
    %129 = arith.divf %127, %128 : vector<1x8xf32>
    %130 = vector.broadcast %122 : vector<1x8xf32> to vector<16x8xf32>
    %131 = arith.subf %118, %130 : vector<16x8xf32>
    %cst_61 = arith.constant 9.99999974E-6 : f32
    %132 = vector.broadcast %cst_61 : f32 to vector<1x8xf32>
    %133 = arith.addf %129, %132 : vector<1x8xf32>
    %134 = math.rsqrt %133 : vector<1x8xf32>
    %135 = vector.broadcast %134 : vector<1x8xf32> to vector<16x8xf32>
    %136 = arith.mulf %131, %135 : vector<16x8xf32>
    %137 = vector.broadcast %42 : vector<16x1xf32> to vector<16x8xf32>
    %138 = arith.mulf %136, %137 : vector<16x8xf32>
    %139 = vector.broadcast %43 : vector<16x1xf32> to vector<16x8xf32>
    %140 = arith.addf %138, %139 : vector<16x8xf32>
    %c0_62 = arith.constant 0 : index
    %c0_63 = arith.constant 0 : index
    %141 = vector.load %arg13[%c0_62, %c0_63] : memref<32x16xf32, #tpu.memory_space<vmem>>, vector<32x16xf32>
    %c0_64 = arith.constant 0 : index
    %c0_65 = arith.constant 0 : index
    %142 = vector.load %arg14[%c0_64, %c0_65] : memref<16x32xf32, #tpu.memory_space<vmem>>, vector<16x32xf32>
    %c0_66 = arith.constant 0 : index
    %c0_67 = arith.constant 0 : index
    %143 = vector.load %arg15[%c0_66, %c0_67] : memref<16x16xf32, #tpu.memory_space<vmem>>, vector<16x16xf32>
    %c0_68 = arith.constant 0 : index
    %c0_69 = arith.constant 0 : index
    %144 = vector.load %arg16[%c0_68, %c0_69] : memref<16x1xf32, #tpu.memory_space<vmem>>, vector<16x1xf32>
    %c0_70 = arith.constant 0 : index
    %c0_71 = arith.constant 0 : index
    %145 = vector.load %arg17[%c0_70, %c0_71] : memref<16x1xf32, #tpu.memory_space<vmem>>, vector<16x1xf32>
    %c0_72 = arith.constant 0 : index
    %c0_73 = arith.constant 0 : index
    %146 = vector.load %arg18[%c0_72, %c0_73] : memref<16x1xf32, #tpu.memory_space<vmem>>, vector<16x1xf32>
    %c0_74 = arith.constant 0 : index
    %c0_75 = arith.constant 0 : index
    %147 = vector.load %arg19[%c0_74, %c0_75] : memref<16x1xf32, #tpu.memory_space<vmem>>, vector<16x1xf32>
    %c0_76 = arith.constant 0 : index
    %c0_77 = arith.constant 0 : index
    %148 = vector.load %arg20[%c0_76, %c0_77] : memref<16x1xf32, #tpu.memory_space<vmem>>, vector<16x1xf32>
    %cst_78 = arith.constant dense<0.000000e+00> : vector<32x8xf32>
    %149 = tpu.matmul %141, %140, %cst_78 {dimension_numbers = #tpu.dot_dimension_numbers<[1], [0], [0], [1], [0, 0, 1, 1], [], []>} : vector<32x16xf32>, vector<16x8xf32>, vector<32x8xf32> -> vector<32x8xf32>
    %150 = vector.broadcast %1 : vector<1x8xf32> to vector<32x8xf32>
    %151 = arith.mulf %149, %150 : vector<32x8xf32>
    %cst_79 = arith.constant 1.000000e+00 : f32
    %152 = vector.broadcast %cst_79 : f32 to vector<1x8xf32>
    %153 = arith.subf %152, %1 : vector<1x8xf32>
    %cst_80 = arith.constant 1.000000e+30 : f32
    %154 = vector.broadcast %cst_80 : f32 to vector<1x8xf32>
    %155 = arith.mulf %154, %153 : vector<1x8xf32>
    %156 = vector.broadcast %155 : vector<1x8xf32> to vector<32x8xf32>
    %157 = arith.subf %151, %156 : vector<32x8xf32>
    %cst_81 = arith.constant dense<0xFF800000> : vector<32xf32>
    %158 = vector.multi_reduction <maximumf>, %157, %cst_81 [1] : vector<32x8xf32> to vector<32xf32>
    %159 = vector.shape_cast %158 : vector<32xf32> to vector<32x1xf32>
    %160 = vector.broadcast %159 : vector<32x1xf32> to vector<32x8xf32>
    %161 = vector.broadcast %1 : vector<1x8xf32> to vector<32x8xf32>
    %162 = arith.mulf %160, %161 : vector<32x8xf32>
    %163 = vector.broadcast %3 : vector<1x8xf32> to vector<32x8xf32>
    %164 = arith.mulf %149, %163 : vector<32x8xf32>
    %cst_82 = arith.constant 1.000000e+00 : f32
    %165 = vector.broadcast %cst_82 : f32 to vector<1x8xf32>
    %166 = arith.subf %165, %3 : vector<1x8xf32>
    %cst_83 = arith.constant 1.000000e+30 : f32
    %167 = vector.broadcast %cst_83 : f32 to vector<1x8xf32>
    %168 = arith.mulf %167, %166 : vector<1x8xf32>
    %169 = vector.broadcast %168 : vector<1x8xf32> to vector<32x8xf32>
    %170 = arith.subf %164, %169 : vector<32x8xf32>
    %cst_84 = arith.constant dense<0xFF800000> : vector<32xf32>
    %171 = vector.multi_reduction <maximumf>, %170, %cst_84 [1] : vector<32x8xf32> to vector<32xf32>
    %172 = vector.shape_cast %171 : vector<32xf32> to vector<32x1xf32>
    %173 = vector.broadcast %172 : vector<32x1xf32> to vector<32x8xf32>
    %174 = vector.broadcast %3 : vector<1x8xf32> to vector<32x8xf32>
    %175 = arith.mulf %173, %174 : vector<32x8xf32>
    %176 = arith.addf %162, %175 : vector<32x8xf32>
    %177 = arith.subf %149, %176 : vector<32x8xf32>
    %178 = math.exp %177 : vector<32x8xf32>
    %179 = vector.broadcast %1 : vector<1x8xf32> to vector<32x8xf32>
    %180 = arith.mulf %178, %179 : vector<32x8xf32>
    %cst_85 = arith.constant dense<0.000000e+00> : vector<32xf32>
    %181 = vector.multi_reduction <add>, %180, %cst_85 [1] : vector<32x8xf32> to vector<32xf32>
    %182 = vector.shape_cast %181 : vector<32xf32> to vector<32x1xf32>
    %183 = vector.broadcast %182 : vector<32x1xf32> to vector<32x8xf32>
    %184 = vector.broadcast %1 : vector<1x8xf32> to vector<32x8xf32>
    %185 = arith.mulf %183, %184 : vector<32x8xf32>
    %186 = vector.broadcast %3 : vector<1x8xf32> to vector<32x8xf32>
    %187 = arith.mulf %178, %186 : vector<32x8xf32>
    %cst_86 = arith.constant dense<0.000000e+00> : vector<32xf32>
    %188 = vector.multi_reduction <add>, %187, %cst_86 [1] : vector<32x8xf32> to vector<32xf32>
    %189 = vector.shape_cast %188 : vector<32xf32> to vector<32x1xf32>
    %190 = vector.broadcast %189 : vector<32x1xf32> to vector<32x8xf32>
    %191 = vector.broadcast %3 : vector<1x8xf32> to vector<32x8xf32>
    %192 = arith.mulf %190, %191 : vector<32x8xf32>
    %193 = arith.addf %185, %192 : vector<32x8xf32>
    %194 = tpu.reciprocal %193 {approx = true} : vector<32x8xf32> -> vector<32x8xf32>
    %195 = arith.mulf %178, %194 : vector<32x8xf32>
    %cst_87 = arith.constant dense<0.000000e+00> : vector<16x8xf32>
    %196 = tpu.matmul %142, %195, %cst_87 {dimension_numbers = #tpu.dot_dimension_numbers<[1], [0], [0], [1], [0, 0, 1, 1], [], []>} : vector<16x32xf32>, vector<32x8xf32>, vector<16x8xf32> -> vector<16x8xf32>
    %197 = arith.addf %140, %196 : vector<16x8xf32>
    %cst_88 = arith.constant dense<0.000000e+00> : vector<8xf32>
    %198 = vector.multi_reduction <add>, %197, %cst_88 [0] : vector<16x8xf32> to vector<8xf32>
    %199 = vector.shape_cast %198 : vector<8xf32> to vector<1x8xf32>
    %cst_89 = arith.constant 1.600000e+01 : f32
    %200 = vector.broadcast %cst_89 : f32 to vector<1x8xf32>
    %201 = arith.divf %199, %200 : vector<1x8xf32>
    %202 = vector.broadcast %201 : vector<1x8xf32> to vector<16x8xf32>
    %203 = arith.subf %197, %202 : vector<16x8xf32>
    %204 = arith.mulf %203, %203 : vector<16x8xf32>
    %cst_90 = arith.constant dense<0.000000e+00> : vector<8xf32>
    %205 = vector.multi_reduction <add>, %204, %cst_90 [0] : vector<16x8xf32> to vector<8xf32>
    %206 = vector.shape_cast %205 : vector<8xf32> to vector<1x8xf32>
    %cst_91 = arith.constant 1.600000e+01 : f32
    %207 = vector.broadcast %cst_91 : f32 to vector<1x8xf32>
    %208 = arith.divf %206, %207 : vector<1x8xf32>
    %209 = vector.broadcast %201 : vector<1x8xf32> to vector<16x8xf32>
    %210 = arith.subf %197, %209 : vector<16x8xf32>
    %cst_92 = arith.constant 9.99999974E-6 : f32
    %211 = vector.broadcast %cst_92 : f32 to vector<1x8xf32>
    %212 = arith.addf %208, %211 : vector<1x8xf32>
    %213 = math.rsqrt %212 : vector<1x8xf32>
    %214 = vector.broadcast %213 : vector<1x8xf32> to vector<16x8xf32>
    %215 = arith.mulf %210, %214 : vector<16x8xf32>
    %216 = vector.broadcast %145 : vector<16x1xf32> to vector<16x8xf32>
    %217 = arith.mulf %215, %216 : vector<16x8xf32>
    %218 = vector.broadcast %146 : vector<16x1xf32> to vector<16x8xf32>
    %219 = arith.addf %217, %218 : vector<16x8xf32>
    %cst_93 = arith.constant dense<0.000000e+00> : vector<16x8xf32>
    %220 = tpu.matmul %143, %219, %cst_93 {dimension_numbers = #tpu.dot_dimension_numbers<[1], [0], [0], [1], [0, 0, 1, 1], [], []>} : vector<16x16xf32>, vector<16x8xf32>, vector<16x8xf32> -> vector<16x8xf32>
    %221 = arith.addf %219, %220 : vector<16x8xf32>
    %222 = vector.broadcast %144 : vector<16x1xf32> to vector<16x8xf32>
    %223 = arith.addf %221, %222 : vector<16x8xf32>
    %cst_94 = arith.constant dense<0.000000e+00> : vector<8xf32>
    %224 = vector.multi_reduction <add>, %223, %cst_94 [0] : vector<16x8xf32> to vector<8xf32>
    %225 = vector.shape_cast %224 : vector<8xf32> to vector<1x8xf32>
    %cst_95 = arith.constant 1.600000e+01 : f32
    %226 = vector.broadcast %cst_95 : f32 to vector<1x8xf32>
    %227 = arith.divf %225, %226 : vector<1x8xf32>
    %228 = vector.broadcast %227 : vector<1x8xf32> to vector<16x8xf32>
    %229 = arith.subf %223, %228 : vector<16x8xf32>
    %230 = arith.mulf %229, %229 : vector<16x8xf32>
    %cst_96 = arith.constant dense<0.000000e+00> : vector<8xf32>
    %231 = vector.multi_reduction <add>, %230, %cst_96 [0] : vector<16x8xf32> to vector<8xf32>
    %232 = vector.shape_cast %231 : vector<8xf32> to vector<1x8xf32>
    %cst_97 = arith.constant 1.600000e+01 : f32
    %233 = vector.broadcast %cst_97 : f32 to vector<1x8xf32>
    %234 = arith.divf %232, %233 : vector<1x8xf32>
    %235 = vector.broadcast %227 : vector<1x8xf32> to vector<16x8xf32>
    %236 = arith.subf %223, %235 : vector<16x8xf32>
    %cst_98 = arith.constant 9.99999974E-6 : f32
    %237 = vector.broadcast %cst_98 : f32 to vector<1x8xf32>
    %238 = arith.addf %234, %237 : vector<1x8xf32>
    %239 = math.rsqrt %238 : vector<1x8xf32>
    %240 = vector.broadcast %239 : vector<1x8xf32> to vector<16x8xf32>
    %241 = arith.mulf %236, %240 : vector<16x8xf32>
    %242 = vector.broadcast %147 : vector<16x1xf32> to vector<16x8xf32>
    %243 = arith.mulf %241, %242 : vector<16x8xf32>
    %244 = vector.broadcast %148 : vector<16x1xf32> to vector<16x8xf32>
    %245 = arith.addf %243, %244 : vector<16x8xf32>
    %c0_99 = arith.constant 0 : index
    %c0_100 = arith.constant 0 : index
    %246 = vector.load %arg21[%c0_99, %c0_100] : memref<32x16xf32, #tpu.memory_space<vmem>>, vector<32x16xf32>
    %c0_101 = arith.constant 0 : index
    %c0_102 = arith.constant 0 : index
    %247 = vector.load %arg22[%c0_101, %c0_102] : memref<16x32xf32, #tpu.memory_space<vmem>>, vector<16x32xf32>
    %c0_103 = arith.constant 0 : index
    %c0_104 = arith.constant 0 : index
    %248 = vector.load %arg23[%c0_103, %c0_104] : memref<16x16xf32, #tpu.memory_space<vmem>>, vector<16x16xf32>
    %c0_105 = arith.constant 0 : index
    %c0_106 = arith.constant 0 : index
    %249 = vector.load %arg24[%c0_105, %c0_106] : memref<16x1xf32, #tpu.memory_space<vmem>>, vector<16x1xf32>
    %c0_107 = arith.constant 0 : index
    %c0_108 = arith.constant 0 : index
    %250 = vector.load %arg25[%c0_107, %c0_108] : memref<16x1xf32, #tpu.memory_space<vmem>>, vector<16x1xf32>
    %c0_109 = arith.constant 0 : index
    %c0_110 = arith.constant 0 : index
    %251 = vector.load %arg26[%c0_109, %c0_110] : memref<16x1xf32, #tpu.memory_space<vmem>>, vector<16x1xf32>
    %c0_111 = arith.constant 0 : index
    %c0_112 = arith.constant 0 : index
    %252 = vector.load %arg27[%c0_111, %c0_112] : memref<16x1xf32, #tpu.memory_space<vmem>>, vector<16x1xf32>
    %c0_113 = arith.constant 0 : index
    %c0_114 = arith.constant 0 : index
    %253 = vector.load %arg28[%c0_113, %c0_114] : memref<16x1xf32, #tpu.memory_space<vmem>>, vector<16x1xf32>
    %cst_115 = arith.constant dense<0.000000e+00> : vector<32x8xf32>
    %254 = tpu.matmul %246, %34, %cst_115 {dimension_numbers = #tpu.dot_dimension_numbers<[1], [0], [0], [1], [0, 0, 1, 1], [], []>} : vector<32x16xf32>, vector<16x8xf32>, vector<32x8xf32> -> vector<32x8xf32>
    %255 = vector.broadcast %1 : vector<1x8xf32> to vector<32x8xf32>
    %256 = arith.mulf %254, %255 : vector<32x8xf32>
    %cst_116 = arith.constant 1.000000e+00 : f32
    %257 = vector.broadcast %cst_116 : f32 to vector<1x8xf32>
    %258 = arith.subf %257, %1 : vector<1x8xf32>
    %cst_117 = arith.constant 1.000000e+30 : f32
    %259 = vector.broadcast %cst_117 : f32 to vector<1x8xf32>
    %260 = arith.mulf %259, %258 : vector<1x8xf32>
    %261 = vector.broadcast %260 : vector<1x8xf32> to vector<32x8xf32>
    %262 = arith.subf %256, %261 : vector<32x8xf32>
    %cst_118 = arith.constant dense<0xFF800000> : vector<32xf32>
    %263 = vector.multi_reduction <maximumf>, %262, %cst_118 [1] : vector<32x8xf32> to vector<32xf32>
    %264 = vector.shape_cast %263 : vector<32xf32> to vector<32x1xf32>
    %265 = vector.broadcast %264 : vector<32x1xf32> to vector<32x8xf32>
    %266 = vector.broadcast %1 : vector<1x8xf32> to vector<32x8xf32>
    %267 = arith.mulf %265, %266 : vector<32x8xf32>
    %268 = vector.broadcast %3 : vector<1x8xf32> to vector<32x8xf32>
    %269 = arith.mulf %254, %268 : vector<32x8xf32>
    %cst_119 = arith.constant 1.000000e+00 : f32
    %270 = vector.broadcast %cst_119 : f32 to vector<1x8xf32>
    %271 = arith.subf %270, %3 : vector<1x8xf32>
    %cst_120 = arith.constant 1.000000e+30 : f32
    %272 = vector.broadcast %cst_120 : f32 to vector<1x8xf32>
    %273 = arith.mulf %272, %271 : vector<1x8xf32>
    %274 = vector.broadcast %273 : vector<1x8xf32> to vector<32x8xf32>
    %275 = arith.subf %269, %274 : vector<32x8xf32>
    %cst_121 = arith.constant dense<0xFF800000> : vector<32xf32>
    %276 = vector.multi_reduction <maximumf>, %275, %cst_121 [1] : vector<32x8xf32> to vector<32xf32>
    %277 = vector.shape_cast %276 : vector<32xf32> to vector<32x1xf32>
    %278 = vector.broadcast %277 : vector<32x1xf32> to vector<32x8xf32>
    %279 = vector.broadcast %3 : vector<1x8xf32> to vector<32x8xf32>
    %280 = arith.mulf %278, %279 : vector<32x8xf32>
    %281 = arith.addf %267, %280 : vector<32x8xf32>
    %282 = arith.subf %254, %281 : vector<32x8xf32>
    %283 = math.exp %282 : vector<32x8xf32>
    %284 = vector.broadcast %1 : vector<1x8xf32> to vector<32x8xf32>
    %285 = arith.mulf %283, %284 : vector<32x8xf32>
    %cst_122 = arith.constant dense<0.000000e+00> : vector<32xf32>
    %286 = vector.multi_reduction <add>, %285, %cst_122 [1] : vector<32x8xf32> to vector<32xf32>
    %287 = vector.shape_cast %286 : vector<32xf32> to vector<32x1xf32>
    %288 = vector.broadcast %287 : vector<32x1xf32> to vector<32x8xf32>
    %289 = vector.broadcast %1 : vector<1x8xf32> to vector<32x8xf32>
    %290 = arith.mulf %288, %289 : vector<32x8xf32>
    %291 = vector.broadcast %3 : vector<1x8xf32> to vector<32x8xf32>
    %292 = arith.mulf %283, %291 : vector<32x8xf32>
    %cst_123 = arith.constant dense<0.000000e+00> : vector<32xf32>
    %293 = vector.multi_reduction <add>, %292, %cst_123 [1] : vector<32x8xf32> to vector<32xf32>
    %294 = vector.shape_cast %293 : vector<32xf32> to vector<32x1xf32>
    %295 = vector.broadcast %294 : vector<32x1xf32> to vector<32x8xf32>
    %296 = vector.broadcast %3 : vector<1x8xf32> to vector<32x8xf32>
    %297 = arith.mulf %295, %296 : vector<32x8xf32>
    %298 = arith.addf %290, %297 : vector<32x8xf32>
    %299 = tpu.reciprocal %298 {approx = true} : vector<32x8xf32> -> vector<32x8xf32>
    %300 = arith.mulf %283, %299 : vector<32x8xf32>
    %cst_124 = arith.constant dense<0.000000e+00> : vector<16x8xf32>
    %301 = tpu.matmul %247, %300, %cst_124 {dimension_numbers = #tpu.dot_dimension_numbers<[1], [0], [0], [1], [0, 0, 1, 1], [], []>} : vector<16x32xf32>, vector<32x8xf32>, vector<16x8xf32> -> vector<16x8xf32>
    %302 = arith.addf %34, %301 : vector<16x8xf32>
    %cst_125 = arith.constant dense<0.000000e+00> : vector<8xf32>
    %303 = vector.multi_reduction <add>, %302, %cst_125 [0] : vector<16x8xf32> to vector<8xf32>
    %304 = vector.shape_cast %303 : vector<8xf32> to vector<1x8xf32>
    %cst_126 = arith.constant 1.600000e+01 : f32
    %305 = vector.broadcast %cst_126 : f32 to vector<1x8xf32>
    %306 = arith.divf %304, %305 : vector<1x8xf32>
    %307 = vector.broadcast %306 : vector<1x8xf32> to vector<16x8xf32>
    %308 = arith.subf %302, %307 : vector<16x8xf32>
    %309 = arith.mulf %308, %308 : vector<16x8xf32>
    %cst_127 = arith.constant dense<0.000000e+00> : vector<8xf32>
    %310 = vector.multi_reduction <add>, %309, %cst_127 [0] : vector<16x8xf32> to vector<8xf32>
    %311 = vector.shape_cast %310 : vector<8xf32> to vector<1x8xf32>
    %cst_128 = arith.constant 1.600000e+01 : f32
    %312 = vector.broadcast %cst_128 : f32 to vector<1x8xf32>
    %313 = arith.divf %311, %312 : vector<1x8xf32>
    %314 = vector.broadcast %306 : vector<1x8xf32> to vector<16x8xf32>
    %315 = arith.subf %302, %314 : vector<16x8xf32>
    %cst_129 = arith.constant 9.99999974E-6 : f32
    %316 = vector.broadcast %cst_129 : f32 to vector<1x8xf32>
    %317 = arith.addf %313, %316 : vector<1x8xf32>
    %318 = math.rsqrt %317 : vector<1x8xf32>
    %319 = vector.broadcast %318 : vector<1x8xf32> to vector<16x8xf32>
    %320 = arith.mulf %315, %319 : vector<16x8xf32>
    %321 = vector.broadcast %250 : vector<16x1xf32> to vector<16x8xf32>
    %322 = arith.mulf %320, %321 : vector<16x8xf32>
    %323 = vector.broadcast %251 : vector<16x1xf32> to vector<16x8xf32>
    %324 = arith.addf %322, %323 : vector<16x8xf32>
    %cst_130 = arith.constant dense<0.000000e+00> : vector<16x8xf32>
    %325 = tpu.matmul %248, %324, %cst_130 {dimension_numbers = #tpu.dot_dimension_numbers<[1], [0], [0], [1], [0, 0, 1, 1], [], []>} : vector<16x16xf32>, vector<16x8xf32>, vector<16x8xf32> -> vector<16x8xf32>
    %326 = arith.addf %324, %325 : vector<16x8xf32>
    %327 = vector.broadcast %249 : vector<16x1xf32> to vector<16x8xf32>
    %328 = arith.addf %326, %327 : vector<16x8xf32>
    %cst_131 = arith.constant dense<0.000000e+00> : vector<8xf32>
    %329 = vector.multi_reduction <add>, %328, %cst_131 [0] : vector<16x8xf32> to vector<8xf32>
    %330 = vector.shape_cast %329 : vector<8xf32> to vector<1x8xf32>
    %cst_132 = arith.constant 1.600000e+01 : f32
    %331 = vector.broadcast %cst_132 : f32 to vector<1x8xf32>
    %332 = arith.divf %330, %331 : vector<1x8xf32>
    %333 = vector.broadcast %332 : vector<1x8xf32> to vector<16x8xf32>
    %334 = arith.subf %328, %333 : vector<16x8xf32>
    %335 = arith.mulf %334, %334 : vector<16x8xf32>
    %cst_133 = arith.constant dense<0.000000e+00> : vector<8xf32>
    %336 = vector.multi_reduction <add>, %335, %cst_133 [0] : vector<16x8xf32> to vector<8xf32>
    %337 = vector.shape_cast %336 : vector<8xf32> to vector<1x8xf32>
    %cst_134 = arith.constant 1.600000e+01 : f32
    %338 = vector.broadcast %cst_134 : f32 to vector<1x8xf32>
    %339 = arith.divf %337, %338 : vector<1x8xf32>
    %340 = vector.broadcast %332 : vector<1x8xf32> to vector<16x8xf32>
    %341 = arith.subf %328, %340 : vector<16x8xf32>
    %cst_135 = arith.constant 9.99999974E-6 : f32
    %342 = vector.broadcast %cst_135 : f32 to vector<1x8xf32>
    %343 = arith.addf %339, %342 : vector<1x8xf32>
    %344 = math.rsqrt %343 : vector<1x8xf32>
    %345 = vector.broadcast %344 : vector<1x8xf32> to vector<16x8xf32>
    %346 = arith.mulf %341, %345 : vector<16x8xf32>
    %347 = vector.broadcast %252 : vector<16x1xf32> to vector<16x8xf32>
    %348 = arith.mulf %346, %347 : vector<16x8xf32>
    %349 = vector.broadcast %253 : vector<16x1xf32> to vector<16x8xf32>
    %350 = arith.addf %348, %349 : vector<16x8xf32>
    %c0_136 = arith.constant 0 : index
    %c0_137 = arith.constant 0 : index
    %351 = vector.load %arg29[%c0_136, %c0_137] : memref<32x16xf32, #tpu.memory_space<vmem>>, vector<32x16xf32>
    %c0_138 = arith.constant 0 : index
    %c0_139 = arith.constant 0 : index
    %352 = vector.load %arg30[%c0_138, %c0_139] : memref<16x32xf32, #tpu.memory_space<vmem>>, vector<16x32xf32>
    %c0_140 = arith.constant 0 : index
    %c0_141 = arith.constant 0 : index
    %353 = vector.load %arg31[%c0_140, %c0_141] : memref<16x16xf32, #tpu.memory_space<vmem>>, vector<16x16xf32>
    %c0_142 = arith.constant 0 : index
    %c0_143 = arith.constant 0 : index
    %354 = vector.load %arg32[%c0_142, %c0_143] : memref<16x1xf32, #tpu.memory_space<vmem>>, vector<16x1xf32>
    %c0_144 = arith.constant 0 : index
    %c0_145 = arith.constant 0 : index
    %355 = vector.load %arg33[%c0_144, %c0_145] : memref<16x1xf32, #tpu.memory_space<vmem>>, vector<16x1xf32>
    %c0_146 = arith.constant 0 : index
    %c0_147 = arith.constant 0 : index
    %356 = vector.load %arg34[%c0_146, %c0_147] : memref<16x1xf32, #tpu.memory_space<vmem>>, vector<16x1xf32>
    %c0_148 = arith.constant 0 : index
    %c0_149 = arith.constant 0 : index
    %357 = vector.load %arg35[%c0_148, %c0_149] : memref<16x1xf32, #tpu.memory_space<vmem>>, vector<16x1xf32>
    %c0_150 = arith.constant 0 : index
    %c0_151 = arith.constant 0 : index
    %358 = vector.load %arg36[%c0_150, %c0_151] : memref<16x1xf32, #tpu.memory_space<vmem>>, vector<16x1xf32>
    %cst_152 = arith.constant dense<0.000000e+00> : vector<32x8xf32>
    %359 = tpu.matmul %351, %350, %cst_152 {dimension_numbers = #tpu.dot_dimension_numbers<[1], [0], [0], [1], [0, 0, 1, 1], [], []>} : vector<32x16xf32>, vector<16x8xf32>, vector<32x8xf32> -> vector<32x8xf32>
    %360 = vector.broadcast %1 : vector<1x8xf32> to vector<32x8xf32>
    %361 = arith.mulf %359, %360 : vector<32x8xf32>
    %cst_153 = arith.constant 1.000000e+00 : f32
    %362 = vector.broadcast %cst_153 : f32 to vector<1x8xf32>
    %363 = arith.subf %362, %1 : vector<1x8xf32>
    %cst_154 = arith.constant 1.000000e+30 : f32
    %364 = vector.broadcast %cst_154 : f32 to vector<1x8xf32>
    %365 = arith.mulf %364, %363 : vector<1x8xf32>
    %366 = vector.broadcast %365 : vector<1x8xf32> to vector<32x8xf32>
    %367 = arith.subf %361, %366 : vector<32x8xf32>
    %cst_155 = arith.constant dense<0xFF800000> : vector<32xf32>
    %368 = vector.multi_reduction <maximumf>, %367, %cst_155 [1] : vector<32x8xf32> to vector<32xf32>
    %369 = vector.shape_cast %368 : vector<32xf32> to vector<32x1xf32>
    %370 = vector.broadcast %369 : vector<32x1xf32> to vector<32x8xf32>
    %371 = vector.broadcast %1 : vector<1x8xf32> to vector<32x8xf32>
    %372 = arith.mulf %370, %371 : vector<32x8xf32>
    %373 = vector.broadcast %3 : vector<1x8xf32> to vector<32x8xf32>
    %374 = arith.mulf %359, %373 : vector<32x8xf32>
    %cst_156 = arith.constant 1.000000e+00 : f32
    %375 = vector.broadcast %cst_156 : f32 to vector<1x8xf32>
    %376 = arith.subf %375, %3 : vector<1x8xf32>
    %cst_157 = arith.constant 1.000000e+30 : f32
    %377 = vector.broadcast %cst_157 : f32 to vector<1x8xf32>
    %378 = arith.mulf %377, %376 : vector<1x8xf32>
    %379 = vector.broadcast %378 : vector<1x8xf32> to vector<32x8xf32>
    %380 = arith.subf %374, %379 : vector<32x8xf32>
    %cst_158 = arith.constant dense<0xFF800000> : vector<32xf32>
    %381 = vector.multi_reduction <maximumf>, %380, %cst_158 [1] : vector<32x8xf32> to vector<32xf32>
    %382 = vector.shape_cast %381 : vector<32xf32> to vector<32x1xf32>
    %383 = vector.broadcast %382 : vector<32x1xf32> to vector<32x8xf32>
    %384 = vector.broadcast %3 : vector<1x8xf32> to vector<32x8xf32>
    %385 = arith.mulf %383, %384 : vector<32x8xf32>
    %386 = arith.addf %372, %385 : vector<32x8xf32>
    %387 = arith.subf %359, %386 : vector<32x8xf32>
    %388 = math.exp %387 : vector<32x8xf32>
    %389 = vector.broadcast %1 : vector<1x8xf32> to vector<32x8xf32>
    %390 = arith.mulf %388, %389 : vector<32x8xf32>
    %cst_159 = arith.constant dense<0.000000e+00> : vector<32xf32>
    %391 = vector.multi_reduction <add>, %390, %cst_159 [1] : vector<32x8xf32> to vector<32xf32>
    %392 = vector.shape_cast %391 : vector<32xf32> to vector<32x1xf32>
    %393 = vector.broadcast %392 : vector<32x1xf32> to vector<32x8xf32>
    %394 = vector.broadcast %1 : vector<1x8xf32> to vector<32x8xf32>
    %395 = arith.mulf %393, %394 : vector<32x8xf32>
    %396 = vector.broadcast %3 : vector<1x8xf32> to vector<32x8xf32>
    %397 = arith.mulf %388, %396 : vector<32x8xf32>
    %cst_160 = arith.constant dense<0.000000e+00> : vector<32xf32>
    %398 = vector.multi_reduction <add>, %397, %cst_160 [1] : vector<32x8xf32> to vector<32xf32>
    %399 = vector.shape_cast %398 : vector<32xf32> to vector<32x1xf32>
    %400 = vector.broadcast %399 : vector<32x1xf32> to vector<32x8xf32>
    %401 = vector.broadcast %3 : vector<1x8xf32> to vector<32x8xf32>
    %402 = arith.mulf %400, %401 : vector<32x8xf32>
    %403 = arith.addf %395, %402 : vector<32x8xf32>
    %404 = tpu.reciprocal %403 {approx = true} : vector<32x8xf32> -> vector<32x8xf32>
    %405 = arith.mulf %388, %404 : vector<32x8xf32>
    %cst_161 = arith.constant dense<0.000000e+00> : vector<16x8xf32>
    %406 = tpu.matmul %352, %405, %cst_161 {dimension_numbers = #tpu.dot_dimension_numbers<[1], [0], [0], [1], [0, 0, 1, 1], [], []>} : vector<16x32xf32>, vector<32x8xf32>, vector<16x8xf32> -> vector<16x8xf32>
    %407 = arith.addf %350, %406 : vector<16x8xf32>
    %cst_162 = arith.constant dense<0.000000e+00> : vector<8xf32>
    %408 = vector.multi_reduction <add>, %407, %cst_162 [0] : vector<16x8xf32> to vector<8xf32>
    %409 = vector.shape_cast %408 : vector<8xf32> to vector<1x8xf32>
    %cst_163 = arith.constant 1.600000e+01 : f32
    %410 = vector.broadcast %cst_163 : f32 to vector<1x8xf32>
    %411 = arith.divf %409, %410 : vector<1x8xf32>
    %412 = vector.broadcast %411 : vector<1x8xf32> to vector<16x8xf32>
    %413 = arith.subf %407, %412 : vector<16x8xf32>
    %414 = arith.mulf %413, %413 : vector<16x8xf32>
    %cst_164 = arith.constant dense<0.000000e+00> : vector<8xf32>
    %415 = vector.multi_reduction <add>, %414, %cst_164 [0] : vector<16x8xf32> to vector<8xf32>
    %416 = vector.shape_cast %415 : vector<8xf32> to vector<1x8xf32>
    %cst_165 = arith.constant 1.600000e+01 : f32
    %417 = vector.broadcast %cst_165 : f32 to vector<1x8xf32>
    %418 = arith.divf %416, %417 : vector<1x8xf32>
    %419 = vector.broadcast %411 : vector<1x8xf32> to vector<16x8xf32>
    %420 = arith.subf %407, %419 : vector<16x8xf32>
    %cst_166 = arith.constant 9.99999974E-6 : f32
    %421 = vector.broadcast %cst_166 : f32 to vector<1x8xf32>
    %422 = arith.addf %418, %421 : vector<1x8xf32>
    %423 = math.rsqrt %422 : vector<1x8xf32>
    %424 = vector.broadcast %423 : vector<1x8xf32> to vector<16x8xf32>
    %425 = arith.mulf %420, %424 : vector<16x8xf32>
    %426 = vector.broadcast %355 : vector<16x1xf32> to vector<16x8xf32>
    %427 = arith.mulf %425, %426 : vector<16x8xf32>
    %428 = vector.broadcast %356 : vector<16x1xf32> to vector<16x8xf32>
    %429 = arith.addf %427, %428 : vector<16x8xf32>
    %cst_167 = arith.constant dense<0.000000e+00> : vector<16x8xf32>
    %430 = tpu.matmul %353, %429, %cst_167 {dimension_numbers = #tpu.dot_dimension_numbers<[1], [0], [0], [1], [0, 0, 1, 1], [], []>} : vector<16x16xf32>, vector<16x8xf32>, vector<16x8xf32> -> vector<16x8xf32>
    %431 = arith.addf %429, %430 : vector<16x8xf32>
    %432 = vector.broadcast %354 : vector<16x1xf32> to vector<16x8xf32>
    %433 = arith.addf %431, %432 : vector<16x8xf32>
    %cst_168 = arith.constant dense<0.000000e+00> : vector<8xf32>
    %434 = vector.multi_reduction <add>, %433, %cst_168 [0] : vector<16x8xf32> to vector<8xf32>
    %435 = vector.shape_cast %434 : vector<8xf32> to vector<1x8xf32>
    %cst_169 = arith.constant 1.600000e+01 : f32
    %436 = vector.broadcast %cst_169 : f32 to vector<1x8xf32>
    %437 = arith.divf %435, %436 : vector<1x8xf32>
    %438 = vector.broadcast %437 : vector<1x8xf32> to vector<16x8xf32>
    %439 = arith.subf %433, %438 : vector<16x8xf32>
    %440 = arith.mulf %439, %439 : vector<16x8xf32>
    %cst_170 = arith.constant dense<0.000000e+00> : vector<8xf32>
    %441 = vector.multi_reduction <add>, %440, %cst_170 [0] : vector<16x8xf32> to vector<8xf32>
    %442 = vector.shape_cast %441 : vector<8xf32> to vector<1x8xf32>
    %cst_171 = arith.constant 1.600000e+01 : f32
    %443 = vector.broadcast %cst_171 : f32 to vector<1x8xf32>
    %444 = arith.divf %442, %443 : vector<1x8xf32>
    %445 = vector.broadcast %437 : vector<1x8xf32> to vector<16x8xf32>
    %446 = arith.subf %433, %445 : vector<16x8xf32>
    %cst_172 = arith.constant 9.99999974E-6 : f32
    %447 = vector.broadcast %cst_172 : f32 to vector<1x8xf32>
    %448 = arith.addf %444, %447 : vector<1x8xf32>
    %449 = math.rsqrt %448 : vector<1x8xf32>
    %450 = vector.broadcast %449 : vector<1x8xf32> to vector<16x8xf32>
    %451 = arith.mulf %446, %450 : vector<16x8xf32>
    %452 = vector.broadcast %357 : vector<16x1xf32> to vector<16x8xf32>
    %453 = arith.mulf %451, %452 : vector<16x8xf32>
    %454 = vector.broadcast %358 : vector<16x1xf32> to vector<16x8xf32>
    %455 = arith.addf %453, %454 : vector<16x8xf32>
    %456 = arith.addf %245, %455 : vector<16x8xf32>
    %c0_173 = arith.constant 0 : index
    %c0_174 = arith.constant 0 : index
    %457 = vector.load %arg37[%c0_173, %c0_174] : memref<32x16xf32, #tpu.memory_space<vmem>>, vector<32x16xf32>
    %c0_175 = arith.constant 0 : index
    %c0_176 = arith.constant 0 : index
    %458 = vector.load %arg38[%c0_175, %c0_176] : memref<32x1xf32, #tpu.memory_space<vmem>>, vector<32x1xf32>
    %c0_177 = arith.constant 0 : index
    %c0_178 = arith.constant 0 : index
    %459 = vector.load %arg39[%c0_177, %c0_178] : memref<8x32xf32, #tpu.memory_space<vmem>>, vector<8x32xf32>
    %c0_179 = arith.constant 0 : index
    %c0_180 = arith.constant 0 : index
    %460 = vector.load %arg40[%c0_179, %c0_180] : memref<8x1xf32, #tpu.memory_space<vmem>>, vector<8x1xf32>
    %cst_181 = arith.constant dense<0.000000e+00> : vector<32x8xf32>
    %461 = tpu.matmul %457, %456, %cst_181 {dimension_numbers = #tpu.dot_dimension_numbers<[1], [0], [0], [1], [0, 0, 1, 1], [], []>} : vector<32x16xf32>, vector<16x8xf32>, vector<32x8xf32> -> vector<32x8xf32>
    %462 = vector.broadcast %458 : vector<32x1xf32> to vector<32x8xf32>
    %463 = arith.addf %461, %462 : vector<32x8xf32>
    %cst_182 = arith.constant 5.000000e-01 : f32
    %464 = vector.broadcast %cst_182 : f32 to vector<32x8xf32>
    %465 = arith.mulf %464, %463 : vector<32x8xf32>
    %cst_183 = arith.constant 0.707106769 : f32
    %466 = vector.broadcast %cst_183 : f32 to vector<32x8xf32>
    %467 = arith.mulf %463, %466 : vector<32x8xf32>
    %468 = math.erf %467 : vector<32x8xf32>
    %cst_184 = arith.constant 1.000000e+00 : f32
    %469 = vector.broadcast %cst_184 : f32 to vector<32x8xf32>
    %470 = arith.addf %469, %468 : vector<32x8xf32>
    %471 = arith.mulf %465, %470 : vector<32x8xf32>
    %cst_185 = arith.constant dense<0.000000e+00> : vector<8x8xf32>
    %472 = tpu.matmul %459, %471, %cst_185 {dimension_numbers = #tpu.dot_dimension_numbers<[1], [0], [0], [1], [0, 0, 1, 1], [], []>} : vector<8x32xf32>, vector<32x8xf32>, vector<8x8xf32> -> vector<8x8xf32>
    %473 = vector.broadcast %460 : vector<8x1xf32> to vector<8x8xf32>
    %474 = arith.addf %472, %473 : vector<8x8xf32>
    %c0_186 = arith.constant 0 : index
    %c0_187 = arith.constant 0 : index
    %475 = vector.load %arg41[%c0_186, %c0_187] : memref<32x8xf32, #tpu.memory_space<vmem>>, vector<32x8xf32>
    %c0_188 = arith.constant 0 : index
    %c0_189 = arith.constant 0 : index
    %476 = vector.load %arg42[%c0_188, %c0_189] : memref<32x1xf32, #tpu.memory_space<vmem>>, vector<32x1xf32>
    %c0_190 = arith.constant 0 : index
    %c0_191 = arith.constant 0 : index
    %477 = vector.load %arg43[%c0_190, %c0_191] : memref<8x32xf32, #tpu.memory_space<vmem>>, vector<8x32xf32>
    %c0_192 = arith.constant 0 : index
    %c0_193 = arith.constant 0 : index
    %478 = vector.load %arg44[%c0_192, %c0_193] : memref<8x1xf32, #tpu.memory_space<vmem>>, vector<8x1xf32>
    %cst_194 = arith.constant dense<0.000000e+00> : vector<32x8xf32>
    %479 = tpu.matmul %475, %474, %cst_194 {dimension_numbers = #tpu.dot_dimension_numbers<[1], [0], [0], [1], [0, 0, 1, 1], [], []>} : vector<32x8xf32>, vector<8x8xf32>, vector<32x8xf32> -> vector<32x8xf32>
    %480 = vector.broadcast %476 : vector<32x1xf32> to vector<32x8xf32>
    %481 = arith.addf %479, %480 : vector<32x8xf32>
    %cst_195 = arith.constant 5.000000e-01 : f32
    %482 = vector.broadcast %cst_195 : f32 to vector<32x8xf32>
    %483 = arith.mulf %482, %481 : vector<32x8xf32>
    %cst_196 = arith.constant 0.707106769 : f32
    %484 = vector.broadcast %cst_196 : f32 to vector<32x8xf32>
    %485 = arith.mulf %481, %484 : vector<32x8xf32>
    %486 = math.erf %485 : vector<32x8xf32>
    %cst_197 = arith.constant 1.000000e+00 : f32
    %487 = vector.broadcast %cst_197 : f32 to vector<32x8xf32>
    %488 = arith.addf %487, %486 : vector<32x8xf32>
    %489 = arith.mulf %483, %488 : vector<32x8xf32>
    %cst_198 = arith.constant dense<0.000000e+00> : vector<8x8xf32>
    %490 = tpu.matmul %477, %489, %cst_198 {dimension_numbers = #tpu.dot_dimension_numbers<[1], [0], [0], [1], [0, 0, 1, 1], [], []>} : vector<8x32xf32>, vector<32x8xf32>, vector<8x8xf32> -> vector<8x8xf32>
    %491 = vector.broadcast %478 : vector<8x1xf32> to vector<8x8xf32>
    %492 = arith.addf %490, %491 : vector<8x8xf32>
    %493 = vector.broadcast %28 : vector<1x8xf32> to vector<8x8xf32>
    %494 = arith.mulf %492, %493 : vector<8x8xf32>
    %495 = vector.broadcast %18 : vector<1x8xf32> to vector<8x8xf32>
    %496 = arith.addf %494, %495 : vector<8x8xf32>
    %c0_199 = arith.constant 0 : index
    %c0_200 = arith.constant 0 : index
    %c0_201 = arith.constant 0 : index
    %497 = vector.load %arg3[%c0_199, %c0_200, %c0_201] : memref<2x8x4xf32, #tpu.memory_space<vmem>>, vector<1x8x4xf32>
    %498 = vector.shape_cast %497 : vector<1x8x4xf32> to vector<8x4xf32>
    %cst_202 = arith.constant dense<0.000000e+00> : vector<8x4xf32>
    %499 = tpu.matmul %496, %498, %cst_202 {dimension_numbers = #tpu.dot_dimension_numbers<[1], [0], [0], [1], [0, 0, 1, 1], [], []>} : vector<8x8xf32>, vector<8x4xf32>, vector<8x4xf32> -> vector<8x4xf32>
    %c0_203 = arith.constant 0 : index
    %c0_204 = arith.constant 0 : index
    %c0_205 = arith.constant 0 : index
    %500 = vector.load %arg45[%c0_203, %c0_204, %c0_205] : memref<2x8x4xf32, #tpu.memory_space<vmem>>, vector<1x8x4xf32>
    %501 = vector.shape_cast %500 : vector<1x8x4xf32> to vector<8x4xf32>
    %502 = vector.shape_cast %499 : vector<8x4xf32> to vector<1x8x4xf32>
    tpu.vector_store %arg45[%c0_203, %c0_204, %c0_205], %502 {strides = array<i32>} : memref<2x8x4xf32, #tpu.memory_space<vmem>>, vector<1x8x4xf32>,
    %c1_206 = arith.constant 1 : index
    %c0_207 = arith.constant 0 : index
    %c0_208 = arith.constant 0 : index
    %503 = vector.load %arg3[%c1_206, %c0_207, %c0_208] : memref<2x8x4xf32, #tpu.memory_space<vmem>>, vector<1x8x4xf32>
    %504 = vector.shape_cast %503 : vector<1x8x4xf32> to vector<8x4xf32>
    %cst_209 = arith.constant dense<0.000000e+00> : vector<8x4xf32>
    %505 = tpu.matmul %496, %504, %cst_209 {dimension_numbers = #tpu.dot_dimension_numbers<[1], [0], [0], [1], [0, 0, 1, 1], [], []>} : vector<8x8xf32>, vector<8x4xf32>, vector<8x4xf32> -> vector<8x4xf32>
    %c1_210 = arith.constant 1 : index
    %c0_211 = arith.constant 0 : index
    %c0_212 = arith.constant 0 : index
    %506 = vector.load %arg45[%c1_210, %c0_211, %c0_212] : memref<2x8x4xf32, #tpu.memory_space<vmem>>, vector<1x8x4xf32>
    %507 = vector.shape_cast %506 : vector<1x8x4xf32> to vector<8x4xf32>
    %508 = vector.shape_cast %505 : vector<8x4xf32> to vector<1x8x4xf32>
    tpu.vector_store %arg45[%c1_210, %c0_211, %c0_212], %508 {strides = array<i32>} : memref<2x8x4xf32, #tpu.memory_space<vmem>>, vector<1x8x4xf32>,
    return
  }
}

</mosaic_0001>

<llo_original>
// kernel: model_forward.1
$region0: #{model_forward.1}
  #allocation0 [shape = 'u32[]', space=smem, size = 0x4, offset = 0x4, fixed_abs, tag = 'smem constant byte address 0x4 - core index']
  #allocation1 [shape = 'u32[144,128]{1,0:T(1,128)}', space=vmem, size = 0x12000, scoped, tag = 'internal scratch']
  %s0 = inlined_call_operand.smem [shape: u32[46], index: -1, kind: input, shape index: {}]
  %s1 = sld [smem:[%s0]]
  %s2 = scalar_lea.smem %s0, 1
  %s3 = sld [smem:[%s2]]
  %s4 = scalar_lea.smem %s0, 2
  %s5 = sld [smem:[%s4]]
  %s6 = scalar_lea.smem %s0, 3
  %s7 = sld [smem:[%s6]]
  %s8 = scalar_lea.smem %s0, 4
  %s9 = sld [smem:[%s8]]
  %s10 = scalar_lea.smem %s0, 5
  %s11 = sld [smem:[%s10]]
  %s12 = scalar_lea.smem %s0, 6
  %s13 = sld [smem:[%s12]]
  %s14 = scalar_lea.smem %s0, 7
  %s15 = sld [smem:[%s14]]
  %s16 = scalar_lea.smem %s0, 8
  %s17 = sld [smem:[%s16]]
  %s18 = scalar_lea.smem %s0, 9
  %s19 = sld [smem:[%s18]]
  %s20 = scalar_lea.smem %s0, 10
  %s21 = sld [smem:[%s20]]
  %s22 = scalar_lea.smem %s0, 11
  %s23 = sld [smem:[%s22]]
  %s24 = scalar_lea.smem %s0, 12
  %s25 = sld [smem:[%s24]]
  %s26 = scalar_lea.smem %s0, 13
  %s27 = sld [smem:[%s26]]
  %s28 = scalar_lea.smem %s0, 14
  %s29 = sld [smem:[%s28]]
  %s30 = scalar_lea.smem %s0, 15
  %s31 = sld [smem:[%s30]]
  %s32 = scalar_lea.smem %s0, 16
  %s33 = sld [smem:[%s32]]
  %s34 = scalar_lea.smem %s0, 17
  %s35 = sld [smem:[%s34]]
  %s36 = scalar_lea.smem %s0, 18
  %s37 = sld [smem:[%s36]]
  %s38 = scalar_lea.smem %s0, 19
  %s39 = sld [smem:[%s38]]
  %s40 = scalar_lea.smem %s0, 20
  %s41 = sld [smem:[%s40]]
  %s42 = scalar_lea.smem %s0, 21
  %s43 = sld [smem:[%s42]]
  %s44 = scalar_lea.smem %s0, 22
  %s45 = sld [smem:[%s44]]
  %s46 = scalar_lea.smem %s0, 23
  %s47 = sld [smem:[%s46]]
  %s48 = scalar_lea.smem %s0, 24
  %s49 = sld [smem:[%s48]]
  %s50 = scalar_lea.smem %s0, 25
  %s51 = sld [smem:[%s50]]
  %s52 = scalar_lea.smem %s0, 26
  %s53 = sld [smem:[%s52]]
  %s54 = scalar_lea.smem %s0, 27
  %s55 = sld [smem:[%s54]]
  %s56 = scalar_lea.smem %s0, 28
  %s57 = sld [smem:[%s56]]
  %s58 = scalar_lea.smem %s0, 29
  %s59 = sld [smem:[%s58]]
  %s60 = scalar_lea.smem %s0, 30
  %s61 = sld [smem:[%s60]]
  %s62 = scalar_lea.smem %s0, 31
  %s63 = sld [smem:[%s62]]
  %s64 = scalar_lea.smem %s0, 32
  %s65 = sld [smem:[%s64]]
  %s66 = scalar_lea.smem %s0, 33
  %s67 = sld [smem:[%s66]]
  %s68 = scalar_lea.smem %s0, 34
  %s69 = sld [smem:[%s68]]
  %s70 = scalar_lea.smem %s0, 35
  %s71 = sld [smem:[%s70]]
  %s72 = scalar_lea.smem %s0, 36
  %s73 = sld [smem:[%s72]]
  %s74 = scalar_lea.smem %s0, 37
  %s75 = sld [smem:[%s74]]
  %s76 = scalar_lea.smem %s0, 38
  %s77 = sld [smem:[%s76]]
  %s78 = scalar_lea.smem %s0, 39
  %s79 = sld [smem:[%s78]]
  %s80 = scalar_lea.smem %s0, 40
  %s81 = sld [smem:[%s80]]
  %s82 = scalar_lea.smem %s0, 41
  %s83 = sld [smem:[%s82]]
  %s84 = scalar_lea.smem %s0, 42
  %s85 = sld [smem:[%s84]]
  %s86 = scalar_lea.smem %s0, 43
  %s87 = sld [smem:[%s86]]
  %s88 = scalar_lea.smem %s0, 44
  %s89 = sld [smem:[%s88]]
  %s90 = scalar_lea.smem %s0, 45
  %s91 = sld [smem:[%s90]]
  %s92 = sld [smem:[#allocation0]]
  $region190: #{model_forward.1} parent=0
    _
  %s94 = ssub.s32 1, %s92
  %s95 = scalar_select 0, %s94, %s92
  // Predicated region
  $region2: #{model_forward.1} parent=0 // pred_check
    _
  $region3: #{model_forward.1} parent=0 // pred_check_branch
    %97 = sbr.rel (0) target = $region5
  $region4: #{model_forward.1} parent=0 // pred_region
    _
  $region5: #{model_forward.1} parent=0 // pred_fallthru
    _
  // Predicated region
  $region6: #{model_forward.1} parent=0 // pred_check
    _
  $region7: #{model_forward.1} parent=0 // pred_check_branch
    %99 = sbr.rel (0) target = $region9
  $region8: #{model_forward.1} parent=0 // pred_region
    _
  $region9: #{model_forward.1} parent=0 // pred_fallthru
    _
  // Predicated region
  $region10: #{model_forward.1} parent=0 // pred_check
    _
  $region11: #{model_forward.1} parent=0 // pred_check_branch
    %101 = sbr.rel (0) target = $region13
  $region12: #{model_forward.1} parent=0 // pred_region
    _
  $region13: #{model_forward.1} parent=0 // pred_fallthru
    _
  // Predicated region
  $region14: #{model_forward.1} parent=0 // pred_check
    _
  $region15: #{model_forward.1} parent=0 // pred_check_branch
    %103 = sbr.rel (0) target = $region17
  $region16: #{model_forward.1} parent=0 // pred_region
    _
  $region17: #{model_forward.1} parent=0 // pred_fallthru
    _
  // Predicated region
  $region18: #{model_forward.1} parent=0 // pred_check
    _
  $region19: #{model_forward.1} parent=0 // pred_check_branch
    %105 = sbr.rel (0) target = $region21
  $region20: #{model_forward.1} parent=0 // pred_region
    _
  $region21: #{model_forward.1} parent=0 // pred_fallthru
    _
  // Predicated region
  $region22: #{model_forward.1} parent=0 // pred_check
    _
  $region23: #{model_forward.1} parent=0 // pred_check_branch
    %107 = sbr.rel (0) target = $region25
  $region24: #{model_forward.1} parent=0 // pred_region
    _
  $region25: #{model_forward.1} parent=0 // pred_fallthru
    _
  // Predicated region
  $region26: #{model_forward.1} parent=0 // pred_check
    _
  $region27: #{model_forward.1} parent=0 // pred_check_branch
    %109 = sbr.rel (0) target = $region29
  $region28: #{model_forward.1} parent=0 // pred_region
    _
  $region29: #{model_forward.1} parent=0 // pred_fallthru
    _
  // Predicated region
  $region30: #{model_forward.1} parent=0 // pred_check
    _
  $region31: #{model_forward.1} parent=0 // pred_check_branch
    %111 = sbr.rel (0) target = $region33
  $region32: #{model_forward.1} parent=0 // pred_region
    _
  $region33: #{model_forward.1} parent=0 // pred_fallthru
    _
  // Predicated region
  $region34: #{model_forward.1} parent=0 // pred_check
    _
  $region35: #{model_forward.1} parent=0 // pred_check_branch
    %113 = sbr.rel (0) target = $region37
  $region36: #{model_forward.1} parent=0 // pred_region
    _
  $region37: #{model_forward.1} parent=0 // pred_fallthru
    _
  // Predicated region
  $region38: #{model_forward.1} parent=0 // pred_check
    _
  $region39: #{model_forward.1} parent=0 // pred_check_branch
    %115 = sbr.rel (0) target = $region41
  $region40: #{model_forward.1} parent=0 // pred_region
    _
  $region41: #{model_forward.1} parent=0 // pred_fallthru
    _
  // Predicated region
  $region42: #{model_forward.1} parent=0 // pred_check
    _
  $region43: #{model_forward.1} parent=0 // pred_check_branch
    %117 = sbr.rel (0) target = $region45
  $region44: #{model_forward.1} parent=0 // pred_region
    _
  $region45: #{model_forward.1} parent=0 // pred_fallthru
    _
  // Predicated region
  $region46: #{model_forward.1} parent=0 // pred_check
    _
  $region47: #{model_forward.1} parent=0 // pred_check_branch
    %119 = sbr.rel (0) target = $region49
  $region48: #{model_forward.1} parent=0 // pred_region
    _
  $region49: #{model_forward.1} parent=0 // pred_fallthru
    _
  // Predicated region
  $region50: #{model_forward.1} parent=0 // pred_check
    _
  $region51: #{model_forward.1} parent=0 // pred_check_branch
    %121 = sbr.rel (0) target = $region53
  $region52: #{model_forward.1} parent=0 // pred_region
    _
  $region53: #{model_forward.1} parent=0 // pred_fallthru
    _
  // Predicated region
  $region54: #{model_forward.1} parent=0 // pred_check
    _
  $region55: #{model_forward.1} parent=0 // pred_check_branch
    %123 = sbr.rel (0) target = $region57
  $region56: #{model_forward.1} parent=0 // pred_region
    _
  $region57: #{model_forward.1} parent=0 // pred_fallthru
    _
  // Predicated region
  $region58: #{model_forward.1} parent=0 // pred_check
    _
  $region59: #{model_forward.1} parent=0 // pred_check_branch
    %125 = sbr.rel (0) target = $region61
  $region60: #{model_forward.1} parent=0 // pred_region
    _
  $region61: #{model_forward.1} parent=0 // pred_fallthru
    _
  // Predicated region
  $region62: #{model_forward.1} parent=0 // pred_check
    _
  $region63: #{model_forward.1} parent=0 // pred_check_branch
    %127 = sbr.rel (0) target = $region65
  $region64: #{model_forward.1} parent=0 // pred_region
    _
  $region65: #{model_forward.1} parent=0 // pred_fallthru
    _
  // Predicated region
  $region66: #{model_forward.1} parent=0 // pred_check
    _
  $region67: #{model_forward.1} parent=0 // pred_check_branch
    %129 = sbr.rel (0) target = $region69
  $region68: #{model_forward.1} parent=0 // pred_region
    _
  $region69: #{model_forward.1} parent=0 // pred_fallthru
    _
  // Predicated region
  $region70: #{model_forward.1} parent=0 // pred_check
    _
  $region71: #{model_forward.1} parent=0 // pred_check_branch
    %131 = sbr.rel (0) target = $region73
  $region72: #{model_forward.1} parent=0 // pred_region
    _
  $region73: #{model_forward.1} parent=0 // pred_fallthru
    _
  // Predicated region
  $region74: #{model_forward.1} parent=0 // pred_check
    _
  $region75: #{model_forward.1} parent=0 // pred_check_branch
    %133 = sbr.rel (0) target = $region77
  $region76: #{model_forward.1} parent=0 // pred_region
    _
  $region77: #{model_forward.1} parent=0 // pred_fallthru
    _
  // Predicated region
  $region78: #{model_forward.1} parent=0 // pred_check
    _
  $region79: #{model_forward.1} parent=0 // pred_check_branch
    %135 = sbr.rel (0) target = $region81
  $region80: #{model_forward.1} parent=0 // pred_region
    _
  $region81: #{model_forward.1} parent=0 // pred_fallthru
    _
  // Predicated region
  $region82: #{model_forward.1} parent=0 // pred_check
    _
  $region83: #{model_forward.1} parent=0 // pred_check_branch
    %137 = sbr.rel (0) target = $region85
  $region84: #{model_forward.1} parent=0 // pred_region
    _
  $region85: #{model_forward.1} parent=0 // pred_fallthru
    _
  // Predicated region
  $region86: #{model_forward.1} parent=0 // pred_check
    _
  $region87: #{model_forward.1} parent=0 // pred_check_branch
    %139 = sbr.rel (0) target = $region89
  $region88: #{model_forward.1} parent=0 // pred_region
    _
  $region89: #{model_forward.1} parent=0 // pred_fallthru
    _
  // Predicated region
  $region90: #{model_forward.1} parent=0 // pred_check
    _
  $region91: #{model_forward.1} parent=0 // pred_check_branch
    %141 = sbr.rel (0) target = $region93
  $region92: #{model_forward.1} parent=0 // pred_region
    _
  $region93: #{model_forward.1} parent=0 // pred_fallthru
    _
  // Predicated region
  $region94: #{model_forward.1} parent=0 // pred_check
    _
  $region95: #{model_forward.1} parent=0 // pred_check_branch
    %143 = sbr.rel (0) target = $region97
  $region96: #{model_forward.1} parent=0 // pred_region
    _
  $region97: #{model_forward.1} parent=0 // pred_fallthru
    _
  // Predicated region
  $region98: #{model_forward.1} parent=0 // pred_check
    _
  $region99: #{model_forward.1} parent=0 // pred_check_branch
    %145 = sbr.rel (0) target = $region101
  $region100: #{model_forward.1} parent=0 // pred_region
    _
  $region101: #{model_forward.1} parent=0 // pred_fallthru
    _
  // Predicated region
  $region102: #{model_forward.1} parent=0 // pred_check
    _
  $region103: #{model_forward.1} parent=0 // pred_check_branch
    %147 = sbr.rel (0) target = $region105
  $region104: #{model_forward.1} parent=0 // pred_region
    _
  $region105: #{model_forward.1} parent=0 // pred_fallthru
    _
  // Predicated region
  $region106: #{model_forward.1} parent=0 // pred_check
    _
  $region107: #{model_forward.1} parent=0 // pred_check_branch
    %149 = sbr.rel (0) target = $region109
  $region108: #{model_forward.1} parent=0 // pred_region
    _
  $region109: #{model_forward.1} parent=0 // pred_fallthru
    _
  // Predicated region
  $region110: #{model_forward.1} parent=0 // pred_check
    _
  $region111: #{model_forward.1} parent=0 // pred_check_branch
    %151 = sbr.rel (0) target = $region113
  $region112: #{model_forward.1} parent=0 // pred_region
    _
  $region113: #{model_forward.1} parent=0 // pred_fallthru
    _
  // Predicated region
  $region114: #{model_forward.1} parent=0 // pred_check
    _
  $region115: #{model_forward.1} parent=0 // pred_check_branch
    %153 = sbr.rel (0) target = $region117
  $region116: #{model_forward.1} parent=0 // pred_region
    _
  $region117: #{model_forward.1} parent=0 // pred_fallthru
    _
  // Predicated region
  $region118: #{model_forward.1} parent=0 // pred_check
    _
  $region119: #{model_forward.1} parent=0 // pred_check_branch
    %155 = sbr.rel (0) target = $region121
  $region120: #{model_forward.1} parent=0 // pred_region
    _
  $region121: #{model_forward.1} parent=0 // pred_fallthru
    _
  // Predicated region
  $region122: #{model_forward.1} parent=0 // pred_check
    _
  $region123: #{model_forward.1} parent=0 // pred_check_branch
    %157 = sbr.rel (0) target = $region125
  $region124: #{model_forward.1} parent=0 // pred_region
    _
  $region125: #{model_forward.1} parent=0 // pred_fallthru
    _
  // Predicated region
  $region126: #{model_forward.1} parent=0 // pred_check
    _
  $region127: #{model_forward.1} parent=0 // pred_check_branch
    %159 = sbr.rel (0) target = $region129
  $region128: #{model_forward.1} parent=0 // pred_region
    _
  $region129: #{model_forward.1} parent=0 // pred_fallthru
    _
  // Predicated region
  $region130: #{model_forward.1} parent=0 // pred_check
    _
  $region131: #{model_forward.1} parent=0 // pred_check_branch
    %161 = sbr.rel (0) target = $region133
  $region132: #{model_forward.1} parent=0 // pred_region
    _
  $region133: #{model_forward.1} parent=0 // pred_fallthru
    _
  // Predicated region
  $region134: #{model_forward.1} parent=0 // pred_check
    _
  $region135: #{model_forward.1} parent=0 // pred_check_branch
    %163 = sbr.rel (0) target = $region137
  $region136: #{model_forward.1} parent=0 // pred_region
    _
  $region137: #{model_forward.1} parent=0 // pred_fallthru
    _
  // Predicated region
  $region138: #{model_forward.1} parent=0 // pred_check
    _
  $region139: #{model_forward.1} parent=0 // pred_check_branch
    %165 = sbr.rel (0) target = $region141
  $region140: #{model_forward.1} parent=0 // pred_region
    _
  $region141: #{model_forward.1} parent=0 // pred_fallthru
    _
  // Predicated region
  $region142: #{model_forward.1} parent=0 // pred_check
    _
  $region143: #{model_forward.1} parent=0 // pred_check_branch
    %167 = sbr.rel (0) target = $region145
  $region144: #{model_forward.1} parent=0 // pred_region
    _
  $region145: #{model_forward.1} parent=0 // pred_fallthru
    _
  // Predicated region
  $region146: #{model_forward.1} parent=0 // pred_check
    _
  $region147: #{model_forward.1} parent=0 // pred_check_branch
    %169 = sbr.rel (0) target = $region149
  $region148: #{model_forward.1} parent=0 // pred_region
    _
  $region149: #{model_forward.1} parent=0 // pred_fallthru
    _
  // Predicated region
  $region150: #{model_forward.1} parent=0 // pred_check
    _
  $region151: #{model_forward.1} parent=0 // pred_check_branch
    %171 = sbr.rel (0) target = $region153
  $region152: #{model_forward.1} parent=0 // pred_region
    _
  $region153: #{model_forward.1} parent=0 // pred_fallthru
    _
  // Predicated region
  $region154: #{model_forward.1} parent=0 // pred_check
    _
  $region155: #{model_forward.1} parent=0 // pred_check_branch
    %173 = sbr.rel (0) target = $region157
  $region156: #{model_forward.1} parent=0 // pred_region
    _
  $region157: #{model_forward.1} parent=0 // pred_fallthru
    _
  // Predicated region
  $region158: #{model_forward.1} parent=0 // pred_check
    _
  $region159: #{model_forward.1} parent=0 // pred_check_branch
    %175 = sbr.rel (0) target = $region161
  $region160: #{model_forward.1} parent=0 // pred_region
    _
  $region161: #{model_forward.1} parent=0 // pred_fallthru
    _
  // Predicated region
  $region162: #{model_forward.1} parent=0 // pred_check
    _
  $region163: #{model_forward.1} parent=0 // pred_check_branch
    %177 = sbr.rel (0) target = $region165
  $region164: #{model_forward.1} parent=0 // pred_region
    _
  $region165: #{model_forward.1} parent=0 // pred_fallthru
    _
  // Predicated region
  $region166: #{model_forward.1} parent=0 // pred_check
    _
  $region167: #{model_forward.1} parent=0 // pred_check_branch
    %179 = sbr.rel (0) target = $region169
  $region168: #{model_forward.1} parent=0 // pred_region
    _
  $region169: #{model_forward.1} parent=0 // pred_fallthru
    _
  // Predicated region
  $region170: #{model_forward.1} parent=0 // pred_check
    _
  $region171: #{model_forward.1} parent=0 // pred_check_branch
    %181 = sbr.rel (0) target = $region173
  $region172: #{model_forward.1} parent=0 // pred_region
    _
  $region173: #{model_forward.1} parent=0 // pred_fallthru
    _
  // Predicated region
  $region174: #{model_forward.1} parent=0 // pred_check
    _
  $region175: #{model_forward.1} parent=0 // pred_check_branch
    %183 = sbr.rel (0) target = $region177
  $region176: #{model_forward.1} parent=0 // pred_region
    _
  $region177: #{model_forward.1} parent=0 // pred_fallthru
    _
  // Predicated region
  $region178: #{model_forward.1} parent=0 // pred_check
    _
  $region179: #{model_forward.1} parent=0 // pred_check_branch
    %185 = sbr.rel (0) target = $region181
  $region180: #{model_forward.1} parent=0 // pred_region
    _
  $region181: #{model_forward.1} parent=0 // pred_fallthru
    _
  %v186 = vld [vmem:[%s9] sm:$0x1]
  %s187 = scalar_lea.vmem %s9, 1
  %v188 = vld [vmem:[%s187] sm:$0x1]
  %v189 = vld [vmem:[%s1] sm:$0xff]
  %v190 = vld [vmem:[%s1 + $0x8] sm:$0xff]
  %v191 = vld [vmem:[%s5] sm:$0xf]
  %s192 = scalar_lea.vmem %s1, 16
  %v193 = vld [vmem:[%s192] sm:$0xff]
  %v194 = vld [vmem:[%s192 + $0x8] sm:$0xff]
  %s195 = scalar_lea.vmem %s5, 4
  %v196 = vld [vmem:[%s195] sm:$0xf]
  %vm197 = vcmask 31744
  %v199 = vsel %vm197, %v193, 0
  %v202 = vsel %vm197, %v194, 0
  %vm204 = vcmask 1043456
  %v206 = vsel %vm204, %v196, 0
  %208 = vmatprep.subr.mxu0 0.0
  %209 = vmatpush1.msra.mxu0 %v206
  %210 = vmatprep.subr.mxu0 0.0
  %211 = vmatpush1.msra.mxu0 0.0
  %212 = vmatprep.subr.mxu0 0.0
  %213 = vmatpush1.msra.mxu0 0.0
  %214 = vmatprep.subr.mxu0 0.0
  %215 = vmatpush1.msra.mxu0 0.0
  %216 = vmatprep.subr.mxu0 0.0
  %217 = vmatpush1.msra.mxu0 0.0
  %218 = vmatprep.subr.mxu0 0.0
  %219 = vmatpush1.msra.mxu0 0.0
  %220 = vmatprep.subr.mxu0 0.0
  %221 = vmatpush1.msra.mxu0 0.0
  %222 = vmatprep.subr.mxu0 0.0
  %223 = vmatpush1.msra.mxu0 0.0
  %224 = vmatprep.subr.mxu0 0.0
  %225 = vmatpush1.msra.mxu0 0.0
  %226 = vmatprep.subr.mxu0 0.0
  %227 = vmatpush1.msra.mxu0 0.0
  %228 = vmatprep.subr.mxu0 0.0
  %229 = vmatpush1.msra.mxu0 0.0
  %230 = vmatprep.subr.mxu0 0.0
  %231 = vmatpush1.msra.mxu0 0.0
  %232 = vmatprep.subr.mxu0 0.0
  %233 = vmatpush1.msra.mxu0 0.0
  %234 = vmatprep.subr.mxu0 0.0
  %235 = vmatpush1.msra.mxu0 0.0
  %236 = vmatprep.subr.mxu0 0.0
  %237 = vmatpush1.msra.mxu0 0.0
  %238 = vmatprep.subr.mxu0 0.0
  %239 = vmatpush1.msra.mxu0 0.0
  %240 = vmatprep.subr.mxu0 0.0
  %241 = vmatpush1.msra.mxu0 0.0
  %242 = vmatprep.subr.mxu0 0.0
  %243 = vmatpush1.msra.mxu0 0.0
  %244 = vmatprep.subr.mxu0 0.0
  %245 = vmatpush1.msra.mxu0 0.0
  %246 = vmatprep.subr.mxu0 0.0
  %247 = vmatpush1.msra.mxu0 0.0
  %248 = vmatprep.subr.mxu0 0.0
  %249 = vmatpush1.msra.mxu0 0.0
  %250 = vmatprep.subr.mxu0 0.0
  %251 = vmatpush1.msra.mxu0 0.0
  %252 = vmatprep.subr.mxu0 0.0
  %253 = vmatpush1.msra.mxu0 0.0
  %254 = vmatprep.subr.mxu0 0.0
  %255 = vmatpush1.msra.mxu0 0.0
  %256 = vmatprep.subr.mxu0 0.0
  %257 = vmatpush1.msra.mxu0 0.0
  %258 = vmatprep.subr.mxu0 0.0
  %259 = vmatpush1.msra.mxu0 0.0
  %260 = vmatprep.subr.mxu0 0.0
  %261 = vmatpush1.msra.mxu0 0.0
  %262 = vmatprep.subr.mxu0 0.0
  %263 = vmatpush1.msra.mxu0 0.0
  %264 = vmatprep.subr.mxu0 0.0
  %265 = vmatpush1.msra.mxu0 0.0
  %266 = vmatprep.subr.mxu0 0.0
  %267 = vmatpush1.msra.mxu0 0.0
  %268 = vmatprep.subr.mxu0 0.0
  %269 = vmatpush1.msra.mxu0 0.0
  %270 = vmatprep.subr.mxu0 0.0
  %271 = vmatpush1.msra.mxu0 0.0
  %272 = vmatprep.mubr.f32.mxu0 0.0
  %273 = vmatmul.mubr.f32.gmra.mrb[0].mxu0 %v199
  %v274 = vpop.f32.mrb[0].mxu0
  %v275 = vadd.f32 0.0, %v274
  %v276 = vpop.f32.mrb[0].mxu0
  %277 = vmatprep.mubr.f32.mxu0 0.0
  %278 = vmatmul.mubr.f32.gmra.mrb[0].mxu0 %v202
  %v279 = vpop.f32.mrb[0].mxu0
  %v280 = vadd.f32 0.0, %v279
  %v281 = vpop.f32.mrb[0].mxu0
  %282 = vdwg.mxu0
  %v284 = vsel %vm197, %v189, 0
  %v287 = vsel %vm197, %v190, 0
  %v290 = vsel %vm204, %v191, 0
  %292 = vmatprep.subr.mxu0 0.0
  %293 = vmatpush1.msra.mxu0 %v290
  %294 = vmatprep.subr.mxu0 0.0
  %295 = vmatpush1.msra.mxu0 0.0
  %296 = vmatprep.subr.mxu0 0.0
  %297 = vmatpush1.msra.mxu0 0.0
  %298 = vmatprep.subr.mxu0 0.0
  %299 = vmatpush1.msra.mxu0 0.0
  %300 = vmatprep.subr.mxu0 0.0
  %301 = vmatpush1.msra.mxu0 0.0
  %302 = vmatprep.subr.mxu0 0.0
  %303 = vmatpush1.msra.mxu0 0.0
  %304 = vmatprep.subr.mxu0 0.0
  %305 = vmatpush1.msra.mxu0 0.0
  %306 = vmatprep.subr.mxu0 0.0
  %307 = vmatpush1.msra.mxu0 0.0
  %308 = vmatprep.subr.mxu0 0.0
  %309 = vmatpush1.msra.mxu0 0.0
  %310 = vmatprep.subr.mxu0 0.0
  %311 = vmatpush1.msra.mxu0 0.0
  %312 = vmatprep.subr.mxu0 0.0
  %313 = vmatpush1.msra.mxu0 0.0
  %314 = vmatprep.subr.mxu0 0.0
  %315 = vmatpush1.msra.mxu0 0.0
  %316 = vmatprep.subr.mxu0 0.0
  %317 = vmatpush1.msra.mxu0 0.0
  %318 = vmatprep.subr.mxu0 0.0
  %319 = vmatpush1.msra.mxu0 0.0
  %320 = vmatprep.subr.mxu0 0.0
  %321 = vmatpush1.msra.mxu0 0.0
  %322 = vmatprep.subr.mxu0 0.0
  %323 = vmatpush1.msra.mxu0 0.0
  %324 = vmatprep.subr.mxu0 0.0
  %325 = vmatpush1.msra.mxu0 0.0
  %326 = vmatprep.subr.mxu0 0.0
  %327 = vmatpush1.msra.mxu0 0.0
  %328 = vmatprep.subr.mxu0 0.0
  %329 = vmatpush1.msra.mxu0 0.0
  %330 = vmatprep.subr.mxu0 0.0
  %331 = vmatpush1.msra.mxu0 0.0
  %332 = vmatprep.subr.mxu0 0.0
  %333 = vmatpush1.msra.mxu0 0.0
  %334 = vmatprep.subr.mxu0 0.0
  %335 = vmatpush1.msra.mxu0 0.0
  %336 = vmatprep.subr.mxu0 0.0
  %337 = vmatpush1.msra.mxu0 0.0
  %338 = vmatprep.subr.mxu0 0.0
  %339 = vmatpush1.msra.mxu0 0.0
  %340 = vmatprep.subr.mxu0 0.0
  %341 = vmatpush1.msra.mxu0 0.0
  %342 = vmatprep.subr.mxu0 0.0
  %343 = vmatpush1.msra.mxu0 0.0
  %344 = vmatprep.subr.mxu0 0.0
  %345 = vmatpush1.msra.mxu0 0.0
  %346 = vmatprep.subr.mxu0 0.0
  %347 = vmatpush1.msra.mxu0 0.0
  %348 = vmatprep.subr.mxu0 0.0
  %349 = vmatpush1.msra.mxu0 0.0
  %350 = vmatprep.subr.mxu0 0.0
  %351 = vmatpush1.msra.mxu0 0.0
  %352 = vmatprep.subr.mxu0 0.0
  %353 = vmatpush1.msra.mxu0 0.0
  %354 = vmatprep.subr.mxu0 0.0
  %355 = vmatpush1.msra.mxu0 0.0
  %356 = vmatprep.mubr.f32.mxu0 0.0
  %357 = vmatmul.mubr.f32.gmra.mrb[0].mxu0 %v284
  %v358 = vpop.f32.mrb[0].mxu0
  %v359 = vadd.f32 %v275, %v358
  %v360 = vpop.f32.mrb[0].mxu0
  %361 = vmatprep.mubr.f32.mxu0 0.0
  %362 = vmatmul.mubr.f32.gmra.mrb[0].mxu0 %v287
  %v363 = vpop.f32.mrb[0].mxu0
  %v364 = vadd.f32 %v280, %v363
  %v365 = vpop.f32.mrb[0].mxu0
  %366 = vdwg.mxu0
  %vm367 = vcmask 64512
  %v368 = vsel %vm367, %v359, 0.0
  %v369 = vsel %vm367, %v364, 0.0
  %v370 = vadd.f32 %v368, %v369
  %v371 = vrot.slane %v370, 4
  %v372 = vadd.f32 %v370, %v371
  %v373 = vrot.slane %v372, 2
  %v374 = vadd.f32 %v372, %v373
  %v375 = vrot.slane %v374, 1
  %v376 = vadd.f32 %v374, %v375
  %v377 = vrcp.pop 16.0
  %v378 = vmul.f32 %v376, %v377
  %v379 = vsub.f32 %v359, %v378
  %v380 = vsub.f32 %v364, %v378
  %v381 = vmul.f32 %v379, %v379
  %v382 = vmul.f32 %v380, %v380
  %v383 = vsel %vm367, %v381, 0.0
  %v384 = vsel %vm367, %v382, 0.0
  %v385 = vadd.f32 %v383, %v384
  %v386 = vrot.slane %v385, 4
  %v387 = vadd.f32 %v385, %v386
  %v388 = vrot.slane %v387, 2
  %v389 = vadd.f32 %v387, %v388
  %v390 = vrot.slane %v389, 1
  %v391 = vadd.f32 %v389, %v390
  %v392 = vmul.f32 %v391, %v377
  %v393 = vadd.f32 %v392, 1e-05
  %v394 = vrsqrt.pop %v393
  %v395 = vmul.f32 %v393, %v394
  %vm396 = vcmp.eq.f32.partialorder %v393, inf
  %v397 = vsel %vm396, %v393, %v395
  %vm398 = vcmp.eq.f32.partialorder %v393, 0.0
  %v399 = vand.u32 %v393, 2147483648
  %v400 = vsel %vm398, %v399, %v397
  %v401 = vrcp.pop %v400
  %v402 = vmul.f32 %v379, %v401
  %v403 = vmul.f32 %v380, %v401
  %v404 = vld [vmem:[%s3] sm:$0xff]
  %v405 = vld [vmem:[%s3 + $0x8] sm:$0xff]
  %vm406 = vcmask 130048
  %v408 = vsel %vm406, %v404, 0
  %v411 = vsel %vm406, %v405, 0
  %413 = vmatprep.subr.mxu0 0.0
  %414 = vmatpush1.msra.mxu0 %v402
  %415 = vmatprep.subr.mxu0 0.0
  %416 = vmatpush1.msra.mxu0 %v403
  %417 = vmatprep.subr.mxu0 0.0
  %418 = vmatpush1.msra.mxu0 0.0
  %419 = vmatprep.subr.mxu0 0.0
  %420 = vmatpush1.msra.mxu0 0.0
  %421 = vmatprep.subr.mxu0 0.0
  %422 = vmatpush1.msra.mxu0 0.0
  %423 = vmatprep.subr.mxu0 0.0
  %424 = vmatpush1.msra.mxu0 0.0
  %425 = vmatprep.subr.mxu0 0.0
  %426 = vmatpush1.msra.mxu0 0.0
  %427 = vmatprep.subr.mxu0 0.0
  %428 = vmatpush1.msra.mxu0 0.0
  %429 = vmatprep.subr.mxu0 0.0
  %430 = vmatpush1.msra.mxu0 0.0
  %431 = vmatprep.subr.mxu0 0.0
  %432 = vmatpush1.msra.mxu0 0.0
  %433 = vmatprep.subr.mxu0 0.0
  %434 = vmatpush1.msra.mxu0 0.0
  %435 = vmatprep.subr.mxu0 0.0
  %436 = vmatpush1.msra.mxu0 0.0
  %437 = vmatprep.subr.mxu0 0.0
  %438 = vmatpush1.msra.mxu0 0.0
  %439 = vmatprep.subr.mxu0 0.0
  %440 = vmatpush1.msra.mxu0 0.0
  %441 = vmatprep.subr.mxu0 0.0
  %442 = vmatpush1.msra.mxu0 0.0
  %443 = vmatprep.subr.mxu0 0.0
  %444 = vmatpush1.msra.mxu0 0.0
  %445 = vmatprep.subr.mxu0 0.0
  %446 = vmatpush1.msra.mxu0 0.0
  %447 = vmatprep.subr.mxu0 0.0
  %448 = vmatpush1.msra.mxu0 0.0
  %449 = vmatprep.subr.mxu0 0.0
  %450 = vmatpush1.msra.mxu0 0.0
  %451 = vmatprep.subr.mxu0 0.0
  %452 = vmatpush1.msra.mxu0 0.0
  %453 = vmatprep.subr.mxu0 0.0
  %454 = vmatpush1.msra.mxu0 0.0
  %455 = vmatprep.subr.mxu0 0.0
  %456 = vmatpush1.msra.mxu0 0.0
  %457 = vmatprep.subr.mxu0 0.0
  %458 = vmatpush1.msra.mxu0 0.0
  %459 = vmatprep.subr.mxu0 0.0
  %460 = vmatpush1.msra.mxu0 0.0
  %461 = vmatprep.subr.mxu0 0.0
  %462 = vmatpush1.msra.mxu0 0.0
  %463 = vmatprep.subr.mxu0 0.0
  %464 = vmatpush1.msra.mxu0 0.0
  %465 = vmatprep.subr.mxu0 0.0
  %466 = vmatpush1.msra.mxu0 0.0
  %467 = vmatprep.subr.mxu0 0.0
  %468 = vmatpush1.msra.mxu0 0.0
  %469 = vmatprep.subr.mxu0 0.0
  %470 = vmatpush1.msra.mxu0 0.0
  %471 = vmatprep.subr.mxu0 0.0
  %472 = vmatpush1.msra.mxu0 0.0
  %473 = vmatprep.subr.mxu0 0.0
  %474 = vmatpush1.msra.mxu0 0.0
  %475 = vmatprep.subr.mxu0 0.0
  %476 = vmatpush1.msra.mxu0 0.0
  %477 = vmatprep.mubr.f32.mxu0 0.0
  %478 = vmatmul.mubr.f32.gmra.mrb[0].mxu0 %v408
  %v479 = vpop.f32.mrb[0].mxu0
  %v480 = vadd.f32 0.0, %v479
  %v481 = vpop.f32.mrb[0].mxu0
  %482 = vmatprep.mubr.f32.mxu0 0.0
  %483 = vmatmul.mubr.f32.gmra.mrb[0].mxu0 %v411
  %v484 = vpop.f32.mrb[0].mxu0
  %v485 = vadd.f32 0.0, %v484
  %v486 = vpop.f32.mrb[0].mxu0
  %487 = vdwg.mxu0
  %v488 = vsub.f32 %v402, %v480
  %v489 = vsub.f32 %v403, %v485
  %v490 = vld [vmem:[%s11] sm:$0xff]
  %v491 = vld [vmem:[%s11 + $0x8] sm:$0xff]
  %v492 = vld [vmem:[%s11 + $0x10] sm:$0xff]
  %v493 = vld [vmem:[%s11 + $0x18] sm:$0xff]
  %v494 = vld [vmem:[%s13] sm:$0xff]
  %v495 = vld [vmem:[%s13 + $0x8] sm:$0xff]
  %v496 = vld [vmem:[%s15] sm:$0xff]
  %v497 = vld [vmem:[%s15 + $0x8] sm:$0xff]
  %v498 = vld [vmem:[%s17] sm:$0xff]
  %v499 = vld [vmem:[%s17 + $0x8] sm:$0xff]
  %v500 = vld [vmem:[%s19] sm:$0xff]
  %v501 = vld [vmem:[%s19 + $0x8] sm:$0xff]
  %v502 = vld [vmem:[%s21] sm:$0xff]
  %v503 = vld [vmem:[%s21 + $0x8] sm:$0xff]
  %v504 = vld [vmem:[%s23] sm:$0xff]
  %v505 = vld [vmem:[%s23 + $0x8] sm:$0xff]
  %v506 = vld [vmem:[%s25] sm:$0xff]
  %v507 = vld [vmem:[%s25 + $0x8] sm:$0xff]
  %v509 = vsel %vm406, %v490, 0
  %v512 = vsel %vm406, %v491, 0
  %v515 = vsel %vm406, %v492, 0
  %v518 = vsel %vm406, %v493, 0
  %520 = vmatprep.subr.mxu0 0.0
  %521 = vmatpush1.msra.mxu0 %v488
  %522 = vmatprep.subr.mxu0 0.0
  %523 = vmatpush1.msra.mxu0 %v489
  %524 = vmatprep.subr.mxu0 0.0
  %525 = vmatpush1.msra.mxu0 0.0
  %526 = vmatprep.subr.mxu0 0.0
  %527 = vmatpush1.msra.mxu0 0.0
  %528 = vmatprep.subr.mxu0 0.0
  %529 = vmatpush1.msra.mxu0 0.0
  %530 = vmatprep.subr.mxu0 0.0
  %531 = vmatpush1.msra.mxu0 0.0
  %532 = vmatprep.subr.mxu0 0.0
  %533 = vmatpush1.msra.mxu0 0.0
  %534 = vmatprep.subr.mxu0 0.0
  %535 = vmatpush1.msra.mxu0 0.0
  %536 = vmatprep.subr.mxu0 0.0
  %537 = vmatpush1.msra.mxu0 0.0
  %538 = vmatprep.subr.mxu0 0.0
  %539 = vmatpush1.msra.mxu0 0.0
  %540 = vmatprep.subr.mxu0 0.0
  %541 = vmatpush1.msra.mxu0 0.0
  %542 = vmatprep.subr.mxu0 0.0
  %543 = vmatpush1.msra.mxu0 0.0
  %544 = vmatprep.subr.mxu0 0.0
  %545 = vmatpush1.msra.mxu0 0.0
  %546 = vmatprep.subr.mxu0 0.0
  %547 = vmatpush1.msra.mxu0 0.0
  %548 = vmatprep.subr.mxu0 0.0
  %549 = vmatpush1.msra.mxu0 0.0
  %550 = vmatprep.subr.mxu0 0.0
  %551 = vmatpush1.msra.mxu0 0.0
  %552 = vmatprep.subr.mxu0 0.0
  %553 = vmatpush1.msra.mxu0 0.0
  %554 = vmatprep.subr.mxu0 0.0
  %555 = vmatpush1.msra.mxu0 0.0
  %556 = vmatprep.subr.mxu0 0.0
  %557 = vmatpush1.msra.mxu0 0.0
  %558 = vmatprep.subr.mxu0 0.0
  %559 = vmatpush1.msra.mxu0 0.0
  %560 = vmatprep.subr.mxu0 0.0
  %561 = vmatpush1.msra.mxu0 0.0
  %562 = vmatprep.subr.mxu0 0.0
  %563 = vmatpush1.msra.mxu0 0.0
  %564 = vmatprep.subr.mxu0 0.0
  %565 = vmatpush1.msra.mxu0 0.0
  %566 = vmatprep.subr.mxu0 0.0
  %567 = vmatpush1.msra.mxu0 0.0
  %568 = vmatprep.subr.mxu0 0.0
  %569 = vmatpush1.msra.mxu0 0.0
  %570 = vmatprep.subr.mxu0 0.0
  %571 = vmatpush1.msra.mxu0 0.0
  %572 = vmatprep.subr.mxu0 0.0
  %573 = vmatpush1.msra.mxu0 0.0
  %574 = vmatprep.subr.mxu0 0.0
  %575 = vmatpush1.msra.mxu0 0.0
  %576 = vmatprep.subr.mxu0 0.0
  %577 = vmatpush1.msra.mxu0 0.0
  %578 = vmatprep.subr.mxu0 0.0
  %579 = vmatpush1.msra.mxu0 0.0
  %580 = vmatprep.subr.mxu0 0.0
  %581 = vmatpush1.msra.mxu0 0.0
  %582 = vmatprep.subr.mxu0 0.0
  %583 = vmatpush1.msra.mxu0 0.0
  %584 = vmatprep.mubr.f32.mxu0 0.0
  %585 = vmatmul.mubr.f32.gmra.mrb[0].mxu0 %v509
  %v586 = vpop.f32.mrb[0].mxu0
  %v587 = vadd.f32 0.0, %v586
  %v588 = vpop.f32.mrb[0].mxu0
  %589 = vmatprep.mubr.f32.mxu0 0.0
  %590 = vmatmul.mubr.f32.gmra.mrb[0].mxu0 %v512
  %v591 = vpop.f32.mrb[0].mxu0
  %v592 = vadd.f32 0.0, %v591
  %v593 = vpop.f32.mrb[0].mxu0
  %594 = vmatprep.mubr.f32.mxu0 0.0
  %595 = vmatmul.mubr.f32.gmra.mrb[0].mxu0 %v515
  %v596 = vpop.f32.mrb[0].mxu0
  %v597 = vadd.f32 0.0, %v596
  %v598 = vpop.f32.mrb[0].mxu0
  %599 = vmatprep.mubr.f32.mxu0 0.0
  %600 = vmatmul.mubr.f32.gmra.mrb[0].mxu0 %v518
  %v601 = vpop.f32.mrb[0].mxu0
  %v602 = vadd.f32 0.0, %v601
  %v603 = vpop.f32.mrb[0].mxu0
  %604 = vdwg.mxu0
  %v606 = vlaneseq
  %v607 = vshrl.u32 %v606, 7
  %v608 = vsub.s32 0, %v607
  %v609 = vrot.slane %v186, %v608
  %v611 = vmul.f32 %v587, %v609
  %v612 = vmul.f32 %v592, %v609
  %v613 = vmul.f32 %v597, %v609
  %v614 = vmul.f32 %v602, %v609
  %v615 = vsub.f32 1.0, %v186
  %v616 = vmul.f32 %v615, 1e+30
  %v618 = vlaneseq
  %v619 = vshrl.u32 %v618, 7
  %v620 = vsub.s32 0, %v619
  %v621 = vrot.slane %v616, %v620
  %v623 = vsub.f32 %v611, %v621
  %v624 = vsub.f32 %v612, %v621
  %v625 = vsub.f32 %v613, %v621
  %v626 = vsub.f32 %v614, %v621
  %v627 = vsel %vm367, %v623, -inf
  %628 = vmax.xlane.f32.xlu0 %v627
  %v629 = vpop.xlane.xlu0 %628
  %v630 = vsel %vm367, %v624, -inf
  %631 = vmax.xlane.f32.xlu0 %v630
  %v632 = vpop.xlane.xlu0 %631
  %v633 = vsel %vm367, %v625, -inf
  %634 = vmax.xlane.f32.xlu0 %v633
  %v635 = vpop.xlane.xlu0 %634
  %v636 = vsel %vm367, %v626, -inf
  %637 = vmax.xlane.f32.xlu0 %v636
  %v638 = vpop.xlane.xlu0 %637
  %v639 = vmul.f32 %v629, %v609
  %v640 = vmul.f32 %v632, %v609
  %v641 = vmul.f32 %v635, %v609
  %v642 = vmul.f32 %v638, %v609
  %v644 = vlaneseq
  %v645 = vshrl.u32 %v644, 7
  %v646 = vsub.s32 0, %v645
  %v647 = vrot.slane %v188, %v646
  %v649 = vmul.f32 %v587, %v647
  %v650 = vmul.f32 %v592, %v647
  %v651 = vmul.f32 %v597, %v647
  %v652 = vmul.f32 %v602, %v647
  %v653 = vsub.f32 1.0, %v188
  %v654 = vmul.f32 %v653, 1e+30
  %v656 = vlaneseq
  %v657 = vshrl.u32 %v656, 7
  %v658 = vsub.s32 0, %v657
  %v659 = vrot.slane %v654, %v658
  %v661 = vsub.f32 %v649, %v659
  %v662 = vsub.f32 %v650, %v659
  %v663 = vsub.f32 %v651, %v659
  %v664 = vsub.f32 %v652, %v659
  %v665 = vsel %vm367, %v661, -inf
  %666 = vmax.xlane.f32.xlu0 %v665
  %v667 = vpop.xlane.xlu0 %666
  %v668 = vsel %vm367, %v662, -inf
  %669 = vmax.xlane.f32.xlu0 %v668
  %v670 = vpop.xlane.xlu0 %669
  %v671 = vsel %vm367, %v663, -inf
  %672 = vmax.xlane.f32.xlu0 %v671
  %v673 = vpop.xlane.xlu0 %672
  %v674 = vsel %vm367, %v664, -inf
  %675 = vmax.xlane.f32.xlu0 %v674
  %v676 = vpop.xlane.xlu0 %675
  %v677 = vmul.f32 %v667, %v647
  %v678 = vmul.f32 %v670, %v647
  %v679 = vmul.f32 %v673, %v647
  %v680 = vmul.f32 %v676, %v647
  %v681 = vadd.f32 %v639, %v677
  %v682 = vadd.f32 %v640, %v678
  %v683 = vadd.f32 %v641, %v679
  %v684 = vadd.f32 %v642, %v680
  %v685 = vsub.f32 %v587, %v681
  %v686 = vsub.f32 %v592, %v682
  %v687 = vsub.f32 %v597, %v683
  %v688 = vsub.f32 %v602, %v684
  %v689 = vmul.f32 %v685, 1.442695
  %v690 = vpow.pop %v689
  %v691 = vmul.f32 %v686, 1.442695
  %v692 = vpow.pop %v691
  %v693 = vmul.f32 %v687, 1.442695
  %v694 = vpow.pop %v693
  %v695 = vmul.f32 %v688, 1.442695
  %v696 = vpow.pop %v695
  %v697 = vmul.f32 %v690, %v609
  %v698 = vmul.f32 %v692, %v609
  %v699 = vmul.f32 %v694, %v609
  %v700 = vmul.f32 %v696, %v609
  %v701 = vsel %vm367, %v697, 0.0
  %702 = vadd.xlane.f32.xlu0 %v701
  %v703 = vpop.xlane.xlu0 %702
  %v704 = vsel %vm367, %v698, 0.0
  %705 = vadd.xlane.f32.xlu0 %v704
  %v706 = vpop.xlane.xlu0 %705
  %v707 = vsel %vm367, %v699, 0.0
  %708 = vadd.xlane.f32.xlu0 %v707
  %v709 = vpop.xlane.xlu0 %708
  %v710 = vsel %vm367, %v700, 0.0
  %711 = vadd.xlane.f32.xlu0 %v710
  %v712 = vpop.xlane.xlu0 %711
  %v713 = vmul.f32 %v703, %v609
  %v714 = vmul.f32 %v706, %v609
  %v715 = vmul.f32 %v709, %v609
  %v716 = vmul.f32 %v712, %v609
  %v717 = vmul.f32 %v690, %v647
  %v718 = vmul.f32 %v692, %v647
  %v719 = vmul.f32 %v694, %v647
  %v720 = vmul.f32 %v696, %v647
  %v721 = vsel %vm367, %v717, 0.0
  %722 = vadd.xlane.f32.xlu0 %v721
  %v723 = vpop.xlane.xlu0 %722
  %v724 = vsel %vm367, %v718, 0.0
  %725 = vadd.xlane.f32.xlu0 %v724
  %v726 = vpop.xlane.xlu0 %725
  %v727 = vsel %vm367, %v719, 0.0
  %728 = vadd.xlane.f32.xlu0 %v727
  %v729 = vpop.xlane.xlu0 %728
  %v730 = vsel %vm367, %v720, 0.0
  %731 = vadd.xlane.f32.xlu0 %v730
  %v732 = vpop.xlane.xlu0 %731
  %v733 = vmul.f32 %v723, %v647
  %v734 = vmul.f32 %v726, %v647
  %v735 = vmul.f32 %v729, %v647
  %v736 = vmul.f32 %v732, %v647
  %v737 = vadd.f32 %v713, %v733
  %v738 = vadd.f32 %v714, %v734
  %v739 = vadd.f32 %v715, %v735
  %v740 = vadd.f32 %v716, %v736
  %v741 = vrcp.pop %v737
  %v742 = vrcp.pop %v738
  %v743 = vrcp.pop %v739
  %v744 = vrcp.pop %v740
  %v745 = vmul.f32 %v690, %v741
  %v746 = vmul.f32 %v692, %v742
  %v747 = vmul.f32 %v694, %v743
  %v748 = vmul.f32 %v696, %v744
  %vm749 = vcmask 261120
  %v751 = vsel %vm749, %v494, 0
  %v754 = vsel %vm749, %v495, 0
  %756 = vmatprep.subr.mxu0 0.0
  %757 = vmatpush1.msra.mxu0 %v745
  %758 = vmatprep.subr.mxu0 0.0
  %759 = vmatpush1.msra.mxu0 %v746
  %760 = vmatprep.subr.mxu0 0.0
  %761 = vmatpush1.msra.mxu0 %v747
  %762 = vmatprep.subr.mxu0 0.0
  %763 = vmatpush1.msra.mxu0 %v748
  %764 = vmatprep.subr.mxu0 0.0
  %765 = vmatpush1.msra.mxu0 0.0
  %766 = vmatprep.subr.mxu0 0.0
  %767 = vmatpush1.msra.mxu0 0.0
  %768 = vmatprep.subr.mxu0 0.0
  %769 = vmatpush1.msra.mxu0 0.0
  %770 = vmatprep.subr.mxu0 0.0
  %771 = vmatpush1.msra.mxu0 0.0
  %772 = vmatprep.subr.mxu0 0.0
  %773 = vmatpush1.msra.mxu0 0.0
  %774 = vmatprep.subr.mxu0 0.0
  %775 = vmatpush1.msra.mxu0 0.0
  %776 = vmatprep.subr.mxu0 0.0
  %777 = vmatpush1.msra.mxu0 0.0
  %778 = vmatprep.subr.mxu0 0.0
  %779 = vmatpush1.msra.mxu0 0.0
  %780 = vmatprep.subr.mxu0 0.0
  %781 = vmatpush1.msra.mxu0 0.0
  %782 = vmatprep.subr.mxu0 0.0
  %783 = vmatpush1.msra.mxu0 0.0
  %784 = vmatprep.subr.mxu0 0.0
  %785 = vmatpush1.msra.mxu0 0.0
  %786 = vmatprep.subr.mxu0 0.0
  %787 = vmatpush1.msra.mxu0 0.0
  %788 = vmatprep.subr.mxu0 0.0
  %789 = vmatpush1.msra.mxu0 0.0
  %790 = vmatprep.subr.mxu0 0.0
  %791 = vmatpush1.msra.mxu0 0.0
  %792 = vmatprep.subr.mxu0 0.0
  %793 = vmatpush1.msra.mxu0 0.0
  %794 = vmatprep.subr.mxu0 0.0
  %795 = vmatpush1.msra.mxu0 0.0
  %796 = vmatprep.subr.mxu0 0.0
  %797 = vmatpush1.msra.mxu0 0.0
  %798 = vmatprep.subr.mxu0 0.0
  %799 = vmatpush1.msra.mxu0 0.0
  %800 = vmatprep.subr.mxu0 0.0
  %801 = vmatpush1.msra.mxu0 0.0
  %802 = vmatprep.subr.mxu0 0.0
  %803 = vmatpush1.msra.mxu0 0.0
  %804 = vmatprep.subr.mxu0 0.0
  %805 = vmatpush1.msra.mxu0 0.0
  %806 = vmatprep.subr.mxu0 0.0
  %807 = vmatpush1.msra.mxu0 0.0
  %808 = vmatprep.subr.mxu0 0.0
  %809 = vmatpush1.msra.mxu0 0.0
  %810 = vmatprep.subr.mxu0 0.0
  %811 = vmatpush1.msra.mxu0 0.0
  %812 = vmatprep.subr.mxu0 0.0
  %813 = vmatpush1.msra.mxu0 0.0
  %814 = vmatprep.subr.mxu0 0.0
  %815 = vmatpush1.msra.mxu0 0.0
  %816 = vmatprep.subr.mxu0 0.0
  %817 = vmatpush1.msra.mxu0 0.0
  %818 = vmatprep.subr.mxu0 0.0
  %819 = vmatpush1.msra.mxu0 0.0
  %820 = vmatprep.mubr.f32.mxu0 0.0
  %821 = vmatmul.mubr.f32.gmra.mrb[0].mxu0 %v751
  %v822 = vpop.f32.mrb[0].mxu0
  %v823 = vadd.f32 0.0, %v822
  %v824 = vpop.f32.mrb[0].mxu0
  %825 = vmatprep.mubr.f32.mxu0 0.0
  %826 = vmatmul.mubr.f32.gmra.mrb[0].mxu0 %v754
  %v827 = vpop.f32.mrb[0].mxu0
  %v828 = vadd.f32 0.0, %v827
  %v829 = vpop.f32.mrb[0].mxu0
  %830 = vdwg.mxu0
  %v831 = vadd.f32 %v488, %v823
  %v832 = vadd.f32 %v489, %v828
  %v833 = vsel %vm367, %v831, 0.0
  %v834 = vsel %vm367, %v832, 0.0
  %v835 = vadd.f32 %v833, %v834
  %v836 = vrot.slane %v835, 4
  %v837 = vadd.f32 %v835, %v836
  %v838 = vrot.slane %v837, 2
  %v839 = vadd.f32 %v837, %v838
  %v840 = vrot.slane %v839, 1
  %v841 = vadd.f32 %v839, %v840
  %v842 = vmul.f32 %v841, %v377
  %v843 = vsub.f32 %v831, %v842
  %v844 = vsub.f32 %v832, %v842
  %v845 = vmul.f32 %v843, %v843
  %v846 = vmul.f32 %v844, %v844
  %v847 = vsel %vm367, %v845, 0.0
  %v848 = vsel %vm367, %v846, 0.0
  %v849 = vadd.f32 %v847, %v848
  %v850 = vrot.slane %v849, 4
  %v851 = vadd.f32 %v849, %v850
  %v852 = vrot.slane %v851, 2
  %v853 = vadd.f32 %v851, %v852
  %v854 = vrot.slane %v853, 1
  %v855 = vadd.f32 %v853, %v854
  %v856 = vmul.f32 %v855, %v377
  %v857 = vadd.f32 %v856, 1e-05
  %v858 = vrsqrt.pop %v857
  %v859 = vmul.f32 %v843, %v858
  %v860 = vmul.f32 %v844, %v858
  %862 = vset.pattern.permute.xlu0 0
  %863 = vperm.xlu0 %862, %v500
  %v864 = vpop.permute.xlu0 %863
  %867 = vset.pattern.permute.xlu0 0
  %868 = vperm.xlu0 %867, %v501
  %v869 = vpop.permute.xlu0 %868
  %v871 = vmul.f32 %v859, %v864
  %v872 = vmul.f32 %v860, %v869
  %874 = vset.pattern.permute.xlu0 0
  %875 = vperm.xlu0 %874, %v502
  %v876 = vpop.permute.xlu0 %875
  %879 = vset.pattern.permute.xlu0 0
  %880 = vperm.xlu0 %879, %v503
  %v881 = vpop.permute.xlu0 %880
  %v883 = vadd.f32 %v871, %v876
  %v884 = vadd.f32 %v872, %v881
  %v886 = vsel %vm406, %v496, 0
  %v889 = vsel %vm406, %v497, 0
  %891 = vmatprep.subr.mxu0 0.0
  %892 = vmatpush1.msra.mxu0 %v883
  %893 = vmatprep.subr.mxu0 0.0
  %894 = vmatpush1.msra.mxu0 %v884
  %895 = vmatprep.subr.mxu0 0.0
  %896 = vmatpush1.msra.mxu0 0.0
  %897 = vmatprep.subr.mxu0 0.0
  %898 = vmatpush1.msra.mxu0 0.0
  %899 = vmatprep.subr.mxu0 0.0
  %900 = vmatpush1.msra.mxu0 0.0
  %901 = vmatprep.subr.mxu0 0.0
  %902 = vmatpush1.msra.mxu0 0.0
  %903 = vmatprep.subr.mxu0 0.0
  %904 = vmatpush1.msra.mxu0 0.0
  %905 = vmatprep.subr.mxu0 0.0
  %906 = vmatpush1.msra.mxu0 0.0
  %907 = vmatprep.subr.mxu0 0.0
  %908 = vmatpush1.msra.mxu0 0.0
  %909 = vmatprep.subr.mxu0 0.0
  %910 = vmatpush1.msra.mxu0 0.0
  %911 = vmatprep.subr.mxu0 0.0
  %912 = vmatpush1.msra.mxu0 0.0
  %913 = vmatprep.subr.mxu0 0.0
  %914 = vmatpush1.msra.mxu0 0.0
  %915 = vmatprep.subr.mxu0 0.0
  %916 = vmatpush1.msra.mxu0 0.0
  %917 = vmatprep.subr.mxu0 0.0
  %918 = vmatpush1.msra.mxu0 0.0
  %919 = vmatprep.subr.mxu0 0.0
  %920 = vmatpush1.msra.mxu0 0.0
  %921 = vmatprep.subr.mxu0 0.0
  %922 = vmatpush1.msra.mxu0 0.0
  %923 = vmatprep.subr.mxu0 0.0
  %924 = vmatpush1.msra.mxu0 0.0
  %925 = vmatprep.subr.mxu0 0.0
  %926 = vmatpush1.msra.mxu0 0.0
  %927 = vmatprep.subr.mxu0 0.0
  %928 = vmatpush1.msra.mxu0 0.0
  %929 = vmatprep.subr.mxu0 0.0
  %930 = vmatpush1.msra.mxu0 0.0
  %931 = vmatprep.subr.mxu0 0.0
  %932 = vmatpush1.msra.mxu0 0.0
  %933 = vmatprep.subr.mxu0 0.0
  %934 = vmatpush1.msra.mxu0 0.0
  %935 = vmatprep.subr.mxu0 0.0
  %936 = vmatpush1.msra.mxu0 0.0
  %937 = vmatprep.subr.mxu0 0.0
  %938 = vmatpush1.msra.mxu0 0.0
  %939 = vmatprep.subr.mxu0 0.0
  %940 = vmatpush1.msra.mxu0 0.0
  %941 = vmatprep.subr.mxu0 0.0
  %942 = vmatpush1.msra.mxu0 0.0
  %943 = vmatprep.subr.mxu0 0.0
  %944 = vmatpush1.msra.mxu0 0.0
  %945 = vmatprep.subr.mxu0 0.0
  %946 = vmatpush1.msra.mxu0 0.0
  %947 = vmatprep.subr.mxu0 0.0
  %948 = vmatpush1.msra.mxu0 0.0
  %949 = vmatprep.subr.mxu0 0.0
  %950 = vmatpush1.msra.mxu0 0.0
  %951 = vmatprep.subr.mxu0 0.0
  %952 = vmatpush1.msra.mxu0 0.0
  %953 = vmatprep.subr.mxu0 0.0
  %954 = vmatpush1.msra.mxu0 0.0
  %955 = vmatprep.mubr.f32.mxu0 0.0
  %956 = vmatmul.mubr.f32.gmra.mrb[0].mxu0 %v886
  %v957 = vpop.f32.mrb[0].mxu0
  %v958 = vadd.f32 0.0, %v957
  %v959 = vpop.f32.mrb[0].mxu0
  %960 = vmatprep.mubr.f32.mxu0 0.0
  %961 = vmatmul.mubr.f32.gmra.mrb[0].mxu0 %v889
  %v962 = vpop.f32.mrb[0].mxu0
  %v963 = vadd.f32 0.0, %v962
  %v964 = vpop.f32.mrb[0].mxu0
  %965 = vdwg.mxu0
  %v966 = vadd.f32 %v883, %v958
  %v967 = vadd.f32 %v884, %v963
  %969 = vset.pattern.permute.xlu0 0
  %970 = vperm.xlu0 %969, %v498
  %v971 = vpop.permute.xlu0 %970
  %974 = vset.pattern.permute.xlu0 0
  %975 = vperm.xlu0 %974, %v499
  %v976 = vpop.permute.xlu0 %975
  %v978 = vadd.f32 %v966, %v971
  %v979 = vadd.f32 %v967, %v976
  %v980 = vsel %vm367, %v978, 0.0
  %v981 = vsel %vm367, %v979, 0.0
  %v982 = vadd.f32 %v980, %v981
  %v983 = vrot.slane %v982, 4
  %v984 = vadd.f32 %v982, %v983
  %v985 = vrot.slane %v984, 2
  %v986 = vadd.f32 %v984, %v985
  %v987 = vrot.slane %v986, 1
  %v988 = vadd.f32 %v986, %v987
  %v989 = vmul.f32 %v988, %v377
  %v990 = vsub.f32 %v978, %v989
  %v991 = vsub.f32 %v979, %v989
  %v992 = vmul.f32 %v990, %v990
  %v993 = vmul.f32 %v991, %v991
  %v994 = vsel %vm367, %v992, 0.0
  %v995 = vsel %vm367, %v993, 0.0
  %v996 = vadd.f32 %v994, %v995
  %v997 = vrot.slane %v996, 4
  %v998 = vadd.f32 %v996, %v997
  %v999 = vrot.slane %v998, 2
  %v1000 = vadd.f32 %v998, %v999
  %v1001 = vrot.slane %v1000, 1
  %v1002 = vadd.f32 %v1000, %v1001
  %v1003 = vmul.f32 %v1002, %v377
  %v1004 = vadd.f32 %v1003, 1e-05
  %v1005 = vrsqrt.pop %v1004
  %v1006 = vmul.f32 %v990, %v1005
  %v1007 = vmul.f32 %v991, %v1005
  %1009 = vset.pattern.permute.xlu0 0
  %1010 = vperm.xlu0 %1009, %v504
  %v1011 = vpop.permute.xlu0 %1010
  %1014 = vset.pattern.permute.xlu0 0
  %1015 = vperm.xlu0 %1014, %v505
  %v1016 = vpop.permute.xlu0 %1015
  %v1018 = vmul.f32 %v1006, %v1011
  %v1019 = vmul.f32 %v1007, %v1016
  %1021 = vset.pattern.permute.xlu0 0
  %1022 = vperm.xlu0 %1021, %v506
  %v1023 = vpop.permute.xlu0 %1022
  %1026 = vset.pattern.permute.xlu0 0
  %1027 = vperm.xlu0 %1026, %v507
  %v1028 = vpop.permute.xlu0 %1027
  %v1030 = vadd.f32 %v1018, %v1023
  %v1031 = vadd.f32 %v1019, %v1028
  %v1032 = vld [vmem:[%s27] sm:$0xff]
  %v1033 = vld [vmem:[%s27 + $0x8] sm:$0xff]
  %v1034 = vld [vmem:[%s27 + $0x10] sm:$0xff]
  %v1035 = vld [vmem:[%s27 + $0x18] sm:$0xff]
  %v1036 = vld [vmem:[%s29] sm:$0xff]
  %v1037 = vld [vmem:[%s29 + $0x8] sm:$0xff]
  %v1038 = vld [vmem:[%s31] sm:$0xff]
  %v1039 = vld [vmem:[%s31 + $0x8] sm:$0xff]
  %v1040 = vld [vmem:[%s33] sm:$0xff]
  %v1041 = vld [vmem:[%s33 + $0x8] sm:$0xff]
  %v1042 = vld [vmem:[%s35] sm:$0xff]
  %v1043 = vld [vmem:[%s35 + $0x8] sm:$0xff]
  %v1044 = vld [vmem:[%s37] sm:$0xff]
  %v1045 = vld [vmem:[%s37 + $0x8] sm:$0xff]
  %v1046 = vld [vmem:[%s39] sm:$0xff]
  %v1047 = vld [vmem:[%s39 + $0x8] sm:$0xff]
  %v1048 = vld [vmem:[%s41] sm:$0xff]
  %v1049 = vld [vmem:[%s41 + $0x8] sm:$0xff]
  %v1051 = vsel %vm406, %v1032, 0
  %v1054 = vsel %vm406, %v1033, 0
  %v1057 = vsel %vm406, %v1034, 0
  %v1060 = vsel %vm406, %v1035, 0
  %1062 = vmatprep.subr.mxu0 0.0
  %1063 = vmatpush1.msra.mxu0 %v1030
  %1064 = vmatprep.subr.mxu0 0.0
  %1065 = vmatpush1.msra.mxu0 %v1031
  %1066 = vmatprep.subr.mxu0 0.0
  %1067 = vmatpush1.msra.mxu0 0.0
  %1068 = vmatprep.subr.mxu0 0.0
  %1069 = vmatpush1.msra.mxu0 0.0
  %1070 = vmatprep.subr.mxu0 0.0
  %1071 = vmatpush1.msra.mxu0 0.0
  %1072 = vmatprep.subr.mxu0 0.0
  %1073 = vmatpush1.msra.mxu0 0.0
  %1074 = vmatprep.subr.mxu0 0.0
  %1075 = vmatpush1.msra.mxu0 0.0
  %1076 = vmatprep.subr.mxu0 0.0
  %1077 = vmatpush1.msra.mxu0 0.0
  %1078 = vmatprep.subr.mxu0 0.0
  %1079 = vmatpush1.msra.mxu0 0.0
  %1080 = vmatprep.subr.mxu0 0.0
  %1081 = vmatpush1.msra.mxu0 0.0
  %1082 = vmatprep.subr.mxu0 0.0
  %1083 = vmatpush1.msra.mxu0 0.0
  %1084 = vmatprep.subr.mxu0 0.0
  %1085 = vmatpush1.msra.mxu0 0.0
  %1086 = vmatprep.subr.mxu0 0.0
  %1087 = vmatpush1.msra.mxu0 0.0
  %1088 = vmatprep.subr.mxu0 0.0
  %1089 = vmatpush1.msra.mxu0 0.0
  %1090 = vmatprep.subr.mxu0 0.0
  %1091 = vmatpush1.msra.mxu0 0.0
  %1092 = vmatprep.subr.mxu0 0.0
  %1093 = vmatpush1.msra.mxu0 0.0
  %1094 = vmatprep.subr.mxu0 0.0
  %1095 = vmatpush1.msra.mxu0 0.0
  %1096 = vmatprep.subr.mxu0 0.0
  %1097 = vmatpush1.msra.mxu0 0.0
  %1098 = vmatprep.subr.mxu0 0.0
  %1099 = vmatpush1.msra.mxu0 0.0
  %1100 = vmatprep.subr.mxu0 0.0
  %1101 = vmatpush1.msra.mxu0 0.0
  %1102 = vmatprep.subr.mxu0 0.0
  %1103 = vmatpush1.msra.mxu0 0.0
  %1104 = vmatprep.subr.mxu0 0.0
  %1105 = vmatpush1.msra.mxu0 0.0
  %1106 = vmatprep.subr.mxu0 0.0
  %1107 = vmatpush1.msra.mxu0 0.0
  %1108 = vmatprep.subr.mxu0 0.0
  %1109 = vmatpush1.msra.mxu0 0.0
  %1110 = vmatprep.subr.mxu0 0.0
  %1111 = vmatpush1.msra.mxu0 0.0
  %1112 = vmatprep.subr.mxu0 0.0
  %1113 = vmatpush1.msra.mxu0 0.0
  %1114 = vmatprep.subr.mxu0 0.0
  %1115 = vmatpush1.msra.mxu0 0.0
  %1116 = vmatprep.subr.mxu0 0.0
  %1117 = vmatpush1.msra.mxu0 0.0
  %1118 = vmatprep.subr.mxu0 0.0
  %1119 = vmatpush1.msra.mxu0 0.0
  %1120 = vmatprep.subr.mxu0 0.0
  %1121 = vmatpush1.msra.mxu0 0.0
  %1122 = vmatprep.subr.mxu0 0.0
  %1123 = vmatpush1.msra.mxu0 0.0
  %1124 = vmatprep.subr.mxu0 0.0
  %1125 = vmatpush1.msra.mxu0 0.0
  %1126 = vmatprep.mubr.f32.mxu0 0.0
  %1127 = vmatmul.mubr.f32.gmra.mrb[0].mxu0 %v1051
  %v1128 = vpop.f32.mrb[0].mxu0
  %v1129 = vadd.f32 0.0, %v1128
  %v1130 = vpop.f32.mrb[0].mxu0
  %1131 = vmatprep.mubr.f32.mxu0 0.0
  %1132 = vmatmul.mubr.f32.gmra.mrb[0].mxu0 %v1054
  %v1133 = vpop.f32.mrb[0].mxu0
  %v1134 = vadd.f32 0.0, %v1133
  %v1135 = vpop.f32.mrb[0].mxu0
  %1136 = vmatprep.mubr.f32.mxu0 0.0
  %1137 = vmatmul.mubr.f32.gmra.mrb[0].mxu0 %v1057
  %v1138 = vpop.f32.mrb[0].mxu0
  %v1139 = vadd.f32 0.0, %v1138
  %v1140 = vpop.f32.mrb[0].mxu0
  %1141 = vmatprep.mubr.f32.mxu0 0.0
  %1142 = vmatmul.mubr.f32.gmra.mrb[0].mxu0 %v1060
  %v1143 = vpop.f32.mrb[0].mxu0
  %v1144 = vadd.f32 0.0, %v1143
  %v1145 = vpop.f32.mrb[0].mxu0
  %1146 = vdwg.mxu0
  %v1147 = vmul.f32 %v1129, %v609
  %v1148 = vmul.f32 %v1134, %v609
  %v1149 = vmul.f32 %v1139, %v609
  %v1150 = vmul.f32 %v1144, %v609
  %v1151 = vsub.f32 %v1147, %v621
  %v1152 = vsub.f32 %v1148, %v621
  %v1153 = vsub.f32 %v1149, %v621
  %v1154 = vsub.f32 %v1150, %v621
  %v1155 = vsel %vm367, %v1151, -inf
  %1156 = vmax.xlane.f32.xlu0 %v1155
  %v1157 = vpop.xlane.xlu0 %1156
  %v1158 = vsel %vm367, %v1152, -inf
  %1159 = vmax.xlane.f32.xlu0 %v1158
  %v1160 = vpop.xlane.xlu0 %1159
  %v1161 = vsel %vm367, %v1153, -inf
  %1162 = vmax.xlane.f32.xlu0 %v1161
  %v1163 = vpop.xlane.xlu0 %1162
  %v1164 = vsel %vm367, %v1154, -inf
  %1165 = vmax.xlane.f32.xlu0 %v1164
  %v1166 = vpop.xlane.xlu0 %1165
  %v1167 = vmul.f32 %v1157, %v609
  %v1168 = vmul.f32 %v1160, %v609
  %v1169 = vmul.f32 %v1163, %v609
  %v1170 = vmul.f32 %v1166, %v609
  %v1171 = vmul.f32 %v1129, %v647
  %v1172 = vmul.f32 %v1134, %v647
  %v1173 = vmul.f32 %v1139, %v647
  %v1174 = vmul.f32 %v1144, %v647
  %v1175 = vsub.f32 %v1171, %v659
  %v1176 = vsub.f32 %v1172, %v659
  %v1177 = vsub.f32 %v1173, %v659
  %v1178 = vsub.f32 %v1174, %v659
  %v1179 = vsel %vm367, %v1175, -inf
  %1180 = vmax.xlane.f32.xlu0 %v1179
  %v1181 = vpop.xlane.xlu0 %1180
  %v1182 = vsel %vm367, %v1176, -inf
  %1183 = vmax.xlane.f32.xlu0 %v1182
  %v1184 = vpop.xlane.xlu0 %1183
  %v1185 = vsel %vm367, %v1177, -inf
  %1186 = vmax.xlane.f32.xlu0 %v1185
  %v1187 = vpop.xlane.xlu0 %1186
  %v1188 = vsel %vm367, %v1178, -inf
  %1189 = vmax.xlane.f32.xlu0 %v1188
  %v1190 = vpop.xlane.xlu0 %1189
  %v1191 = vmul.f32 %v1181, %v647
  %v1192 = vmul.f32 %v1184, %v647
  %v1193 = vmul.f32 %v1187, %v647
  %v1194 = vmul.f32 %v1190, %v647
  %v1195 = vadd.f32 %v1167, %v1191
  %v1196 = vadd.f32 %v1168, %v1192
  %v1197 = vadd.f32 %v1169, %v1193
  %v1198 = vadd.f32 %v1170, %v1194
  %v1199 = vsub.f32 %v1129, %v1195
  %v1200 = vsub.f32 %v1134, %v1196
  %v1201 = vsub.f32 %v1139, %v1197
  %v1202 = vsub.f32 %v1144, %v1198
  %v1203 = vmul.f32 %v1199, 1.442695
  %v1204 = vpow.pop %v1203
  %v1205 = vmul.f32 %v1200, 1.442695
  %v1206 = vpow.pop %v1205
  %v1207 = vmul.f32 %v1201, 1.442695
  %v1208 = vpow.pop %v1207
  %v1209 = vmul.f32 %v1202, 1.442695
  %v1210 = vpow.pop %v1209
  %v1211 = vmul.f32 %v1204, %v609
  %v1212 = vmul.f32 %v1206, %v609
  %v1213 = vmul.f32 %v1208, %v609
  %v1214 = vmul.f32 %v1210, %v609
  %v1215 = vsel %vm367, %v1211, 0.0
  %1216 = vadd.xlane.f32.xlu0 %v1215
  %v1217 = vpop.xlane.xlu0 %1216
  %v1218 = vsel %vm367, %v1212, 0.0
  %1219 = vadd.xlane.f32.xlu0 %v1218
  %v1220 = vpop.xlane.xlu0 %1219
  %v1221 = vsel %vm367, %v1213, 0.0
  %1222 = vadd.xlane.f32.xlu0 %v1221
  %v1223 = vpop.xlane.xlu0 %1222
  %v1224 = vsel %vm367, %v1214, 0.0
  %1225 = vadd.xlane.f32.xlu0 %v1224
  %v1226 = vpop.xlane.xlu0 %1225
  %v1227 = vmul.f32 %v1217, %v609
  %v1228 = vmul.f32 %v1220, %v609
  %v1229 = vmul.f32 %v1223, %v609
  %v1230 = vmul.f32 %v1226, %v609
  %v1231 = vmul.f32 %v1204, %v647
  %v1232 = vmul.f32 %v1206, %v647
  %v1233 = vmul.f32 %v1208, %v647
  %v1234 = vmul.f32 %v1210, %v647
  %v1235 = vsel %vm367, %v1231, 0.0
  %1236 = vadd.xlane.f32.xlu0 %v1235
  %v1237 = vpop.xlane.xlu0 %1236
  %v1238 = vsel %vm367, %v1232, 0.0
  %1239 = vadd.xlane.f32.xlu0 %v1238
  %v1240 = vpop.xlane.xlu0 %1239
  %v1241 = vsel %vm367, %v1233, 0.0
  %1242 = vadd.xlane.f32.xlu0 %v1241
  %v1243 = vpop.xlane.xlu0 %1242
  %v1244 = vsel %vm367, %v1234, 0.0
  %1245 = vadd.xlane.f32.xlu0 %v1244
  %v1246 = vpop.xlane.xlu0 %1245
  %v1247 = vmul.f32 %v1237, %v647
  %v1248 = vmul.f32 %v1240, %v647
  %v1249 = vmul.f32 %v1243, %v647
  %v1250 = vmul.f32 %v1246, %v647
  %v1251 = vadd.f32 %v1227, %v1247
  %v1252 = vadd.f32 %v1228, %v1248
  %v1253 = vadd.f32 %v1229, %v1249
  %v1254 = vadd.f32 %v1230, %v1250
  %v1255 = vrcp.pop %v1251
  %v1256 = vrcp.pop %v1252
  %v1257 = vrcp.pop %v1253
  %v1258 = vrcp.pop %v1254
  %v1259 = vmul.f32 %v1204, %v1255
  %v1260 = vmul.f32 %v1206, %v1256
  %v1261 = vmul.f32 %v1208, %v1257
  %v1262 = vmul.f32 %v1210, %v1258
  %v1264 = vsel %vm749, %v1036, 0
  %v1267 = vsel %vm749, %v1037, 0
  %1269 = vmatprep.subr.mxu0 0.0
  %1270 = vmatpush1.msra.mxu0 %v1259
  %1271 = vmatprep.subr.mxu0 0.0
  %1272 = vmatpush1.msra.mxu0 %v1260
  %1273 = vmatprep.subr.mxu0 0.0
  %1274 = vmatpush1.msra.mxu0 %v1261
  %1275 = vmatprep.subr.mxu0 0.0
  %1276 = vmatpush1.msra.mxu0 %v1262
  %1277 = vmatprep.subr.mxu0 0.0
  %1278 = vmatpush1.msra.mxu0 0.0
  %1279 = vmatprep.subr.mxu0 0.0
  %1280 = vmatpush1.msra.mxu0 0.0
  %1281 = vmatprep.subr.mxu0 0.0
  %1282 = vmatpush1.msra.mxu0 0.0
  %1283 = vmatprep.subr.mxu0 0.0
  %1284 = vmatpush1.msra.mxu0 0.0
  %1285 = vmatprep.subr.mxu0 0.0
  %1286 = vmatpush1.msra.mxu0 0.0
  %1287 = vmatprep.subr.mxu0 0.0
  %1288 = vmatpush1.msra.mxu0 0.0
  %1289 = vmatprep.subr.mxu0 0.0
  %1290 = vmatpush1.msra.mxu0 0.0
  %1291 = vmatprep.subr.mxu0 0.0
  %1292 = vmatpush1.msra.mxu0 0.0
  %1293 = vmatprep.subr.mxu0 0.0
  %1294 = vmatpush1.msra.mxu0 0.0
  %1295 = vmatprep.subr.mxu0 0.0
  %1296 = vmatpush1.msra.mxu0 0.0
  %1297 = vmatprep.subr.mxu0 0.0
  %1298 = vmatpush1.msra.mxu0 0.0
  %1299 = vmatprep.subr.mxu0 0.0
  %1300 = vmatpush1.msra.mxu0 0.0
  %1301 = vmatprep.subr.mxu0 0.0
  %1302 = vmatpush1.msra.mxu0 0.0
  %1303 = vmatprep.subr.mxu0 0.0
  %1304 = vmatpush1.msra.mxu0 0.0
  %1305 = vmatprep.subr.mxu0 0.0
  %1306 = vmatpush1.msra.mxu0 0.0
  %1307 = vmatprep.subr.mxu0 0.0
  %1308 = vmatpush1.msra.mxu0 0.0
  %1309 = vmatprep.subr.mxu0 0.0
  %1310 = vmatpush1.msra.mxu0 0.0
  %1311 = vmatprep.subr.mxu0 0.0
  %1312 = vmatpush1.msra.mxu0 0.0
  %1313 = vmatprep.subr.mxu0 0.0
  %1314 = vmatpush1.msra.mxu0 0.0
  %1315 = vmatprep.subr.mxu0 0.0
  %1316 = vmatpush1.msra.mxu0 0.0
  %1317 = vmatprep.subr.mxu0 0.0
  %1318 = vmatpush1.msra.mxu0 0.0
  %1319 = vmatprep.subr.mxu0 0.0
  %1320 = vmatpush1.msra.mxu0 0.0
  %1321 = vmatprep.subr.mxu0 0.0
  %1322 = vmatpush1.msra.mxu0 0.0
  %1323 = vmatprep.subr.mxu0 0.0
  %1324 = vmatpush1.msra.mxu0 0.0
  %1325 = vmatprep.subr.mxu0 0.0
  %1326 = vmatpush1.msra.mxu0 0.0
  %1327 = vmatprep.subr.mxu0 0.0
  %1328 = vmatpush1.msra.mxu0 0.0
  %1329 = vmatprep.subr.mxu0 0.0
  %1330 = vmatpush1.msra.mxu0 0.0
  %1331 = vmatprep.subr.mxu0 0.0
  %1332 = vmatpush1.msra.mxu0 0.0
  %1333 = vmatprep.mubr.f32.mxu0 0.0
  %1334 = vmatmul.mubr.f32.gmra.mrb[0].mxu0 %v1264
  %v1335 = vpop.f32.mrb[0].mxu0
  %v1336 = vadd.f32 0.0, %v1335
  %v1337 = vpop.f32.mrb[0].mxu0
  %1338 = vmatprep.mubr.f32.mxu0 0.0
  %1339 = vmatmul.mubr.f32.gmra.mrb[0].mxu0 %v1267
  %v1340 = vpop.f32.mrb[0].mxu0
  %v1341 = vadd.f32 0.0, %v1340
  %v1342 = vpop.f32.mrb[0].mxu0
  %1343 = vdwg.mxu0
  %v1344 = vadd.f32 %v1030, %v1336
  %v1345 = vadd.f32 %v1031, %v1341
  %v1346 = vsel %vm367, %v1344, 0.0
  %v1347 = vsel %vm367, %v1345, 0.0
  %v1348 = vadd.f32 %v1346, %v1347
  %v1349 = vrot.slane %v1348, 4
  %v1350 = vadd.f32 %v1348, %v1349
  %v1351 = vrot.slane %v1350, 2
  %v1352 = vadd.f32 %v1350, %v1351
  %v1353 = vrot.slane %v1352, 1
  %v1354 = vadd.f32 %v1352, %v1353
  %v1355 = vmul.f32 %v1354, %v377
  %v1356 = vsub.f32 %v1344, %v1355
  %v1357 = vsub.f32 %v1345, %v1355
  %v1358 = vmul.f32 %v1356, %v1356
  %v1359 = vmul.f32 %v1357, %v1357
  %v1360 = vsel %vm367, %v1358, 0.0
  %v1361 = vsel %vm367, %v1359, 0.0
  %v1362 = vadd.f32 %v1360, %v1361
  %v1363 = vrot.slane %v1362, 4
  %v1364 = vadd.f32 %v1362, %v1363
  %v1365 = vrot.slane %v1364, 2
  %v1366 = vadd.f32 %v1364, %v1365
  %v1367 = vrot.slane %v1366, 1
  %v1368 = vadd.f32 %v1366, %v1367
  %v1369 = vmul.f32 %v1368, %v377
  %v1370 = vadd.f32 %v1369, 1e-05
  %v1371 = vrsqrt.pop %v1370
  %v1372 = vmul.f32 %v1356, %v1371
  %v1373 = vmul.f32 %v1357, %v1371
  %1375 = vset.pattern.permute.xlu0 0
  %1376 = vperm.xlu0 %1375, %v1042
  %v1377 = vpop.permute.xlu0 %1376
  %1380 = vset.pattern.permute.xlu0 0
  %1381 = vperm.xlu0 %1380, %v1043
  %v1382 = vpop.permute.xlu0 %1381
  %v1384 = vmul.f32 %v1372, %v1377
  %v1385 = vmul.f32 %v1373, %v1382
  %1387 = vset.pattern.permute.xlu0 0
  %1388 = vperm.xlu0 %1387, %v1044
  %v1389 = vpop.permute.xlu0 %1388
  %1392 = vset.pattern.permute.xlu0 0
  %1393 = vperm.xlu0 %1392, %v1045
  %v1394 = vpop.permute.xlu0 %1393
  %v1396 = vadd.f32 %v1384, %v1389
  %v1397 = vadd.f32 %v1385, %v1394
  %v1399 = vsel %vm406, %v1038, 0
  %v1402 = vsel %vm406, %v1039, 0
  %1404 = vmatprep.subr.mxu0 0.0
  %1405 = vmatpush1.msra.mxu0 %v1396
  %1406 = vmatprep.subr.mxu0 0.0
  %1407 = vmatpush1.msra.mxu0 %v1397
  %1408 = vmatprep.subr.mxu0 0.0
  %1409 = vmatpush1.msra.mxu0 0.0
  %1410 = vmatprep.subr.mxu0 0.0
  %1411 = vmatpush1.msra.mxu0 0.0
  %1412 = vmatprep.subr.mxu0 0.0
  %1413 = vmatpush1.msra.mxu0 0.0
  %1414 = vmatprep.subr.mxu0 0.0
  %1415 = vmatpush1.msra.mxu0 0.0
  %1416 = vmatprep.subr.mxu0 0.0
  %1417 = vmatpush1.msra.mxu0 0.0
  %1418 = vmatprep.subr.mxu0 0.0
  %1419 = vmatpush1.msra.mxu0 0.0
  %1420 = vmatprep.subr.mxu0 0.0
  %1421 = vmatpush1.msra.mxu0 0.0
  %1422 = vmatprep.subr.mxu0 0.0
  %1423 = vmatpush1.msra.mxu0 0.0
  %1424 = vmatprep.subr.mxu0 0.0
  %1425 = vmatpush1.msra.mxu0 0.0
  %1426 = vmatprep.subr.mxu0 0.0
  %1427 = vmatpush1.msra.mxu0 0.0
  %1428 = vmatprep.subr.mxu0 0.0
  %1429 = vmatpush1.msra.mxu0 0.0
  %1430 = vmatprep.subr.mxu0 0.0
  %1431 = vmatpush1.msra.mxu0 0.0
  %1432 = vmatprep.subr.mxu0 0.0
  %1433 = vmatpush1.msra.mxu0 0.0
  %1434 = vmatprep.subr.mxu0 0.0
  %1435 = vmatpush1.msra.mxu0 0.0
  %1436 = vmatprep.subr.mxu0 0.0
  %1437 = vmatpush1.msra.mxu0 0.0
  %1438 = vmatprep.subr.mxu0 0.0
  %1439 = vmatpush1.msra.mxu0 0.0
  %1440 = vmatprep.subr.mxu0 0.0
  %1441 = vmatpush1.msra.mxu0 0.0
  %1442 = vmatprep.subr.mxu0 0.0
  %1443 = vmatpush1.msra.mxu0 0.0
  %1444 = vmatprep.subr.mxu0 0.0
  %1445 = vmatpush1.msra.mxu0 0.0
  %1446 = vmatprep.subr.mxu0 0.0
  %1447 = vmatpush1.msra.mxu0 0.0
  %1448 = vmatprep.subr.mxu0 0.0
  %1449 = vmatpush1.msra.mxu0 0.0
  %1450 = vmatprep.subr.mxu0 0.0
  %1451 = vmatpush1.msra.mxu0 0.0
  %1452 = vmatprep.subr.mxu0 0.0
  %1453 = vmatpush1.msra.mxu0 0.0
  %1454 = vmatprep.subr.mxu0 0.0
  %1455 = vmatpush1.msra.mxu0 0.0
  %1456 = vmatprep.subr.mxu0 0.0
  %1457 = vmatpush1.msra.mxu0 0.0
  %1458 = vmatprep.subr.mxu0 0.0
  %1459 = vmatpush1.msra.mxu0 0.0
  %1460 = vmatprep.subr.mxu0 0.0
  %1461 = vmatpush1.msra.mxu0 0.0
  %1462 = vmatprep.subr.mxu0 0.0
  %1463 = vmatpush1.msra.mxu0 0.0
  %1464 = vmatprep.subr.mxu0 0.0
  %1465 = vmatpush1.msra.mxu0 0.0
  %1466 = vmatprep.subr.mxu0 0.0
  %1467 = vmatpush1.msra.mxu0 0.0
  %1468 = vmatprep.mubr.f32.mxu0 0.0
  %1469 = vmatmul.mubr.f32.gmra.mrb[0].mxu0 %v1399
  %v1470 = vpop.f32.mrb[0].mxu0
  %v1471 = vadd.f32 0.0, %v1470
  %v1472 = vpop.f32.mrb[0].mxu0
  %1473 = vmatprep.mubr.f32.mxu0 0.0
  %1474 = vmatmul.mubr.f32.gmra.mrb[0].mxu0 %v1402
  %v1475 = vpop.f32.mrb[0].mxu0
  %v1476 = vadd.f32 0.0, %v1475
  %v1477 = vpop.f32.mrb[0].mxu0
  %1478 = vdwg.mxu0
  %v1479 = vadd.f32 %v1396, %v1471
  %v1480 = vadd.f32 %v1397, %v1476
  %1482 = vset.pattern.permute.xlu0 0
  %1483 = vperm.xlu0 %1482, %v1040
  %v1484 = vpop.permute.xlu0 %1483
  %1487 = vset.pattern.permute.xlu0 0
  %1488 = vperm.xlu0 %1487, %v1041
  %v1489 = vpop.permute.xlu0 %1488
  %v1491 = vadd.f32 %v1479, %v1484
  %v1492 = vadd.f32 %v1480, %v1489
  %v1493 = vsel %vm367, %v1491, 0.0
  %v1494 = vsel %vm367, %v1492, 0.0
  %v1495 = vadd.f32 %v1493, %v1494
  %v1496 = vrot.slane %v1495, 4
  %v1497 = vadd.f32 %v1495, %v1496
  %v1498 = vrot.slane %v1497, 2
  %v1499 = vadd.f32 %v1497, %v1498
  %v1500 = vrot.slane %v1499, 1
  %v1501 = vadd.f32 %v1499, %v1500
  %v1502 = vmul.f32 %v1501, %v377
  %v1503 = vsub.f32 %v1491, %v1502
  %v1504 = vsub.f32 %v1492, %v1502
  %v1505 = vmul.f32 %v1503, %v1503
  %v1506 = vmul.f32 %v1504, %v1504
  %v1507 = vsel %vm367, %v1505, 0.0
  %v1508 = vsel %vm367, %v1506, 0.0
  %v1509 = vadd.f32 %v1507, %v1508
  %v1510 = vrot.slane %v1509, 4
  %v1511 = vadd.f32 %v1509, %v1510
  %v1512 = vrot.slane %v1511, 2
  %v1513 = vadd.f32 %v1511, %v1512
  %v1514 = vrot.slane %v1513, 1
  %v1515 = vadd.f32 %v1513, %v1514
  %v1516 = vmul.f32 %v1515, %v377
  %v1517 = vadd.f32 %v1516, 1e-05
  %v1518 = vrsqrt.pop %v1517
  %v1519 = vmul.f32 %v1503, %v1518
  %v1520 = vmul.f32 %v1504, %v1518
  %1522 = vset.pattern.permute.xlu0 0
  %1523 = vperm.xlu0 %1522, %v1046
  %v1524 = vpop.permute.xlu0 %1523
  %1527 = vset.pattern.permute.xlu0 0
  %1528 = vperm.xlu0 %1527, %v1047
  %v1529 = vpop.permute.xlu0 %1528
  %v1531 = vmul.f32 %v1519, %v1524
  %v1532 = vmul.f32 %v1520, %v1529
  %1534 = vset.pattern.permute.xlu0 0
  %1535 = vperm.xlu0 %1534, %v1048
  %v1536 = vpop.permute.xlu0 %1535
  %1539 = vset.pattern.permute.xlu0 0
  %1540 = vperm.xlu0 %1539, %v1049
  %v1541 = vpop.permute.xlu0 %1540
  %v1543 = vadd.f32 %v1531, %v1536
  %v1544 = vadd.f32 %v1532, %v1541
  %v1545 = vld [vmem:[%s43] sm:$0xff]
  %v1546 = vld [vmem:[%s43 + $0x8] sm:$0xff]
  %v1547 = vld [vmem:[%s43 + $0x10] sm:$0xff]
  %v1548 = vld [vmem:[%s43 + $0x18] sm:$0xff]
  %v1549 = vld [vmem:[%s45] sm:$0xff]
  %v1550 = vld [vmem:[%s45 + $0x8] sm:$0xff]
  %v1551 = vld [vmem:[%s47] sm:$0xff]
  %v1552 = vld [vmem:[%s47 + $0x8] sm:$0xff]
  %v1553 = vld [vmem:[%s49] sm:$0xff]
  %v1554 = vld [vmem:[%s49 + $0x8] sm:$0xff]
  %v1555 = vld [vmem:[%s51] sm:$0xff]
  %v1556 = vld [vmem:[%s51 + $0x8] sm:$0xff]
  %v1557 = vld [vmem:[%s53] sm:$0xff]
  %v1558 = vld [vmem:[%s53 + $0x8] sm:$0xff]
  %v1559 = vld [vmem:[%s55] sm:$0xff]
  %v1560 = vld [vmem:[%s55 + $0x8] sm:$0xff]
  %v1561 = vld [vmem:[%s57] sm:$0xff]
  %v1562 = vld [vmem:[%s57 + $0x8] sm:$0xff]
  %v1564 = vsel %vm406, %v1545, 0
  %v1567 = vsel %vm406, %v1546, 0
  %v1570 = vsel %vm406, %v1547, 0
  %v1573 = vsel %vm406, %v1548, 0
  %1575 = vmatprep.subr.mxu0 0.0
  %1576 = vmatpush1.msra.mxu0 %v480
  %1577 = vmatprep.subr.mxu0 0.0
  %1578 = vmatpush1.msra.mxu0 %v485
  %1579 = vmatprep.subr.mxu0 0.0
  %1580 = vmatpush1.msra.mxu0 0.0
  %1581 = vmatprep.subr.mxu0 0.0
  %1582 = vmatpush1.msra.mxu0 0.0
  %1583 = vmatprep.subr.mxu0 0.0
  %1584 = vmatpush1.msra.mxu0 0.0
  %1585 = vmatprep.subr.mxu0 0.0
  %1586 = vmatpush1.msra.mxu0 0.0
  %1587 = vmatprep.subr.mxu0 0.0
  %1588 = vmatpush1.msra.mxu0 0.0
  %1589 = vmatprep.subr.mxu0 0.0
  %1590 = vmatpush1.msra.mxu0 0.0
  %1591 = vmatprep.subr.mxu0 0.0
  %1592 = vmatpush1.msra.mxu0 0.0
  %1593 = vmatprep.subr.mxu0 0.0
  %1594 = vmatpush1.msra.mxu0 0.0
  %1595 = vmatprep.subr.mxu0 0.0
  %1596 = vmatpush1.msra.mxu0 0.0
  %1597 = vmatprep.subr.mxu0 0.0
  %1598 = vmatpush1.msra.mxu0 0.0
  %1599 = vmatprep.subr.mxu0 0.0
  %1600 = vmatpush1.msra.mxu0 0.0
  %1601 = vmatprep.subr.mxu0 0.0
  %1602 = vmatpush1.msra.mxu0 0.0
  %1603 = vmatprep.subr.mxu0 0.0
  %1604 = vmatpush1.msra.mxu0 0.0
  %1605 = vmatprep.subr.mxu0 0.0
  %1606 = vmatpush1.msra.mxu0 0.0
  %1607 = vmatprep.subr.mxu0 0.0
  %1608 = vmatpush1.msra.mxu0 0.0
  %1609 = vmatprep.subr.mxu0 0.0
  %1610 = vmatpush1.msra.mxu0 0.0
  %1611 = vmatprep.subr.mxu0 0.0
  %1612 = vmatpush1.msra.mxu0 0.0
  %1613 = vmatprep.subr.mxu0 0.0
  %1614 = vmatpush1.msra.mxu0 0.0
  %1615 = vmatprep.subr.mxu0 0.0
  %1616 = vmatpush1.msra.mxu0 0.0
  %1617 = vmatprep.subr.mxu0 0.0
  %1618 = vmatpush1.msra.mxu0 0.0
  %1619 = vmatprep.subr.mxu0 0.0
  %1620 = vmatpush1.msra.mxu0 0.0
  %1621 = vmatprep.subr.mxu0 0.0
  %1622 = vmatpush1.msra.mxu0 0.0
  %1623 = vmatprep.subr.mxu0 0.0
  %1624 = vmatpush1.msra.mxu0 0.0
  %1625 = vmatprep.subr.mxu0 0.0
  %1626 = vmatpush1.msra.mxu0 0.0
  %1627 = vmatprep.subr.mxu0 0.0
  %1628 = vmatpush1.msra.mxu0 0.0
  %1629 = vmatprep.subr.mxu0 0.0
  %1630 = vmatpush1.msra.mxu0 0.0
  %1631 = vmatprep.subr.mxu0 0.0
  %1632 = vmatpush1.msra.mxu0 0.0
  %1633 = vmatprep.subr.mxu0 0.0
  %1634 = vmatpush1.msra.mxu0 0.0
  %1635 = vmatprep.subr.mxu0 0.0
  %1636 = vmatpush1.msra.mxu0 0.0
  %1637 = vmatprep.subr.mxu0 0.0
  %1638 = vmatpush1.msra.mxu0 0.0
  %1639 = vmatprep.mubr.f32.mxu0 0.0
  %1640 = vmatmul.mubr.f32.gmra.mrb[0].mxu0 %v1564
  %v1641 = vpop.f32.mrb[0].mxu0
  %v1642 = vadd.f32 0.0, %v1641
  %v1643 = vpop.f32.mrb[0].mxu0
  %1644 = vmatprep.mubr.f32.mxu0 0.0
  %1645 = vmatmul.mubr.f32.gmra.mrb[0].mxu0 %v1567
  %v1646 = vpop.f32.mrb[0].mxu0
  %v1647 = vadd.f32 0.0, %v1646
  %v1648 = vpop.f32.mrb[0].mxu0
  %1649 = vmatprep.mubr.f32.mxu0 0.0
  %1650 = vmatmul.mubr.f32.gmra.mrb[0].mxu0 %v1570
  %v1651 = vpop.f32.mrb[0].mxu0
  %v1652 = vadd.f32 0.0, %v1651
  %v1653 = vpop.f32.mrb[0].mxu0
  %1654 = vmatprep.mubr.f32.mxu0 0.0
  %1655 = vmatmul.mubr.f32.gmra.mrb[0].mxu0 %v1573
  %v1656 = vpop.f32.mrb[0].mxu0
  %v1657 = vadd.f32 0.0, %v1656
  %v1658 = vpop.f32.mrb[0].mxu0
  %1659 = vdwg.mxu0
  %v1660 = vmul.f32 %v1642, %v609
  %v1661 = vmul.f32 %v1647, %v609
  %v1662 = vmul.f32 %v1652, %v609
  %v1663 = vmul.f32 %v1657, %v609
  %v1664 = vsub.f32 %v1660, %v621
  %v1665 = vsub.f32 %v1661, %v621
  %v1666 = vsub.f32 %v1662, %v621
  %v1667 = vsub.f32 %v1663, %v621
  %v1668 = vsel %vm367, %v1664, -inf
  %1669 = vmax.xlane.f32.xlu0 %v1668
  %v1670 = vpop.xlane.xlu0 %1669
  %v1671 = vsel %vm367, %v1665, -inf
  %1672 = vmax.xlane.f32.xlu0 %v1671
  %v1673 = vpop.xlane.xlu0 %1672
  %v1674 = vsel %vm367, %v1666, -inf
  %1675 = vmax.xlane.f32.xlu0 %v1674
  %v1676 = vpop.xlane.xlu0 %1675
  %v1677 = vsel %vm367, %v1667, -inf
  %1678 = vmax.xlane.f32.xlu0 %v1677
  %v1679 = vpop.xlane.xlu0 %1678
  %v1680 = vmul.f32 %v1670, %v609
  %v1681 = vmul.f32 %v1673, %v609
  %v1682 = vmul.f32 %v1676, %v609
  %v1683 = vmul.f32 %v1679, %v609
  %v1684 = vmul.f32 %v1642, %v647
  %v1685 = vmul.f32 %v1647, %v647
  %v1686 = vmul.f32 %v1652, %v647
  %v1687 = vmul.f32 %v1657, %v647
  %v1688 = vsub.f32 %v1684, %v659
  %v1689 = vsub.f32 %v1685, %v659
  %v1690 = vsub.f32 %v1686, %v659
  %v1691 = vsub.f32 %v1687, %v659
  %v1692 = vsel %vm367, %v1688, -inf
  %1693 = vmax.xlane.f32.xlu0 %v1692
  %v1694 = vpop.xlane.xlu0 %1693
  %v1695 = vsel %vm367, %v1689, -inf
  %1696 = vmax.xlane.f32.xlu0 %v1695
  %v1697 = vpop.xlane.xlu0 %1696
  %v1698 = vsel %vm367, %v1690, -inf
  %1699 = vmax.xlane.f32.xlu0 %v1698
  %v1700 = vpop.xlane.xlu0 %1699
  %v1701 = vsel %vm367, %v1691, -inf
  %1702 = vmax.xlane.f32.xlu0 %v1701
  %v1703 = vpop.xlane.xlu0 %1702
  %v1704 = vmul.f32 %v1694, %v647
  %v1705 = vmul.f32 %v1697, %v647
  %v1706 = vmul.f32 %v1700, %v647
  %v1707 = vmul.f32 %v1703, %v647
  %v1708 = vadd.f32 %v1680, %v1704
  %v1709 = vadd.f32 %v1681, %v1705
  %v1710 = vadd.f32 %v1682, %v1706
  %v1711 = vadd.f32 %v1683, %v1707
  %v1712 = vsub.f32 %v1642, %v1708
  %v1713 = vsub.f32 %v1647, %v1709
  %v1714 = vsub.f32 %v1652, %v1710
  %v1715 = vsub.f32 %v1657, %v1711
  %v1716 = vmul.f32 %v1712, 1.442695
  %v1717 = vpow.pop %v1716
  %v1718 = vmul.f32 %v1713, 1.442695
  %v1719 = vpow.pop %v1718
  %v1720 = vmul.f32 %v1714, 1.442695
  %v1721 = vpow.pop %v1720
  %v1722 = vmul.f32 %v1715, 1.442695
  %v1723 = vpow.pop %v1722
  %v1724 = vmul.f32 %v1717, %v609
  %v1725 = vmul.f32 %v1719, %v609
  %v1726 = vmul.f32 %v1721, %v609
  %v1727 = vmul.f32 %v1723, %v609
  %v1728 = vsel %vm367, %v1724, 0.0
  %1729 = vadd.xlane.f32.xlu0 %v1728
  %v1730 = vpop.xlane.xlu0 %1729
  %v1731 = vsel %vm367, %v1725, 0.0
  %1732 = vadd.xlane.f32.xlu0 %v1731
  %v1733 = vpop.xlane.xlu0 %1732
  %v1734 = vsel %vm367, %v1726, 0.0
  %1735 = vadd.xlane.f32.xlu0 %v1734
  %v1736 = vpop.xlane.xlu0 %1735
  %v1737 = vsel %vm367, %v1727, 0.0
  %1738 = vadd.xlane.f32.xlu0 %v1737
  %v1739 = vpop.xlane.xlu0 %1738
  %v1740 = vmul.f32 %v1730, %v609
  %v1741 = vmul.f32 %v1733, %v609
  %v1742 = vmul.f32 %v1736, %v609
  %v1743 = vmul.f32 %v1739, %v609
  %v1744 = vmul.f32 %v1717, %v647
  %v1745 = vmul.f32 %v1719, %v647
  %v1746 = vmul.f32 %v1721, %v647
  %v1747 = vmul.f32 %v1723, %v647
  %v1748 = vsel %vm367, %v1744, 0.0
  %1749 = vadd.xlane.f32.xlu0 %v1748
  %v1750 = vpop.xlane.xlu0 %1749
  %v1751 = vsel %vm367, %v1745, 0.0
  %1752 = vadd.xlane.f32.xlu0 %v1751
  %v1753 = vpop.xlane.xlu0 %1752
  %v1754 = vsel %vm367, %v1746, 0.0
  %1755 = vadd.xlane.f32.xlu0 %v1754
  %v1756 = vpop.xlane.xlu0 %1755
  %v1757 = vsel %vm367, %v1747, 0.0
  %1758 = vadd.xlane.f32.xlu0 %v1757
  %v1759 = vpop.xlane.xlu0 %1758
  %v1760 = vmul.f32 %v1750, %v647
  %v1761 = vmul.f32 %v1753, %v647
  %v1762 = vmul.f32 %v1756, %v647
  %v1763 = vmul.f32 %v1759, %v647
  %v1764 = vadd.f32 %v1740, %v1760
  %v1765 = vadd.f32 %v1741, %v1761
  %v1766 = vadd.f32 %v1742, %v1762
  %v1767 = vadd.f32 %v1743, %v1763
  %v1768 = vrcp.pop %v1764
  %v1769 = vrcp.pop %v1765
  %v1770 = vrcp.pop %v1766
  %v1771 = vrcp.pop %v1767
  %v1772 = vmul.f32 %v1717, %v1768
  %v1773 = vmul.f32 %v1719, %v1769
  %v1774 = vmul.f32 %v1721, %v1770
  %v1775 = vmul.f32 %v1723, %v1771
  %v1777 = vsel %vm749, %v1549, 0
  %v1780 = vsel %vm749, %v1550, 0
  %1782 = vmatprep.subr.mxu0 0.0
  %1783 = vmatpush1.msra.mxu0 %v1772
  %1784 = vmatprep.subr.mxu0 0.0
  %1785 = vmatpush1.msra.mxu0 %v1773
  %1786 = vmatprep.subr.mxu0 0.0
  %1787 = vmatpush1.msra.mxu0 %v1774
  %1788 = vmatprep.subr.mxu0 0.0
  %1789 = vmatpush1.msra.mxu0 %v1775
  %1790 = vmatprep.subr.mxu0 0.0
  %1791 = vmatpush1.msra.mxu0 0.0
  %1792 = vmatprep.subr.mxu0 0.0
  %1793 = vmatpush1.msra.mxu0 0.0
  %1794 = vmatprep.subr.mxu0 0.0
  %1795 = vmatpush1.msra.mxu0 0.0
  %1796 = vmatprep.subr.mxu0 0.0
  %1797 = vmatpush1.msra.mxu0 0.0
  %1798 = vmatprep.subr.mxu0 0.0
  %1799 = vmatpush1.msra.mxu0 0.0
  %1800 = vmatprep.subr.mxu0 0.0
  %1801 = vmatpush1.msra.mxu0 0.0
  %1802 = vmatprep.subr.mxu0 0.0
  %1803 = vmatpush1.msra.mxu0 0.0
  %1804 = vmatprep.subr.mxu0 0.0
  %1805 = vmatpush1.msra.mxu0 0.0
  %1806 = vmatprep.subr.mxu0 0.0
  %1807 = vmatpush1.msra.mxu0 0.0
  %1808 = vmatprep.subr.mxu0 0.0
  %1809 = vmatpush1.msra.mxu0 0.0
  %1810 = vmatprep.subr.mxu0 0.0
  %1811 = vmatpush1.msra.mxu0 0.0
  %1812 = vmatprep.subr.mxu0 0.0
  %1813 = vmatpush1.msra.mxu0 0.0
  %1814 = vmatprep.subr.mxu0 0.0
  %1815 = vmatpush1.msra.mxu0 0.0
  %1816 = vmatprep.subr.mxu0 0.0
  %1817 = vmatpush1.msra.mxu0 0.0
  %1818 = vmatprep.subr.mxu0 0.0
  %1819 = vmatpush1.msra.mxu0 0.0
  %1820 = vmatprep.subr.mxu0 0.0
  %1821 = vmatpush1.msra.mxu0 0.0
  %1822 = vmatprep.subr.mxu0 0.0
  %1823 = vmatpush1.msra.mxu0 0.0
  %1824 = vmatprep.subr.mxu0 0.0
  %1825 = vmatpush1.msra.mxu0 0.0
  %1826 = vmatprep.subr.mxu0 0.0
  %1827 = vmatpush1.msra.mxu0 0.0
  %1828 = vmatprep.subr.mxu0 0.0
  %1829 = vmatpush1.msra.mxu0 0.0
  %1830 = vmatprep.subr.mxu0 0.0
  %1831 = vmatpush1.msra.mxu0 0.0
  %1832 = vmatprep.subr.mxu0 0.0
  %1833 = vmatpush1.msra.mxu0 0.0
  %1834 = vmatprep.subr.mxu0 0.0
  %1835 = vmatpush1.msra.mxu0 0.0
  %1836 = vmatprep.subr.mxu0 0.0
  %1837 = vmatpush1.msra.mxu0 0.0
  %1838 = vmatprep.subr.mxu0 0.0
  %1839 = vmatpush1.msra.mxu0 0.0
  %1840 = vmatprep.subr.mxu0 0.0
  %1841 = vmatpush1.msra.mxu0 0.0
  %1842 = vmatprep.subr.mxu0 0.0
  %1843 = vmatpush1.msra.mxu0 0.0
  %1844 = vmatprep.subr.mxu0 0.0
  %1845 = vmatpush1.msra.mxu0 0.0
  %1846 = vmatprep.mubr.f32.mxu0 0.0
  %1847 = vmatmul.mubr.f32.gmra.mrb[0].mxu0 %v1777
  %v1848 = vpop.f32.mrb[0].mxu0
  %v1849 = vadd.f32 0.0, %v1848
  %v1850 = vpop.f32.mrb[0].mxu0
  %1851 = vmatprep.mubr.f32.mxu0 0.0
  %1852 = vmatmul.mubr.f32.gmra.mrb[0].mxu0 %v1780
  %v1853 = vpop.f32.mrb[0].mxu0
  %v1854 = vadd.f32 0.0, %v1853
  %v1855 = vpop.f32.mrb[0].mxu0
  %1856 = vdwg.mxu0
  %v1857 = vadd.f32 %v480, %v1849
  %v1858 = vadd.f32 %v485, %v1854
  %v1859 = vsel %vm367, %v1857, 0.0
  %v1860 = vsel %vm367, %v1858, 0.0
  %v1861 = vadd.f32 %v1859, %v1860
  %v1862 = vrot.slane %v1861, 4
  %v1863 = vadd.f32 %v1861, %v1862
  %v1864 = vrot.slane %v1863, 2
  %v1865 = vadd.f32 %v1863, %v1864
  %v1866 = vrot.slane %v1865, 1
  %v1867 = vadd.f32 %v1865, %v1866
  %v1868 = vmul.f32 %v1867, %v377
  %v1869 = vsub.f32 %v1857, %v1868
  %v1870 = vsub.f32 %v1858, %v1868
  %v1871 = vmul.f32 %v1869, %v1869
  %v1872 = vmul.f32 %v1870, %v1870
  %v1873 = vsel %vm367, %v1871, 0.0
  %v1874 = vsel %vm367, %v1872, 0.0
  %v1875 = vadd.f32 %v1873, %v1874
  %v1876 = vrot.slane %v1875, 4
  %v1877 = vadd.f32 %v1875, %v1876
  %v1878 = vrot.slane %v1877, 2
  %v1879 = vadd.f32 %v1877, %v1878
  %v1880 = vrot.slane %v1879, 1
  %v1881 = vadd.f32 %v1879, %v1880
  %v1882 = vmul.f32 %v1881, %v377
  %v1883 = vadd.f32 %v1882, 1e-05
  %v1884 = vrsqrt.pop %v1883
  %v1885 = vmul.f32 %v1869, %v1884
  %v1886 = vmul.f32 %v1870, %v1884
  %1888 = vset.pattern.permute.xlu0 0
  %1889 = vperm.xlu0 %1888, %v1555
  %v1890 = vpop.permute.xlu0 %1889
  %1893 = vset.pattern.permute.xlu0 0
  %1894 = vperm.xlu0 %1893, %v1556
  %v1895 = vpop.permute.xlu0 %1894
  %v1897 = vmul.f32 %v1885, %v1890
  %v1898 = vmul.f32 %v1886, %v1895
  %1900 = vset.pattern.permute.xlu0 0
  %1901 = vperm.xlu0 %1900, %v1557
  %v1902 = vpop.permute.xlu0 %1901
  %1905 = vset.pattern.permute.xlu0 0
  %1906 = vperm.xlu0 %1905, %v1558
  %v1907 = vpop.permute.xlu0 %1906
  %v1909 = vadd.f32 %v1897, %v1902
  %v1910 = vadd.f32 %v1898, %v1907
  %v1912 = vsel %vm406, %v1551, 0
  %v1915 = vsel %vm406, %v1552, 0
  %1917 = vmatprep.subr.mxu0 0.0
  %1918 = vmatpush1.msra.mxu0 %v1909
  %1919 = vmatprep.subr.mxu0 0.0
  %1920 = vmatpush1.msra.mxu0 %v1910
  %1921 = vmatprep.subr.mxu0 0.0
  %1922 = vmatpush1.msra.mxu0 0.0
  %1923 = vmatprep.subr.mxu0 0.0
  %1924 = vmatpush1.msra.mxu0 0.0
  %1925 = vmatprep.subr.mxu0 0.0
  %1926 = vmatpush1.msra.mxu0 0.0
  %1927 = vmatprep.subr.mxu0 0.0
  %1928 = vmatpush1.msra.mxu0 0.0
  %1929 = vmatprep.subr.mxu0 0.0
  %1930 = vmatpush1.msra.mxu0 0.0
  %1931 = vmatprep.subr.mxu0 0.0
  %1932 = vmatpush1.msra.mxu0 0.0
  %1933 = vmatprep.subr.mxu0 0.0
  %1934 = vmatpush1.msra.mxu0 0.0
  %1935 = vmatprep.subr.mxu0 0.0
  %1936 = vmatpush1.msra.mxu0 0.0
  %1937 = vmatprep.subr.mxu0 0.0
  %1938 = vmatpush1.msra.mxu0 0.0
  %1939 = vmatprep.subr.mxu0 0.0
  %1940 = vmatpush1.msra.mxu0 0.0
  %1941 = vmatprep.subr.mxu0 0.0
  %1942 = vmatpush1.msra.mxu0 0.0
  %1943 = vmatprep.subr.mxu0 0.0
  %1944 = vmatpush1.msra.mxu0 0.0
  %1945 = vmatprep.subr.mxu0 0.0
  %1946 = vmatpush1.msra.mxu0 0.0
  %1947 = vmatprep.subr.mxu0 0.0
  %1948 = vmatpush1.msra.mxu0 0.0
  %1949 = vmatprep.subr.mxu0 0.0
  %1950 = vmatpush1.msra.mxu0 0.0
  %1951 = vmatprep.subr.mxu0 0.0
  %1952 = vmatpush1.msra.mxu0 0.0
  %1953 = vmatprep.subr.mxu0 0.0
  %1954 = vmatpush1.msra.mxu0 0.0
  %1955 = vmatprep.subr.mxu0 0.0
  %1956 = vmatpush1.msra.mxu0 0.0
  %1957 = vmatprep.subr.mxu0 0.0
  %1958 = vmatpush1.msra.mxu0 0.0
  %1959 = vmatprep.subr.mxu0 0.0
  %1960 = vmatpush1.msra.mxu0 0.0
  %1961 = vmatprep.subr.mxu0 0.0
  %1962 = vmatpush1.msra.mxu0 0.0
  %1963 = vmatprep.subr.mxu0 0.0
  %1964 = vmatpush1.msra.mxu0 0.0
  %1965 = vmatprep.subr.mxu0 0.0
  %1966 = vmatpush1.msra.mxu0 0.0
  %1967 = vmatprep.subr.mxu0 0.0
  %1968 = vmatpush1.msra.mxu0 0.0
  %1969 = vmatprep.subr.mxu0 0.0
  %1970 = vmatpush1.msra.mxu0 0.0
  %1971 = vmatprep.subr.mxu0 0.0
  %1972 = vmatpush1.msra.mxu0 0.0
  %1973 = vmatprep.subr.mxu0 0.0
  %1974 = vmatpush1.msra.mxu0 0.0
  %1975 = vmatprep.subr.mxu0 0.0
  %1976 = vmatpush1.msra.mxu0 0.0
  %1977 = vmatprep.subr.mxu0 0.0
  %1978 = vmatpush1.msra.mxu0 0.0
  %1979 = vmatprep.subr.mxu0 0.0
  %1980 = vmatpush1.msra.mxu0 0.0
  %1981 = vmatprep.mubr.f32.mxu0 0.0
  %1982 = vmatmul.mubr.f32.gmra.mrb[0].mxu0 %v1912
  %v1983 = vpop.f32.mrb[0].mxu0
  %v1984 = vadd.f32 0.0, %v1983
  %v1985 = vpop.f32.mrb[0].mxu0
  %1986 = vmatprep.mubr.f32.mxu0 0.0
  %1987 = vmatmul.mubr.f32.gmra.mrb[0].mxu0 %v1915
  %v1988 = vpop.f32.mrb[0].mxu0
  %v1989 = vadd.f32 0.0, %v1988
  %v1990 = vpop.f32.mrb[0].mxu0
  %1991 = vdwg.mxu0
  %v1992 = vadd.f32 %v1909, %v1984
  %v1993 = vadd.f32 %v1910, %v1989
  %1995 = vset.pattern.permute.xlu0 0
  %1996 = vperm.xlu0 %1995, %v1553
  %v1997 = vpop.permute.xlu0 %1996
  %2000 = vset.pattern.permute.xlu0 0
  %2001 = vperm.xlu0 %2000, %v1554
  %v2002 = vpop.permute.xlu0 %2001
  %v2004 = vadd.f32 %v1992, %v1997
  %v2005 = vadd.f32 %v1993, %v2002
  %v2006 = vsel %vm367, %v2004, 0.0
  %v2007 = vsel %vm367, %v2005, 0.0
  %v2008 = vadd.f32 %v2006, %v2007
  %v2009 = vrot.slane %v2008, 4
  %v2010 = vadd.f32 %v2008, %v2009
  %v2011 = vrot.slane %v2010, 2
  %v2012 = vadd.f32 %v2010, %v2011
  %v2013 = vrot.slane %v2012, 1
  %v2014 = vadd.f32 %v2012, %v2013
  %v2015 = vmul.f32 %v2014, %v377
  %v2016 = vsub.f32 %v2004, %v2015
  %v2017 = vsub.f32 %v2005, %v2015
  %v2018 = vmul.f32 %v2016, %v2016
  %v2019 = vmul.f32 %v2017, %v2017
  %v2020 = vsel %vm367, %v2018, 0.0
  %v2021 = vsel %vm367, %v2019, 0.0
  %v2022 = vadd.f32 %v2020, %v2021
  %v2023 = vrot.slane %v2022, 4
  %v2024 = vadd.f32 %v2022, %v2023
  %v2025 = vrot.slane %v2024, 2
  %v2026 = vadd.f32 %v2024, %v2025
  %v2027 = vrot.slane %v2026, 1
  %v2028 = vadd.f32 %v2026, %v2027
  %v2029 = vmul.f32 %v2028, %v377
  %v2030 = vadd.f32 %v2029, 1e-05
  %v2031 = vrsqrt.pop %v2030
  %v2032 = vmul.f32 %v2016, %v2031
  %v2033 = vmul.f32 %v2017, %v2031
  %2035 = vset.pattern.permute.xlu0 0
  %2036 = vperm.xlu0 %2035, %v1559
  %v2037 = vpop.permute.xlu0 %2036
  %2040 = vset.pattern.permute.xlu0 0
  %2041 = vperm.xlu0 %2040, %v1560
  %v2042 = vpop.permute.xlu0 %2041
  %v2044 = vmul.f32 %v2032, %v2037
  %v2045 = vmul.f32 %v2033, %v2042
  %2047 = vset.pattern.permute.xlu0 0
  %2048 = vperm.xlu0 %2047, %v1561
  %v2049 = vpop.permute.xlu0 %2048
  %2052 = vset.pattern.permute.xlu0 0
  %2053 = vperm.xlu0 %2052, %v1562
  %v2054 = vpop.permute.xlu0 %2053
  %v2056 = vadd.f32 %v2044, %v2049
  %v2057 = vadd.f32 %v2045, %v2054
  %v2058 = vld [vmem:[%s59] sm:$0xff]
  %v2059 = vld [vmem:[%s59 + $0x8] sm:$0xff]
  %v2060 = vld [vmem:[%s59 + $0x10] sm:$0xff]
  %v2061 = vld [vmem:[%s59 + $0x18] sm:$0xff]
  %v2062 = vld [vmem:[%s61] sm:$0xff]
  %v2063 = vld [vmem:[%s61 + $0x8] sm:$0xff]
  %v2064 = vld [vmem:[%s63] sm:$0xff]
  %v2065 = vld [vmem:[%s63 + $0x8] sm:$0xff]
  %v2066 = vld [vmem:[%s65] sm:$0xff]
  %v2067 = vld [vmem:[%s65 + $0x8] sm:$0xff]
  %v2068 = vld [vmem:[%s67] sm:$0xff]
  %v2069 = vld [vmem:[%s67 + $0x8] sm:$0xff]
  %v2070 = vld [vmem:[%s69] sm:$0xff]
  %v2071 = vld [vmem:[%s69 + $0x8] sm:$0xff]
  %v2072 = vld [vmem:[%s71] sm:$0xff]
  %v2073 = vld [vmem:[%s71 + $0x8] sm:$0xff]
  %v2074 = vld [vmem:[%s73] sm:$0xff]
  %v2075 = vld [vmem:[%s73 + $0x8] sm:$0xff]
  %v2077 = vsel %vm406, %v2058, 0
  %v2080 = vsel %vm406, %v2059, 0
  %v2083 = vsel %vm406, %v2060, 0
  %v2086 = vsel %vm406, %v2061, 0
  %2088 = vmatprep.subr.mxu0 0.0
  %2089 = vmatpush1.msra.mxu0 %v2056
  %2090 = vmatprep.subr.mxu0 0.0
  %2091 = vmatpush1.msra.mxu0 %v2057
  %2092 = vmatprep.subr.mxu0 0.0
  %2093 = vmatpush1.msra.mxu0 0.0
  %2094 = vmatprep.subr.mxu0 0.0
  %2095 = vmatpush1.msra.mxu0 0.0
  %2096 = vmatprep.subr.mxu0 0.0
  %2097 = vmatpush1.msra.mxu0 0.0
  %2098 = vmatprep.subr.mxu0 0.0
  %2099 = vmatpush1.msra.mxu0 0.0
  %2100 = vmatprep.subr.mxu0 0.0
  %2101 = vmatpush1.msra.mxu0 0.0
  %2102 = vmatprep.subr.mxu0 0.0
  %2103 = vmatpush1.msra.mxu0 0.0
  %2104 = vmatprep.subr.mxu0 0.0
  %2105 = vmatpush1.msra.mxu0 0.0
  %2106 = vmatprep.subr.mxu0 0.0
  %2107 = vmatpush1.msra.mxu0 0.0
  %2108 = vmatprep.subr.mxu0 0.0
  %2109 = vmatpush1.msra.mxu0 0.0
  %2110 = vmatprep.subr.mxu0 0.0
  %2111 = vmatpush1.msra.mxu0 0.0
  %2112 = vmatprep.subr.mxu0 0.0
  %2113 = vmatpush1.msra.mxu0 0.0
  %2114 = vmatprep.subr.mxu0 0.0
  %2115 = vmatpush1.msra.mxu0 0.0
  %2116 = vmatprep.subr.mxu0 0.0
  %2117 = vmatpush1.msra.mxu0 0.0
  %2118 = vmatprep.subr.mxu0 0.0
  %2119 = vmatpush1.msra.mxu0 0.0
  %2120 = vmatprep.subr.mxu0 0.0
  %2121 = vmatpush1.msra.mxu0 0.0
  %2122 = vmatprep.subr.mxu0 0.0
  %2123 = vmatpush1.msra.mxu0 0.0
  %2124 = vmatprep.subr.mxu0 0.0
  %2125 = vmatpush1.msra.mxu0 0.0
  %2126 = vmatprep.subr.mxu0 0.0
  %2127 = vmatpush1.msra.mxu0 0.0
  %2128 = vmatprep.subr.mxu0 0.0
  %2129 = vmatpush1.msra.mxu0 0.0
  %2130 = vmatprep.subr.mxu0 0.0
  %2131 = vmatpush1.msra.mxu0 0.0
  %2132 = vmatprep.subr.mxu0 0.0
  %2133 = vmatpush1.msra.mxu0 0.0
  %2134 = vmatprep.subr.mxu0 0.0
  %2135 = vmatpush1.msra.mxu0 0.0
  %2136 = vmatprep.subr.mxu0 0.0
  %2137 = vmatpush1.msra.mxu0 0.0
  %2138 = vmatprep.subr.mxu0 0.0
  %2139 = vmatpush1.msra.mxu0 0.0
  %2140 = vmatprep.subr.mxu0 0.0
  %2141 = vmatpush1.msra.mxu0 0.0
  %2142 = vmatprep.subr.mxu0 0.0
  %2143 = vmatpush1.msra.mxu0 0.0
  %2144 = vmatprep.subr.mxu0 0.0
  %2145 = vmatpush1.msra.mxu0 0.0
  %2146 = vmatprep.subr.mxu0 0.0
  %2147 = vmatpush1.msra.mxu0 0.0
  %2148 = vmatprep.subr.mxu0 0.0
  %2149 = vmatpush1.msra.mxu0 0.0
  %2150 = vmatprep.subr.mxu0 0.0
  %2151 = vmatpush1.msra.mxu0 0.0
  %2152 = vmatprep.mubr.f32.mxu0 0.0
  %2153 = vmatmul.mubr.f32.gmra.mrb[0].mxu0 %v2077
  %v2154 = vpop.f32.mrb[0].mxu0
  %v2155 = vadd.f32 0.0, %v2154
  %v2156 = vpop.f32.mrb[0].mxu0
  %2157 = vmatprep.mubr.f32.mxu0 0.0
  %2158 = vmatmul.mubr.f32.gmra.mrb[0].mxu0 %v2080
  %v2159 = vpop.f32.mrb[0].mxu0
  %v2160 = vadd.f32 0.0, %v2159
  %v2161 = vpop.f32.mrb[0].mxu0
  %2162 = vmatprep.mubr.f32.mxu0 0.0
  %2163 = vmatmul.mubr.f32.gmra.mrb[0].mxu0 %v2083
  %v2164 = vpop.f32.mrb[0].mxu0
  %v2165 = vadd.f32 0.0, %v2164
  %v2166 = vpop.f32.mrb[0].mxu0
  %2167 = vmatprep.mubr.f32.mxu0 0.0
  %2168 = vmatmul.mubr.f32.gmra.mrb[0].mxu0 %v2086
  %v2169 = vpop.f32.mrb[0].mxu0
  %v2170 = vadd.f32 0.0, %v2169
  %v2171 = vpop.f32.mrb[0].mxu0
  %2172 = vdwg.mxu0
  %v2173 = vmul.f32 %v2155, %v609
  %v2174 = vmul.f32 %v2160, %v609
  %v2175 = vmul.f32 %v2165, %v609
  %v2176 = vmul.f32 %v2170, %v609
  %v2177 = vsub.f32 %v2173, %v621
  %v2178 = vsub.f32 %v2174, %v621
  %v2179 = vsub.f32 %v2175, %v621
  %v2180 = vsub.f32 %v2176, %v621
  %v2181 = vsel %vm367, %v2177, -inf
  %2182 = vmax.xlane.f32.xlu0 %v2181
  %v2183 = vpop.xlane.xlu0 %2182
  %v2184 = vsel %vm367, %v2178, -inf
  %2185 = vmax.xlane.f32.xlu0 %v2184
  %v2186 = vpop.xlane.xlu0 %2185
  %v2187 = vsel %vm367, %v2179, -inf
  %2188 = vmax.xlane.f32.xlu0 %v2187
  %v2189 = vpop.xlane.xlu0 %2188
  %v2190 = vsel %vm367, %v2180, -inf
  %2191 = vmax.xlane.f32.xlu0 %v2190
  %v2192 = vpop.xlane.xlu0 %2191
  %v2193 = vmul.f32 %v2183, %v609
  %v2194 = vmul.f32 %v2186, %v609
  %v2195 = vmul.f32 %v2189, %v609
  %v2196 = vmul.f32 %v2192, %v609
  %v2197 = vmul.f32 %v2155, %v647
  %v2198 = vmul.f32 %v2160, %v647
  %v2199 = vmul.f32 %v2165, %v647
  %v2200 = vmul.f32 %v2170, %v647
  %v2201 = vsub.f32 %v2197, %v659
  %v2202 = vsub.f32 %v2198, %v659
  %v2203 = vsub.f32 %v2199, %v659
  %v2204 = vsub.f32 %v2200, %v659
  %v2205 = vsel %vm367, %v2201, -inf
  %2206 = vmax.xlane.f32.xlu0 %v2205
  %v2207 = vpop.xlane.xlu0 %2206
  %v2208 = vsel %vm367, %v2202, -inf
  %2209 = vmax.xlane.f32.xlu0 %v2208
  %v2210 = vpop.xlane.xlu0 %2209
  %v2211 = vsel %vm367, %v2203, -inf
  %2212 = vmax.xlane.f32.xlu0 %v2211
  %v2213 = vpop.xlane.xlu0 %2212
  %v2214 = vsel %vm367, %v2204, -inf
  %2215 = vmax.xlane.f32.xlu0 %v2214
  %v2216 = vpop.xlane.xlu0 %2215
  %v2217 = vmul.f32 %v2207, %v647
  %v2218 = vmul.f32 %v2210, %v647
  %v2219 = vmul.f32 %v2213, %v647
  %v2220 = vmul.f32 %v2216, %v647
  %v2221 = vadd.f32 %v2193, %v2217
  %v2222 = vadd.f32 %v2194, %v2218
  %v2223 = vadd.f32 %v2195, %v2219
  %v2224 = vadd.f32 %v2196, %v2220
  %v2225 = vsub.f32 %v2155, %v2221
  %v2226 = vsub.f32 %v2160, %v2222
  %v2227 = vsub.f32 %v2165, %v2223
  %v2228 = vsub.f32 %v2170, %v2224
  %v2229 = vmul.f32 %v2225, 1.442695
  %v2230 = vpow.pop %v2229
  %v2231 = vmul.f32 %v2226, 1.442695
  %v2232 = vpow.pop %v2231
  %v2233 = vmul.f32 %v2227, 1.442695
  %v2234 = vpow.pop %v2233
  %v2235 = vmul.f32 %v2228, 1.442695
  %v2236 = vpow.pop %v2235
  %v2237 = vmul.f32 %v2230, %v609
  %v2238 = vmul.f32 %v2232, %v609
  %v2239 = vmul.f32 %v2234, %v609
  %v2240 = vmul.f32 %v2236, %v609
  %v2241 = vsel %vm367, %v2237, 0.0
  %2242 = vadd.xlane.f32.xlu0 %v2241
  %v2243 = vpop.xlane.xlu0 %2242
  %v2244 = vsel %vm367, %v2238, 0.0
  %2245 = vadd.xlane.f32.xlu0 %v2244
  %v2246 = vpop.xlane.xlu0 %2245
  %v2247 = vsel %vm367, %v2239, 0.0
  %2248 = vadd.xlane.f32.xlu0 %v2247
  %v2249 = vpop.xlane.xlu0 %2248
  %v2250 = vsel %vm367, %v2240, 0.0
  %2251 = vadd.xlane.f32.xlu0 %v2250
  %v2252 = vpop.xlane.xlu0 %2251
  %v2253 = vmul.f32 %v2243, %v609
  %v2254 = vmul.f32 %v2246, %v609
  %v2255 = vmul.f32 %v2249, %v609
  %v2256 = vmul.f32 %v2252, %v609
  %v2257 = vmul.f32 %v2230, %v647
  %v2258 = vmul.f32 %v2232, %v647
  %v2259 = vmul.f32 %v2234, %v647
  %v2260 = vmul.f32 %v2236, %v647
  %v2261 = vsel %vm367, %v2257, 0.0
  %2262 = vadd.xlane.f32.xlu0 %v2261
  %v2263 = vpop.xlane.xlu0 %2262
  %v2264 = vsel %vm367, %v2258, 0.0
  %2265 = vadd.xlane.f32.xlu0 %v2264
  %v2266 = vpop.xlane.xlu0 %2265
  %v2267 = vsel %vm367, %v2259, 0.0
  %2268 = vadd.xlane.f32.xlu0 %v2267
  %v2269 = vpop.xlane.xlu0 %2268
  %v2270 = vsel %vm367, %v2260, 0.0
  %2271 = vadd.xlane.f32.xlu0 %v2270
  %v2272 = vpop.xlane.xlu0 %2271
  %v2273 = vmul.f32 %v2263, %v647
  %v2274 = vmul.f32 %v2266, %v647
  %v2275 = vmul.f32 %v2269, %v647
  %v2276 = vmul.f32 %v2272, %v647
  %v2277 = vadd.f32 %v2253, %v2273
  %v2278 = vadd.f32 %v2254, %v2274
  %v2279 = vadd.f32 %v2255, %v2275
  %v2280 = vadd.f32 %v2256, %v2276
  %v2281 = vrcp.pop %v2277
  %v2282 = vrcp.pop %v2278
  %v2283 = vrcp.pop %v2279
  %v2284 = vrcp.pop %v2280
  %v2285 = vmul.f32 %v2230, %v2281
  %v2286 = vmul.f32 %v2232, %v2282
  %v2287 = vmul.f32 %v2234, %v2283
  %v2288 = vmul.f32 %v2236, %v2284
  %v2290 = vsel %vm749, %v2062, 0
  %v2293 = vsel %vm749, %v2063, 0
  %2295 = vmatprep.subr.mxu0 0.0
  %2296 = vmatpush1.msra.mxu0 %v2285
  %2297 = vmatprep.subr.mxu0 0.0
  %2298 = vmatpush1.msra.mxu0 %v2286
  %2299 = vmatprep.subr.mxu0 0.0
  %2300 = vmatpush1.msra.mxu0 %v2287
  %2301 = vmatprep.subr.mxu0 0.0
  %2302 = vmatpush1.msra.mxu0 %v2288
  %2303 = vmatprep.subr.mxu0 0.0
  %2304 = vmatpush1.msra.mxu0 0.0
  %2305 = vmatprep.subr.mxu0 0.0
  %2306 = vmatpush1.msra.mxu0 0.0
  %2307 = vmatprep.subr.mxu0 0.0
  %2308 = vmatpush1.msra.mxu0 0.0
  %2309 = vmatprep.subr.mxu0 0.0
  %2310 = vmatpush1.msra.mxu0 0.0
  %2311 = vmatprep.subr.mxu0 0.0
  %2312 = vmatpush1.msra.mxu0 0.0
  %2313 = vmatprep.subr.mxu0 0.0
  %2314 = vmatpush1.msra.mxu0 0.0
  %2315 = vmatprep.subr.mxu0 0.0
  %2316 = vmatpush1.msra.mxu0 0.0
  %2317 = vmatprep.subr.mxu0 0.0
  %2318 = vmatpush1.msra.mxu0 0.0
  %2319 = vmatprep.subr.mxu0 0.0
  %2320 = vmatpush1.msra.mxu0 0.0
  %2321 = vmatprep.subr.mxu0 0.0
  %2322 = vmatpush1.msra.mxu0 0.0
  %2323 = vmatprep.subr.mxu0 0.0
  %2324 = vmatpush1.msra.mxu0 0.0
  %2325 = vmatprep.subr.mxu0 0.0
  %2326 = vmatpush1.msra.mxu0 0.0
  %2327 = vmatprep.subr.mxu0 0.0
  %2328 = vmatpush1.msra.mxu0 0.0
  %2329 = vmatprep.subr.mxu0 0.0
  %2330 = vmatpush1.msra.mxu0 0.0
  %2331 = vmatprep.subr.mxu0 0.0
  %2332 = vmatpush1.msra.mxu0 0.0
  %2333 = vmatprep.subr.mxu0 0.0
  %2334 = vmatpush1.msra.mxu0 0.0
  %2335 = vmatprep.subr.mxu0 0.0
  %2336 = vmatpush1.msra.mxu0 0.0
  %2337 = vmatprep.subr.mxu0 0.0
  %2338 = vmatpush1.msra.mxu0 0.0
  %2339 = vmatprep.subr.mxu0 0.0
  %2340 = vmatpush1.msra.mxu0 0.0
  %2341 = vmatprep.subr.mxu0 0.0
  %2342 = vmatpush1.msra.mxu0 0.0
  %2343 = vmatprep.subr.mxu0 0.0
  %2344 = vmatpush1.msra.mxu0 0.0
  %2345 = vmatprep.subr.mxu0 0.0
  %2346 = vmatpush1.msra.mxu0 0.0
  %2347 = vmatprep.subr.mxu0 0.0
  %2348 = vmatpush1.msra.mxu0 0.0
  %2349 = vmatprep.subr.mxu0 0.0
  %2350 = vmatpush1.msra.mxu0 0.0
  %2351 = vmatprep.subr.mxu0 0.0
  %2352 = vmatpush1.msra.mxu0 0.0
  %2353 = vmatprep.subr.mxu0 0.0
  %2354 = vmatpush1.msra.mxu0 0.0
  %2355 = vmatprep.subr.mxu0 0.0
  %2356 = vmatpush1.msra.mxu0 0.0
  %2357 = vmatprep.subr.mxu0 0.0
  %2358 = vmatpush1.msra.mxu0 0.0
  %2359 = vmatprep.mubr.f32.mxu0 0.0
  %2360 = vmatmul.mubr.f32.gmra.mrb[0].mxu0 %v2290
  %v2361 = vpop.f32.mrb[0].mxu0
  %v2362 = vadd.f32 0.0, %v2361
  %v2363 = vpop.f32.mrb[0].mxu0
  %2364 = vmatprep.mubr.f32.mxu0 0.0
  %2365 = vmatmul.mubr.f32.gmra.mrb[0].mxu0 %v2293
  %v2366 = vpop.f32.mrb[0].mxu0
  %v2367 = vadd.f32 0.0, %v2366
  %v2368 = vpop.f32.mrb[0].mxu0
  %2369 = vdwg.mxu0
  %v2370 = vadd.f32 %v2056, %v2362
  %v2371 = vadd.f32 %v2057, %v2367
  %v2372 = vsel %vm367, %v2370, 0.0
  %v2373 = vsel %vm367, %v2371, 0.0
  %v2374 = vadd.f32 %v2372, %v2373
  %v2375 = vrot.slane %v2374, 4
  %v2376 = vadd.f32 %v2374, %v2375
  %v2377 = vrot.slane %v2376, 2
  %v2378 = vadd.f32 %v2376, %v2377
  %v2379 = vrot.slane %v2378, 1
  %v2380 = vadd.f32 %v2378, %v2379
  %v2381 = vmul.f32 %v2380, %v377
  %v2382 = vsub.f32 %v2370, %v2381
  %v2383 = vsub.f32 %v2371, %v2381
  %v2384 = vmul.f32 %v2382, %v2382
  %v2385 = vmul.f32 %v2383, %v2383
  %v2386 = vsel %vm367, %v2384, 0.0
  %v2387 = vsel %vm367, %v2385, 0.0
  %v2388 = vadd.f32 %v2386, %v2387
  %v2389 = vrot.slane %v2388, 4
  %v2390 = vadd.f32 %v2388, %v2389
  %v2391 = vrot.slane %v2390, 2
  %v2392 = vadd.f32 %v2390, %v2391
  %v2393 = vrot.slane %v2392, 1
  %v2394 = vadd.f32 %v2392, %v2393
  %v2395 = vmul.f32 %v2394, %v377
  %v2396 = vadd.f32 %v2395, 1e-05
  %v2397 = vrsqrt.pop %v2396
  %v2398 = vmul.f32 %v2382, %v2397
  %v2399 = vmul.f32 %v2383, %v2397
  %2401 = vset.pattern.permute.xlu0 0
  %2402 = vperm.xlu0 %2401, %v2068
  %v2403 = vpop.permute.xlu0 %2402
  %2406 = vset.pattern.permute.xlu0 0
  %2407 = vperm.xlu0 %2406, %v2069
  %v2408 = vpop.permute.xlu0 %2407
  %v2410 = vmul.f32 %v2398, %v2403
  %v2411 = vmul.f32 %v2399, %v2408
  %2413 = vset.pattern.permute.xlu0 0
  %2414 = vperm.xlu0 %2413, %v2070
  %v2415 = vpop.permute.xlu0 %2414
  %2418 = vset.pattern.permute.xlu0 0
  %2419 = vperm.xlu0 %2418, %v2071
  %v2420 = vpop.permute.xlu0 %2419
  %v2422 = vadd.f32 %v2410, %v2415
  %v2423 = vadd.f32 %v2411, %v2420
  %v2425 = vsel %vm406, %v2064, 0
  %v2428 = vsel %vm406, %v2065, 0
  %2430 = vmatprep.subr.mxu0 0.0
  %2431 = vmatpush1.msra.mxu0 %v2422
  %2432 = vmatprep.subr.mxu0 0.0
  %2433 = vmatpush1.msra.mxu0 %v2423
  %2434 = vmatprep.subr.mxu0 0.0
  %2435 = vmatpush1.msra.mxu0 0.0
  %2436 = vmatprep.subr.mxu0 0.0
  %2437 = vmatpush1.msra.mxu0 0.0
  %2438 = vmatprep.subr.mxu0 0.0
  %2439 = vmatpush1.msra.mxu0 0.0
  %2440 = vmatprep.subr.mxu0 0.0
  %2441 = vmatpush1.msra.mxu0 0.0
  %2442 = vmatprep.subr.mxu0 0.0
  %2443 = vmatpush1.msra.mxu0 0.0
  %2444 = vmatprep.subr.mxu0 0.0
  %2445 = vmatpush1.msra.mxu0 0.0
  %2446 = vmatprep.subr.mxu0 0.0
  %2447 = vmatpush1.msra.mxu0 0.0
  %2448 = vmatprep.subr.mxu0 0.0
  %2449 = vmatpush1.msra.mxu0 0.0
  %2450 = vmatprep.subr.mxu0 0.0
  %2451 = vmatpush1.msra.mxu0 0.0
  %2452 = vmatprep.subr.mxu0 0.0
  %2453 = vmatpush1.msra.mxu0 0.0
  %2454 = vmatprep.subr.mxu0 0.0
  %2455 = vmatpush1.msra.mxu0 0.0
  %2456 = vmatprep.subr.mxu0 0.0
  %2457 = vmatpush1.msra.mxu0 0.0
  %2458 = vmatprep.subr.mxu0 0.0
  %2459 = vmatpush1.msra.mxu0 0.0
  %2460 = vmatprep.subr.mxu0 0.0
  %2461 = vmatpush1.msra.mxu0 0.0
  %2462 = vmatprep.subr.mxu0 0.0
  %2463 = vmatpush1.msra.mxu0 0.0
  %2464 = vmatprep.subr.mxu0 0.0
  %2465 = vmatpush1.msra.mxu0 0.0
  %2466 = vmatprep.subr.mxu0 0.0
  %2467 = vmatpush1.msra.mxu0 0.0
  %2468 = vmatprep.subr.mxu0 0.0
  %2469 = vmatpush1.msra.mxu0 0.0
  %2470 = vmatprep.subr.mxu0 0.0
  %2471 = vmatpush1.msra.mxu0 0.0
  %2472 = vmatprep.subr.mxu0 0.0
  %2473 = vmatpush1.msra.mxu0 0.0
  %2474 = vmatprep.subr.mxu0 0.0
  %2475 = vmatpush1.msra.mxu0 0.0
  %2476 = vmatprep.subr.mxu0 0.0
  %2477 = vmatpush1.msra.mxu0 0.0
  %2478 = vmatprep.subr.mxu0 0.0
  %2479 = vmatpush1.msra.mxu0 0.0
  %2480 = vmatprep.subr.mxu0 0.0
  %2481 = vmatpush1.msra.mxu0 0.0
  %2482 = vmatprep.subr.mxu0 0.0
  %2483 = vmatpush1.msra.mxu0 0.0
  %2484 = vmatprep.subr.mxu0 0.0
  %2485 = vmatpush1.msra.mxu0 0.0
  %2486 = vmatprep.subr.mxu0 0.0
  %2487 = vmatpush1.msra.mxu0 0.0
  %2488 = vmatprep.subr.mxu0 0.0
  %2489 = vmatpush1.msra.mxu0 0.0
  %2490 = vmatprep.subr.mxu0 0.0
  %2491 = vmatpush1.msra.mxu0 0.0
  %2492 = vmatprep.subr.mxu0 0.0
  %2493 = vmatpush1.msra.mxu0 0.0
  %2494 = vmatprep.mubr.f32.mxu0 0.0
  %2495 = vmatmul.mubr.f32.gmra.mrb[0].mxu0 %v2425
  %v2496 = vpop.f32.mrb[0].mxu0
  %v2497 = vadd.f32 0.0, %v2496
  %v2498 = vpop.f32.mrb[0].mxu0
  %2499 = vmatprep.mubr.f32.mxu0 0.0
  %2500 = vmatmul.mubr.f32.gmra.mrb[0].mxu0 %v2428
  %v2501 = vpop.f32.mrb[0].mxu0
  %v2502 = vadd.f32 0.0, %v2501
  %v2503 = vpop.f32.mrb[0].mxu0
  %2504 = vdwg.mxu0
  %v2505 = vadd.f32 %v2422, %v2497
  %v2506 = vadd.f32 %v2423, %v2502
  %2508 = vset.pattern.permute.xlu0 0
  %2509 = vperm.xlu0 %2508, %v2066
  %v2510 = vpop.permute.xlu0 %2509
  %2513 = vset.pattern.permute.xlu0 0
  %2514 = vperm.xlu0 %2513, %v2067
  %v2515 = vpop.permute.xlu0 %2514
  %v2517 = vadd.f32 %v2505, %v2510
  %v2518 = vadd.f32 %v2506, %v2515
  %v2519 = vsel %vm367, %v2517, 0.0
  %v2520 = vsel %vm367, %v2518, 0.0
  %v2521 = vadd.f32 %v2519, %v2520
  %v2522 = vrot.slane %v2521, 4
  %v2523 = vadd.f32 %v2521, %v2522
  %v2524 = vrot.slane %v2523, 2
  %v2525 = vadd.f32 %v2523, %v2524
  %v2526 = vrot.slane %v2525, 1
  %v2527 = vadd.f32 %v2525, %v2526
  %v2528 = vmul.f32 %v2527, %v377
  %v2529 = vsub.f32 %v2517, %v2528
  %v2530 = vsub.f32 %v2518, %v2528
  %v2531 = vmul.f32 %v2529, %v2529
  %v2532 = vmul.f32 %v2530, %v2530
  %v2533 = vsel %vm367, %v2531, 0.0
  %v2534 = vsel %vm367, %v2532, 0.0
  %v2535 = vadd.f32 %v2533, %v2534
  %v2536 = vrot.slane %v2535, 4
  %v2537 = vadd.f32 %v2535, %v2536
  %v2538 = vrot.slane %v2537, 2
  %v2539 = vadd.f32 %v2537, %v2538
  %v2540 = vrot.slane %v2539, 1
  %v2541 = vadd.f32 %v2539, %v2540
  %v2542 = vmul.f32 %v2541, %v377
  %v2543 = vadd.f32 %v2542, 1e-05
  %v2544 = vrsqrt.pop %v2543
  %v2545 = vmul.f32 %v2529, %v2544
  %v2546 = vmul.f32 %v2530, %v2544
  %2548 = vset.pattern.permute.xlu0 0
  %2549 = vperm.xlu0 %2548, %v2072
  %v2550 = vpop.permute.xlu0 %2549
  %2553 = vset.pattern.permute.xlu0 0
  %2554 = vperm.xlu0 %2553, %v2073
  %v2555 = vpop.permute.xlu0 %2554
  %v2557 = vmul.f32 %v2545, %v2550
  %v2558 = vmul.f32 %v2546, %v2555
  %2560 = vset.pattern.permute.xlu0 0
  %2561 = vperm.xlu0 %2560, %v2074
  %v2562 = vpop.permute.xlu0 %2561
  %2565 = vset.pattern.permute.xlu0 0
  %2566 = vperm.xlu0 %2565, %v2075
  %v2567 = vpop.permute.xlu0 %2566
  %v2569 = vadd.f32 %v2557, %v2562
  %v2570 = vadd.f32 %v2558, %v2567
  %v2571 = vadd.f32 %v1543, %v2569
  %v2572 = vadd.f32 %v1544, %v2570
  %v2573 = vld [vmem:[%s75] sm:$0xff]
  %v2574 = vld [vmem:[%s75 + $0x8] sm:$0xff]
  %v2575 = vld [vmem:[%s75 + $0x10] sm:$0xff]
  %v2576 = vld [vmem:[%s75 + $0x18] sm:$0xff]
  %v2577 = vld [vmem:[%s77] sm:$0xff]
  %v2578 = vld [vmem:[%s77 + $0x8] sm:$0xff]
  %v2579 = vld [vmem:[%s77 + $0x10] sm:$0xff]
  %v2580 = vld [vmem:[%s77 + $0x18] sm:$0xff]
  %v2581 = vld [vmem:[%s79] sm:$0xff]
  %v2582 = vld [vmem:[%s81] sm:$0xff]
  %2584 = vset.pattern.permute.xlu0 0
  %2585 = vperm.xlu0 %2584, %v2577
  %v2586 = vpop.permute.xlu0 %2585
  %2589 = vset.pattern.permute.xlu0 0
  %2590 = vperm.xlu0 %2589, %v2578
  %v2591 = vpop.permute.xlu0 %2590
  %2594 = vset.pattern.permute.xlu0 0
  %2595 = vperm.xlu0 %2594, %v2579
  %v2596 = vpop.permute.xlu0 %2595
  %2599 = vset.pattern.permute.xlu0 0
  %2600 = vperm.xlu0 %2599, %v2580
  %v2601 = vpop.permute.xlu0 %2600
  %v2604 = vsel %vm406, %v2573, 0
  %v2607 = vsel %vm406, %v2574, 0
  %v2610 = vsel %vm406, %v2575, 0
  %v2613 = vsel %vm406, %v2576, 0
  %2615 = vmatprep.subr.mxu0 0.0
  %2616 = vmatpush1.msra.mxu0 %v2571
  %2617 = vmatprep.subr.mxu0 0.0
  %2618 = vmatpush1.msra.mxu0 %v2572
  %2619 = vmatprep.subr.mxu0 0.0
  %2620 = vmatpush1.msra.mxu0 0.0
  %2621 = vmatprep.subr.mxu0 0.0
  %2622 = vmatpush1.msra.mxu0 0.0
  %2623 = vmatprep.subr.mxu0 0.0
  %2624 = vmatpush1.msra.mxu0 0.0
  %2625 = vmatprep.subr.mxu0 0.0
  %2626 = vmatpush1.msra.mxu0 0.0
  %2627 = vmatprep.subr.mxu0 0.0
  %2628 = vmatpush1.msra.mxu0 0.0
  %2629 = vmatprep.subr.mxu0 0.0
  %2630 = vmatpush1.msra.mxu0 0.0
  %2631 = vmatprep.subr.mxu0 0.0
  %2632 = vmatpush1.msra.mxu0 0.0
  %2633 = vmatprep.subr.mxu0 0.0
  %2634 = vmatpush1.msra.mxu0 0.0
  %2635 = vmatprep.subr.mxu0 0.0
  %2636 = vmatpush1.msra.mxu0 0.0
  %2637 = vmatprep.subr.mxu0 0.0
  %2638 = vmatpush1.msra.mxu0 0.0
  %2639 = vmatprep.subr.mxu0 0.0
  %2640 = vmatpush1.msra.mxu0 0.0
  %2641 = vmatprep.subr.mxu0 0.0
  %2642 = vmatpush1.msra.mxu0 0.0
  %2643 = vmatprep.subr.mxu0 0.0
  %2644 = vmatpush1.msra.mxu0 0.0
  %2645 = vmatprep.subr.mxu0 0.0
  %2646 = vmatpush1.msra.mxu0 0.0
  %2647 = vmatprep.subr.mxu0 0.0
  %2648 = vmatpush1.msra.mxu0 0.0
  %2649 = vmatprep.subr.mxu0 0.0
  %2650 = vmatpush1.msra.mxu0 0.0
  %2651 = vmatprep.subr.mxu0 0.0
  %2652 = vmatpush1.msra.mxu0 0.0
  %2653 = vmatprep.subr.mxu0 0.0
  %2654 = vmatpush1.msra.mxu0 0.0
  %2655 = vmatprep.subr.mxu0 0.0
  %2656 = vmatpush1.msra.mxu0 0.0
  %2657 = vmatprep.subr.mxu0 0.0
  %2658 = vmatpush1.msra.mxu0 0.0
  %2659 = vmatprep.subr.mxu0 0.0
  %2660 = vmatpush1.msra.mxu0 0.0
  %2661 = vmatprep.subr.mxu0 0.0
  %2662 = vmatpush1.msra.mxu0 0.0
  %2663 = vmatprep.subr.mxu0 0.0
  %2664 = vmatpush1.msra.mxu0 0.0
  %2665 = vmatprep.subr.mxu0 0.0
  %2666 = vmatpush1.msra.mxu0 0.0
  %2667 = vmatprep.subr.mxu0 0.0
  %2668 = vmatpush1.msra.mxu0 0.0
  %2669 = vmatprep.subr.mxu0 0.0
  %2670 = vmatpush1.msra.mxu0 0.0
  %2671 = vmatprep.subr.mxu0 0.0
  %2672 = vmatpush1.msra.mxu0 0.0
  %2673 = vmatprep.subr.mxu0 0.0
  %2674 = vmatpush1.msra.mxu0 0.0
  %2675 = vmatprep.subr.mxu0 0.0
  %2676 = vmatpush1.msra.mxu0 0.0
  %2677 = vmatprep.subr.mxu0 0.0
  %2678 = vmatpush1.msra.mxu0 0.0
  %2679 = vmatprep.mubr.f32.mxu0 0.0
  %2680 = vmatmul.mubr.f32.gmra.mrb[0].mxu0 %v2604
  %v2681 = vpop.f32.mrb[0].mxu0
  %v2682 = vadd.f32 %v2586, %v2681
  %v2683 = vpop.f32.mrb[0].mxu0
  %2684 = vmatprep.mubr.f32.mxu0 0.0
  %2685 = vmatmul.mubr.f32.gmra.mrb[0].mxu0 %v2607
  %v2686 = vpop.f32.mrb[0].mxu0
  %v2687 = vadd.f32 %v2591, %v2686
  %v2688 = vpop.f32.mrb[0].mxu0
  %2689 = vmatprep.mubr.f32.mxu0 0.0
  %2690 = vmatmul.mubr.f32.gmra.mrb[0].mxu0 %v2610
  %v2691 = vpop.f32.mrb[0].mxu0
  %v2692 = vadd.f32 %v2596, %v2691
  %v2693 = vpop.f32.mrb[0].mxu0
  %2694 = vmatprep.mubr.f32.mxu0 0.0
  %2695 = vmatmul.mubr.f32.gmra.mrb[0].mxu0 %v2613
  %v2696 = vpop.f32.mrb[0].mxu0
  %v2697 = vadd.f32 %v2601, %v2696
  %v2698 = vpop.f32.mrb[0].mxu0
  %2699 = vdwg.mxu0
  %v2700 = vmul.f32 %v2682, 0.5
  %v2701 = vmul.f32 %v2687, 0.5
  %v2702 = vmul.f32 %v2692, 0.5
  %v2703 = vmul.f32 %v2697, 0.5
  %v2704 = vmul.f32 %v2682, 0.70710677
  %v2705 = vmul.f32 %v2687, 0.70710677
  %v2706 = vmul.f32 %v2692, 0.70710677
  %v2707 = vmul.f32 %v2697, 0.70710677
  %v2708 = verf.f32.pop %v2704
  %v2709 = verf.f32.pop %v2705
  %v2710 = verf.f32.pop %v2706
  %v2711 = verf.f32.pop %v2707
  %v2712 = vadd.f32 %v2708, 1.0
  %v2713 = vadd.f32 %v2709, 1.0
  %v2714 = vadd.f32 %v2710, 1.0
  %v2715 = vadd.f32 %v2711, 1.0
  %v2716 = vmul.f32 %v2700, %v2712
  %v2717 = vmul.f32 %v2701, %v2713
  %v2718 = vmul.f32 %v2702, %v2714
  %v2719 = vmul.f32 %v2703, %v2715
  %2721 = vset.pattern.permute.xlu0 0
  %2722 = vperm.xlu0 %2721, %v2582
  %v2723 = vpop.permute.xlu0 %2722
  %v2726 = vsel %vm749, %v2581, 0
  %2728 = vmatprep.subr.mxu0 0.0
  %2729 = vmatpush1.msra.mxu0 %v2716
  %2730 = vmatprep.subr.mxu0 0.0
  %2731 = vmatpush1.msra.mxu0 %v2717
  %2732 = vmatprep.subr.mxu0 0.0
  %2733 = vmatpush1.msra.mxu0 %v2718
  %2734 = vmatprep.subr.mxu0 0.0
  %2735 = vmatpush1.msra.mxu0 %v2719
  %2736 = vmatprep.subr.mxu0 0.0
  %2737 = vmatpush1.msra.mxu0 0.0
  %2738 = vmatprep.subr.mxu0 0.0
  %2739 = vmatpush1.msra.mxu0 0.0
  %2740 = vmatprep.subr.mxu0 0.0
  %2741 = vmatpush1.msra.mxu0 0.0
  %2742 = vmatprep.subr.mxu0 0.0
  %2743 = vmatpush1.msra.mxu0 0.0
  %2744 = vmatprep.subr.mxu0 0.0
  %2745 = vmatpush1.msra.mxu0 0.0
  %2746 = vmatprep.subr.mxu0 0.0
  %2747 = vmatpush1.msra.mxu0 0.0
  %2748 = vmatprep.subr.mxu0 0.0
  %2749 = vmatpush1.msra.mxu0 0.0
  %2750 = vmatprep.subr.mxu0 0.0
  %2751 = vmatpush1.msra.mxu0 0.0
  %2752 = vmatprep.subr.mxu0 0.0
  %2753 = vmatpush1.msra.mxu0 0.0
  %2754 = vmatprep.subr.mxu0 0.0
  %2755 = vmatpush1.msra.mxu0 0.0
  %2756 = vmatprep.subr.mxu0 0.0
  %2757 = vmatpush1.msra.mxu0 0.0
  %2758 = vmatprep.subr.mxu0 0.0
  %2759 = vmatpush1.msra.mxu0 0.0
  %2760 = vmatprep.subr.mxu0 0.0
  %2761 = vmatpush1.msra.mxu0 0.0
  %2762 = vmatprep.subr.mxu0 0.0
  %2763 = vmatpush1.msra.mxu0 0.0
  %2764 = vmatprep.subr.mxu0 0.0
  %2765 = vmatpush1.msra.mxu0 0.0
  %2766 = vmatprep.subr.mxu0 0.0
  %2767 = vmatpush1.msra.mxu0 0.0
  %2768 = vmatprep.subr.mxu0 0.0
  %2769 = vmatpush1.msra.mxu0 0.0
  %2770 = vmatprep.subr.mxu0 0.0
  %2771 = vmatpush1.msra.mxu0 0.0
  %2772 = vmatprep.subr.mxu0 0.0
  %2773 = vmatpush1.msra.mxu0 0.0
  %2774 = vmatprep.subr.mxu0 0.0
  %2775 = vmatpush1.msra.mxu0 0.0
  %2776 = vmatprep.subr.mxu0 0.0
  %2777 = vmatpush1.msra.mxu0 0.0
  %2778 = vmatprep.subr.mxu0 0.0
  %2779 = vmatpush1.msra.mxu0 0.0
  %2780 = vmatprep.subr.mxu0 0.0
  %2781 = vmatpush1.msra.mxu0 0.0
  %2782 = vmatprep.subr.mxu0 0.0
  %2783 = vmatpush1.msra.mxu0 0.0
  %2784 = vmatprep.subr.mxu0 0.0
  %2785 = vmatpush1.msra.mxu0 0.0
  %2786 = vmatprep.subr.mxu0 0.0
  %2787 = vmatpush1.msra.mxu0 0.0
  %2788 = vmatprep.subr.mxu0 0.0
  %2789 = vmatpush1.msra.mxu0 0.0
  %2790 = vmatprep.subr.mxu0 0.0
  %2791 = vmatpush1.msra.mxu0 0.0
  %2792 = vmatprep.mubr.f32.mxu0 0.0
  %2793 = vmatmul.mubr.f32.gmra.mrb[0].mxu0 %v2726
  %v2794 = vpop.f32.mrb[0].mxu0
  %v2795 = vadd.f32 %v2723, %v2794
  %v2796 = vpop.f32.mrb[0].mxu0
  %2797 = vdwg.mxu0
  %v2798 = vld [vmem:[%s83] sm:$0xff]
  %v2799 = vld [vmem:[%s83 + $0x8] sm:$0xff]
  %v2800 = vld [vmem:[%s83 + $0x10] sm:$0xff]
  %v2801 = vld [vmem:[%s83 + $0x18] sm:$0xff]
  %v2802 = vld [vmem:[%s85] sm:$0xff]
  %v2803 = vld [vmem:[%s85 + $0x8] sm:$0xff]
  %v2804 = vld [vmem:[%s85 + $0x10] sm:$0xff]
  %v2805 = vld [vmem:[%s85 + $0x18] sm:$0xff]
  %v2806 = vld [vmem:[%s87] sm:$0xff]
  %v2807 = vld [vmem:[%s89] sm:$0xff]
  %2809 = vset.pattern.permute.xlu0 0
  %2810 = vperm.xlu0 %2809, %v2802
  %v2811 = vpop.permute.xlu0 %2810
  %2814 = vset.pattern.permute.xlu0 0
  %2815 = vperm.xlu0 %2814, %v2803
  %v2816 = vpop.permute.xlu0 %2815
  %2819 = vset.pattern.permute.xlu0 0
  %2820 = vperm.xlu0 %2819, %v2804
  %v2821 = vpop.permute.xlu0 %2820
  %2824 = vset.pattern.permute.xlu0 0
  %2825 = vperm.xlu0 %2824, %v2805
  %v2826 = vpop.permute.xlu0 %2825
  %v2829 = vsel %vm367, %v2798, 0
  %v2832 = vsel %vm367, %v2799, 0
  %v2835 = vsel %vm367, %v2800, 0
  %v2838 = vsel %vm367, %v2801, 0
  %2840 = vmatprep.subr.mxu0 0.0
  %2841 = vmatpush1.msra.mxu0 %v2795
  %2842 = vmatprep.subr.mxu0 0.0
  %2843 = vmatpush1.msra.mxu0 0.0
  %2844 = vmatprep.subr.mxu0 0.0
  %2845 = vmatpush1.msra.mxu0 0.0
  %2846 = vmatprep.subr.mxu0 0.0
  %2847 = vmatpush1.msra.mxu0 0.0
  %2848 = vmatprep.subr.mxu0 0.0
  %2849 = vmatpush1.msra.mxu0 0.0
  %2850 = vmatprep.subr.mxu0 0.0
  %2851 = vmatpush1.msra.mxu0 0.0
  %2852 = vmatprep.subr.mxu0 0.0
  %2853 = vmatpush1.msra.mxu0 0.0
  %2854 = vmatprep.subr.mxu0 0.0
  %2855 = vmatpush1.msra.mxu0 0.0
  %2856 = vmatprep.subr.mxu0 0.0
  %2857 = vmatpush1.msra.mxu0 0.0
  %2858 = vmatprep.subr.mxu0 0.0
  %2859 = vmatpush1.msra.mxu0 0.0
  %2860 = vmatprep.subr.mxu0 0.0
  %2861 = vmatpush1.msra.mxu0 0.0
  %2862 = vmatprep.subr.mxu0 0.0
  %2863 = vmatpush1.msra.mxu0 0.0
  %2864 = vmatprep.subr.mxu0 0.0
  %2865 = vmatpush1.msra.mxu0 0.0
  %2866 = vmatprep.subr.mxu0 0.0
  %2867 = vmatpush1.msra.mxu0 0.0
  %2868 = vmatprep.subr.mxu0 0.0
  %2869 = vmatpush1.msra.mxu0 0.0
  %2870 = vmatprep.subr.mxu0 0.0
  %2871 = vmatpush1.msra.mxu0 0.0
  %2872 = vmatprep.subr.mxu0 0.0
  %2873 = vmatpush1.msra.mxu0 0.0
  %2874 = vmatprep.subr.mxu0 0.0
  %2875 = vmatpush1.msra.mxu0 0.0
  %2876 = vmatprep.subr.mxu0 0.0
  %2877 = vmatpush1.msra.mxu0 0.0
  %2878 = vmatprep.subr.mxu0 0.0
  %2879 = vmatpush1.msra.mxu0 0.0
  %2880 = vmatprep.subr.mxu0 0.0
  %2881 = vmatpush1.msra.mxu0 0.0
  %2882 = vmatprep.subr.mxu0 0.0
  %2883 = vmatpush1.msra.mxu0 0.0
  %2884 = vmatprep.subr.mxu0 0.0
  %2885 = vmatpush1.msra.mxu0 0.0
  %2886 = vmatprep.subr.mxu0 0.0
  %2887 = vmatpush1.msra.mxu0 0.0
  %2888 = vmatprep.subr.mxu0 0.0
  %2889 = vmatpush1.msra.mxu0 0.0
  %2890 = vmatprep.subr.mxu0 0.0
  %2891 = vmatpush1.msra.mxu0 0.0
  %2892 = vmatprep.subr.mxu0 0.0
  %2893 = vmatpush1.msra.mxu0 0.0
  %2894 = vmatprep.subr.mxu0 0.0
  %2895 = vmatpush1.msra.mxu0 0.0
  %2896 = vmatprep.subr.mxu0 0.0
  %2897 = vmatpush1.msra.mxu0 0.0
  %2898 = vmatprep.subr.mxu0 0.0
  %2899 = vmatpush1.msra.mxu0 0.0
  %2900 = vmatprep.subr.mxu0 0.0
  %2901 = vmatpush1.msra.mxu0 0.0
  %2902 = vmatprep.subr.mxu0 0.0
  %2903 = vmatpush1.msra.mxu0 0.0
  %2904 = vmatprep.mubr.f32.mxu0 0.0
  %2905 = vmatmul.mubr.f32.gmra.mrb[0].mxu0 %v2829
  %v2906 = vpop.f32.mrb[0].mxu0
  %v2907 = vadd.f32 %v2811, %v2906
  %v2908 = vpop.f32.mrb[0].mxu0
  %2909 = vmatprep.mubr.f32.mxu0 0.0
  %2910 = vmatmul.mubr.f32.gmra.mrb[0].mxu0 %v2832
  %v2911 = vpop.f32.mrb[0].mxu0
  %v2912 = vadd.f32 %v2816, %v2911
  %v2913 = vpop.f32.mrb[0].mxu0
  %2914 = vmatprep.mubr.f32.mxu0 0.0
  %2915 = vmatmul.mubr.f32.gmra.mrb[0].mxu0 %v2835
  %v2916 = vpop.f32.mrb[0].mxu0
  %v2917 = vadd.f32 %v2821, %v2916
  %v2918 = vpop.f32.mrb[0].mxu0
  %2919 = vmatprep.mubr.f32.mxu0 0.0
  %2920 = vmatmul.mubr.f32.gmra.mrb[0].mxu0 %v2838
  %v2921 = vpop.f32.mrb[0].mxu0
  %v2922 = vadd.f32 %v2826, %v2921
  %v2923 = vpop.f32.mrb[0].mxu0
  %2924 = vdwg.mxu0
  %v2925 = vmul.f32 %v2907, 0.5
  %v2926 = vmul.f32 %v2912, 0.5
  %v2927 = vmul.f32 %v2917, 0.5
  %v2928 = vmul.f32 %v2922, 0.5
  %v2929 = vmul.f32 %v2907, 0.70710677
  %v2930 = vmul.f32 %v2912, 0.70710677
  %v2931 = vmul.f32 %v2917, 0.70710677
  %v2932 = vmul.f32 %v2922, 0.70710677
  %v2933 = verf.f32.pop %v2929
  %v2934 = verf.f32.pop %v2930
  %v2935 = verf.f32.pop %v2931
  %v2936 = verf.f32.pop %v2932
  %v2937 = vadd.f32 %v2933, 1.0
  %v2938 = vadd.f32 %v2934, 1.0
  %v2939 = vadd.f32 %v2935, 1.0
  %v2940 = vadd.f32 %v2936, 1.0
  %v2941 = vmul.f32 %v2925, %v2937
  %v2942 = vmul.f32 %v2926, %v2938
  %v2943 = vmul.f32 %v2927, %v2939
  %v2944 = vmul.f32 %v2928, %v2940
  %2946 = vset.pattern.permute.xlu0 0
  %2947 = vperm.xlu0 %2946, %v2807
  %v2948 = vpop.permute.xlu0 %2947
  %v2951 = vsel %vm749, %v2806, 0
  %2953 = vmatprep.subr.mxu0 0.0
  %2954 = vmatpush1.msra.mxu0 %v2941
  %2955 = vmatprep.subr.mxu0 0.0
  %2956 = vmatpush1.msra.mxu0 %v2942
  %2957 = vmatprep.subr.mxu0 0.0
  %2958 = vmatpush1.msra.mxu0 %v2943
  %2959 = vmatprep.subr.mxu0 0.0
  %2960 = vmatpush1.msra.mxu0 %v2944
  %2961 = vmatprep.subr.mxu0 0.0
  %2962 = vmatpush1.msra.mxu0 0.0
  %2963 = vmatprep.subr.mxu0 0.0
  %2964 = vmatpush1.msra.mxu0 0.0
  %2965 = vmatprep.subr.mxu0 0.0
  %2966 = vmatpush1.msra.mxu0 0.0
  %2967 = vmatprep.subr.mxu0 0.0
  %2968 = vmatpush1.msra.mxu0 0.0
  %2969 = vmatprep.subr.mxu0 0.0
  %2970 = vmatpush1.msra.mxu0 0.0
  %2971 = vmatprep.subr.mxu0 0.0
  %2972 = vmatpush1.msra.mxu0 0.0
  %2973 = vmatprep.subr.mxu0 0.0
  %2974 = vmatpush1.msra.mxu0 0.0
  %2975 = vmatprep.subr.mxu0 0.0
  %2976 = vmatpush1.msra.mxu0 0.0
  %2977 = vmatprep.subr.mxu0 0.0
  %2978 = vmatpush1.msra.mxu0 0.0
  %2979 = vmatprep.subr.mxu0 0.0
  %2980 = vmatpush1.msra.mxu0 0.0
  %2981 = vmatprep.subr.mxu0 0.0
  %2982 = vmatpush1.msra.mxu0 0.0
  %2983 = vmatprep.subr.mxu0 0.0
  %2984 = vmatpush1.msra.mxu0 0.0
  %2985 = vmatprep.subr.mxu0 0.0
  %2986 = vmatpush1.msra.mxu0 0.0
  %2987 = vmatprep.subr.mxu0 0.0
  %2988 = vmatpush1.msra.mxu0 0.0
  %2989 = vmatprep.subr.mxu0 0.0
  %2990 = vmatpush1.msra.mxu0 0.0
  %2991 = vmatprep.subr.mxu0 0.0
  %2992 = vmatpush1.msra.mxu0 0.0
  %2993 = vmatprep.subr.mxu0 0.0
  %2994 = vmatpush1.msra.mxu0 0.0
  %2995 = vmatprep.subr.mxu0 0.0
  %2996 = vmatpush1.msra.mxu0 0.0
  %2997 = vmatprep.subr.mxu0 0.0
  %2998 = vmatpush1.msra.mxu0 0.0
  %2999 = vmatprep.subr.mxu0 0.0
  %3000 = vmatpush1.msra.mxu0 0.0
  %3001 = vmatprep.subr.mxu0 0.0
  %3002 = vmatpush1.msra.mxu0 0.0
  %3003 = vmatprep.subr.mxu0 0.0
  %3004 = vmatpush1.msra.mxu0 0.0
  %3005 = vmatprep.subr.mxu0 0.0
  %3006 = vmatpush1.msra.mxu0 0.0
  %3007 = vmatprep.subr.mxu0 0.0
  %3008 = vmatpush1.msra.mxu0 0.0
  %3009 = vmatprep.subr.mxu0 0.0
  %3010 = vmatpush1.msra.mxu0 0.0
  %3011 = vmatprep.subr.mxu0 0.0
  %3012 = vmatpush1.msra.mxu0 0.0
  %3013 = vmatprep.subr.mxu0 0.0
  %3014 = vmatpush1.msra.mxu0 0.0
  %3015 = vmatprep.subr.mxu0 0.0
  %3016 = vmatpush1.msra.mxu0 0.0
  %3017 = vmatprep.mubr.f32.mxu0 0.0
  %3018 = vmatmul.mubr.f32.gmra.mrb[0].mxu0 %v2951
  %v3019 = vpop.f32.mrb[0].mxu0
  %v3020 = vadd.f32 %v2948, %v3019
  %v3021 = vpop.f32.mrb[0].mxu0
  %3022 = vdwg.mxu0
  %v3023 = vmul.f32 %v3020, %v400
  %v3024 = vadd.f32 %v3023, %v378
  %v3025 = vld [vmem:[%s7] sm:$0xff]
  %v3027 = vsel %vm367, %v3024, 0
  %3029 = vmatprep.subr.mxu0 0.0
  %3030 = vmatpush1.msra.mxu0 %v3025
  %3031 = vmatprep.subr.mxu0 0.0
  %3032 = vmatpush1.msra.mxu0 0.0
  %3033 = vmatprep.subr.mxu0 0.0
  %3034 = vmatpush1.msra.mxu0 0.0
  %3035 = vmatprep.subr.mxu0 0.0
  %3036 = vmatpush1.msra.mxu0 0.0
  %3037 = vmatprep.subr.mxu0 0.0
  %3038 = vmatpush1.msra.mxu0 0.0
  %3039 = vmatprep.subr.mxu0 0.0
  %3040 = vmatpush1.msra.mxu0 0.0
  %3041 = vmatprep.subr.mxu0 0.0
  %3042 = vmatpush1.msra.mxu0 0.0
  %3043 = vmatprep.subr.mxu0 0.0
  %3044 = vmatpush1.msra.mxu0 0.0
  %3045 = vmatprep.subr.mxu0 0.0
  %3046 = vmatpush1.msra.mxu0 0.0
  %3047 = vmatprep.subr.mxu0 0.0
  %3048 = vmatpush1.msra.mxu0 0.0
  %3049 = vmatprep.subr.mxu0 0.0
  %3050 = vmatpush1.msra.mxu0 0.0
  %3051 = vmatprep.subr.mxu0 0.0
  %3052 = vmatpush1.msra.mxu0 0.0
  %3053 = vmatprep.subr.mxu0 0.0
  %3054 = vmatpush1.msra.mxu0 0.0
  %3055 = vmatprep.subr.mxu0 0.0
  %3056 = vmatpush1.msra.mxu0 0.0
  %3057 = vmatprep.subr.mxu0 0.0
  %3058 = vmatpush1.msra.mxu0 0.0
  %3059 = vmatprep.subr.mxu0 0.0
  %3060 = vmatpush1.msra.mxu0 0.0
  %3061 = vmatprep.subr.mxu0 0.0
  %3062 = vmatpush1.msra.mxu0 0.0
  %3063 = vmatprep.subr.mxu0 0.0
  %3064 = vmatpush1.msra.mxu0 0.0
  %3065 = vmatprep.subr.mxu0 0.0
  %3066 = vmatpush1.msra.mxu0 0.0
  %3067 = vmatprep.subr.mxu0 0.0
  %3068 = vmatpush1.msra.mxu0 0.0
  %3069 = vmatprep.subr.mxu0 0.0
  %3070 = vmatpush1.msra.mxu0 0.0
  %3071 = vmatprep.subr.mxu0 0.0
  %3072 = vmatpush1.msra.mxu0 0.0
  %3073 = vmatprep.subr.mxu0 0.0
  %3074 = vmatpush1.msra.mxu0 0.0
  %3075 = vmatprep.subr.mxu0 0.0
  %3076 = vmatpush1.msra.mxu0 0.0
  %3077 = vmatprep.subr.mxu0 0.0
  %3078 = vmatpush1.msra.mxu0 0.0
  %3079 = vmatprep.subr.mxu0 0.0
  %3080 = vmatpush1.msra.mxu0 0.0
  %3081 = vmatprep.subr.mxu0 0.0
  %3082 = vmatpush1.msra.mxu0 0.0
  %3083 = vmatprep.subr.mxu0 0.0
  %3084 = vmatpush1.msra.mxu0 0.0
  %3085 = vmatprep.subr.mxu0 0.0
  %3086 = vmatpush1.msra.mxu0 0.0
  %3087 = vmatprep.subr.mxu0 0.0
  %3088 = vmatpush1.msra.mxu0 0.0
  %3089 = vmatprep.subr.mxu0 0.0
  %3090 = vmatpush1.msra.mxu0 0.0
  %3091 = vmatprep.subr.mxu0 0.0
  %3092 = vmatpush1.msra.mxu0 0.0
  %3093 = vmatprep.mubr.f32.mxu0 0.0
  %3094 = vmatmul.mubr.f32.gmra.mrb[0].mxu0 %v3027
  %v3095 = vpop.f32.mrb[0].mxu0
  %v3096 = vadd.f32 0.0, %v3095
  %v3097 = vpop.f32.mrb[0].mxu0
  %3098 = vdwg.mxu0
  %3099 = vst.msk [vmem:[%s91] sm:$0xff] %vm197, %v3096
  %s3100 = scalar_lea.vmem %s7, 8
  %v3101 = vld [vmem:[%s3100] sm:$0xff]
  %3102 = vmatprep.subr.mxu0 0.0
  %3103 = vmatpush1.msra.mxu0 %v3101
  %3104 = vmatprep.subr.mxu0 0.0
  %3105 = vmatpush1.msra.mxu0 0.0
  %3106 = vmatprep.subr.mxu0 0.0
  %3107 = vmatpush1.msra.mxu0 0.0
  %3108 = vmatprep.subr.mxu0 0.0
  %3109 = vmatpush1.msra.mxu0 0.0
  %3110 = vmatprep.subr.mxu0 0.0
  %3111 = vmatpush1.msra.mxu0 0.0
  %3112 = vmatprep.subr.mxu0 0.0
  %3113 = vmatpush1.msra.mxu0 0.0
  %3114 = vmatprep.subr.mxu0 0.0
  %3115 = vmatpush1.msra.mxu0 0.0
  %3116 = vmatprep.subr.mxu0 0.0
  %3117 = vmatpush1.msra.mxu0 0.0
  %3118 = vmatprep.subr.mxu0 0.0
  %3119 = vmatpush1.msra.mxu0 0.0
  %3120 = vmatprep.subr.mxu0 0.0
  %3121 = vmatpush1.msra.mxu0 0.0
  %3122 = vmatprep.subr.mxu0 0.0
  %3123 = vmatpush1.msra.mxu0 0.0
  %3124 = vmatprep.subr.mxu0 0.0
  %3125 = vmatpush1.msra.mxu0 0.0
  %3126 = vmatprep.subr.mxu0 0.0
  %3127 = vmatpush1.msra.mxu0 0.0
  %3128 = vmatprep.subr.mxu0 0.0
  %3129 = vmatpush1.msra.mxu0 0.0
  %3130 = vmatprep.subr.mxu0 0.0
  %3131 = vmatpush1.msra.mxu0 0.0
  %3132 = vmatprep.subr.mxu0 0.0
  %3133 = vmatpush1.msra.mxu0 0.0
  %3134 = vmatprep.subr.mxu0 0.0
  %3135 = vmatpush1.msra.mxu0 0.0
  %3136 = vmatprep.subr.mxu0 0.0
  %3137 = vmatpush1.msra.mxu0 0.0
  %3138 = vmatprep.subr.mxu0 0.0
  %3139 = vmatpush1.msra.mxu0 0.0
  %3140 = vmatprep.subr.mxu0 0.0
  %3141 = vmatpush1.msra.mxu0 0.0
  %3142 = vmatprep.subr.mxu0 0.0
  %3143 = vmatpush1.msra.mxu0 0.0
  %3144 = vmatprep.subr.mxu0 0.0
  %3145 = vmatpush1.msra.mxu0 0.0
  %3146 = vmatprep.subr.mxu0 0.0
  %3147 = vmatpush1.msra.mxu0 0.0
  %3148 = vmatprep.subr.mxu0 0.0
  %3149 = vmatpush1.msra.mxu0 0.0
  %3150 = vmatprep.subr.mxu0 0.0
  %3151 = vmatpush1.msra.mxu0 0.0
  %3152 = vmatprep.subr.mxu0 0.0
  %3153 = vmatpush1.msra.mxu0 0.0
  %3154 = vmatprep.subr.mxu0 0.0
  %3155 = vmatpush1.msra.mxu0 0.0
  %3156 = vmatprep.subr.mxu0 0.0
  %3157 = vmatpush1.msra.mxu0 0.0
  %3158 = vmatprep.subr.mxu0 0.0
  %3159 = vmatpush1.msra.mxu0 0.0
  %3160 = vmatprep.subr.mxu0 0.0
  %3161 = vmatpush1.msra.mxu0 0.0
  %3162 = vmatprep.subr.mxu0 0.0
  %3163 = vmatpush1.msra.mxu0 0.0
  %3164 = vmatprep.subr.mxu0 0.0
  %3165 = vmatpush1.msra.mxu0 0.0
  %3166 = vmatprep.mubr.f32.mxu0 0.0
  %3167 = vmatmul.mubr.f32.gmra.mrb[0].mxu0 %v3027
  %v3168 = vpop.f32.mrb[0].mxu0
  %v3169 = vadd.f32 0.0, %v3168
  %v3170 = vpop.f32.mrb[0].mxu0
  %3171 = vdwg.mxu0
  %s3172 = scalar_lea.vmem %s91, 8
  %3173 = vst.msk [vmem:[%s3172] sm:$0xff] %vm197, %v3169
  // Predicated region
  $region182: #{model_forward.1} parent=0 // pred_check
    _
  $region183: #{model_forward.1} parent=0 // pred_check_branch
    %3175 = sbr.rel (0) target = $region185
  $region184: #{model_forward.1} parent=0 // pred_region
    _
  $region185: #{model_forward.1} parent=0 // pred_fallthru
    _
  // Predicated region
  $region186: #{model_forward.1} parent=0 // pred_check
    _
  $region187: #{model_forward.1} parent=0 // pred_check_branch
    %3177 = sbr.rel (0) target = $region189
  $region188: #{model_forward.1} parent=0 // pred_region
    _
  $region189: #{model_forward.1} parent=0 // pred_fallthru
    _

</llo_original>
